<compile_context>
chip_gen: v6e
topology: v6e:2x2x1
jax: 0.10.0
libtpu: 0.0.40
codegen_flags: <defaults>
</compile_context>

<pallas_src>
import math

import jax
import jax.numpy as jnp
from jax.experimental import pallas as pl
from jax.experimental.pallas import tpu as pltpu


def _round_up(x, m):
    return ((x + m - 1) // m) * m


# ---------------------------------------------------------------------------
# Fused kernel
# ---------------------------------------------------------------------------
def _make_s2s_kernel(t_enc, t_dec, bp, hp):
    """Builds the fused S2S forward kernel with static shapes baked in.

    Input refs (VMEM unless noted):
      xe, ye          : (T*Bp, E)   bf16  time-major embedded inputs (batch padded)
      e_wih, d_wih    : (E, 3Hp)    bf16  input->hidden weights, gate cols [r|n|z]
      e_whh           : (Hp, 3Hp)   bf16  encoder hidden->hidden weights
      e_gib, d_gib    : (1, 3Hp)    f32   b_ih with r/z hidden biases folded in
      e_bhn, d_bhn    : (1, Hp)     f32   n-gate hidden bias (kept on the step)
      bout            : (1, Vp)     f32   output projection bias
      d_whh_hbm       : (Hp, 3Hp)   bf16  decoder hidden weights  (ANY -> manual DMA)
      wout_hbm        : (Hp, Vp)    bf16  output projection weights (ANY -> manual DMA)
    Output:
      out             : (T_dec*Bp, Vp) f32 logits (time-major, padded)
    Scratch:
      gi_e (T_enc*Bp, 3Hp) f32, gi_d (T_dec*Bp, 3Hp) f32,
      d_whh_v (Hp, 3Hp) bf16, wout_v (Hp, Vp) bf16, sems DMA((2,))
    """

    def kernel(xe_ref, ye_ref,
               e_wih_ref, e_whh_ref, e_gib_ref, e_bhn_ref,
               d_wih_ref, d_gib_ref, d_bhn_ref, bout_ref,
               d_whh_hbm, wout_hbm,
               out_ref,
               gi_e_ref, gi_d_ref, d_whh_v, wout_v, sems):
        f32 = jnp.float32
        bf16 = jnp.bfloat16

        # ---- Start decoder-phase weight DMAs immediately; they hide under the
        #      hoisted gi matmuls and the 8 serial encoder steps.
        cp_whh = pltpu.make_async_copy(d_whh_hbm, d_whh_v, sems.at[0])
        cp_wout = pltpu.make_async_copy(wout_hbm, wout_v, sems.at[1])
        cp_whh.start()
        cp_wout.start()

        # ---- Hoisted input projections: one batched MXU matmul per GRU instead
        #      of T tiny ones on the serial critical path; b_ih and the r/z
        #      hidden biases are pre-folded into *_gib.
        gi_e_ref[...] = (
            jnp.dot(xe_ref[...], e_wih_ref[...], preferred_element_type=f32)
            + e_gib_ref[...])
        gi_d_ref[...] = (
            jnp.dot(ye_ref[...], d_wih_ref[...], preferred_element_type=f32)
            + d_gib_ref[...])

        # ---- n-gate hidden-bias broadcasts hoisted once (no CSE of broadcasts).
        e_bhn = jnp.broadcast_to(e_bhn_ref[...], (bp, hp))
        d_bhn = jnp.broadcast_to(d_bhn_ref[...], (bp, hp))

        def gru_step(gi_ref, whh_ref, bhn, t, h):
            # Static, sublane-aligned slice of the precomputed input projection.
            gi = gi_ref[pl.ds(t * bp, bp), :]                        # (Bp, 3Hp)
            h_bf = h.astype(bf16)
            # Gate column order is [r | n | z] (stride Hp, 128-lane aligned).
            # Split the hidden matmul so the r/n columns (critical path) are
            # produced first and the z sigmoid overlaps the tanh.
            gh_rn = jnp.dot(h_bf, whh_ref[:, 0:2 * hp],
                            preferred_element_type=f32)              # (Bp, 2Hp)
            gh_z = jnp.dot(h_bf, whh_ref[:, 2 * hp:3 * hp],
                           preferred_element_type=f32)               # (Bp, Hp)
            r = jax.nn.sigmoid(gi[:, 0:hp] + gh_rn[:, 0:hp])
            n = jnp.tanh(gi[:, hp:2 * hp] + r * (gh_rn[:, hp:2 * hp] + bhn))
            z = jax.nn.sigmoid(gi[:, 2 * hp:3 * hp] + gh_z)
            return (1.0 - z) * n + z * h

        # ---- Encoder recurrence (fully unrolled: T static & tiny).
        h = jnp.zeros((bp, hp), f32)
        for t in range(t_enc):
            h = gru_step(gi_e_ref, e_whh_ref, e_bhn, t, h)

        # ---- Decoder recurrence, initial hidden = encoder h1_n.  Wait for the
        #      decoder hidden-weights DMA only now (hidden under encoder phase).
        cp_whh.wait()
        hs_list = []
        for t in range(t_dec):
            h = gru_step(gi_d_ref, d_whh_v, d_bhn, t, h)
            hs_list.append(h)

        # ---- Output head: Dropout(0.2) is identity in eval mode, then Linear.
        cp_wout.wait()
        hs_all = jnp.concatenate(hs_list, axis=0).astype(bf16)       # (Td*Bp, Hp)
        out_ref[...] = (
            jnp.dot(hs_all, wout_v[...], preferred_element_type=f32)
            + bout_ref[...])

    return kernel


# ---------------------------------------------------------------------------
# One-time weight preprocessing (hoisted out of the per-call path)
# ---------------------------------------------------------------------------
def prepare_s2s_params(embed_mat,
                       e_w_ih, e_w_hh, e_b_ih, e_b_hh,
                       d_w_ih, d_w_hh, d_b_ih, d_b_hh,
                       out_w, out_b):
    """Pad / transpose / gate-reorder / cast all weights once.

    Gate column order becomes [r | n | z] with stride Hp (PyTorch stores
    [r | z | n]); the r/z hidden biases are folded into the hoisted
    input-projection bias, only the n-gate hidden bias stays per-step.
    All pads are zero so padded hidden lanes remain exactly 0 through the
    recurrence and real lanes are bit-identical to the unpadded math.
    """
    vocab, _ = embed_mat.shape
    hid = e_w_hh.shape[1]                          # 200
    hp = _round_up(hid, 128)                       # 256 (lane-aligned gates)
    vp = _round_up(vocab, 128)                     # 128 (lane-dense output)
    bf16 = jnp.bfloat16

    def pack_w(w, in_pad=None):
        # PyTorch GRU weight (3h, in_dim), row gates [r|z|n] -> transposed,
        # gate-padded (in_pad, 3hp) with gate column order [r|n|z].
        in_dim = w.shape[1]
        in_pad = in_dim if in_pad is None else in_pad
        out = jnp.zeros((in_pad, 3 * hp), jnp.float32)
        for out_g, pt_g in enumerate((0, 2, 1)):   # out [r,n,z] <- pt [r,z,n]
            out = out.at[:in_dim, out_g * hp:out_g * hp + hid].set(
                jnp.transpose(w[pt_g * hid:(pt_g + 1) * hid, :]))
        return out.astype(bf16)

    def fold_biases(b_ih, b_hh):
        gib = jnp.zeros((1, 3 * hp), jnp.float32)
        gib = gib.at[0, 0:hid].set(b_ih[0:hid] + b_hh[0:hid])                 # r
        gib = gib.at[0, hp:hp + hid].set(b_ih[2 * hid:3 * hid])               # n
        gib = gib.at[0, 2 * hp:2 * hp + hid].set(
            b_ih[hid:2 * hid] + b_hh[hid:2 * hid])                            # z
        bhn = (jnp.zeros((1, hp), jnp.float32)
               .at[0, :hid].set(b_hh[2 * hid:3 * hid]))
        return gib, bhn

    e_gib, e_bhn = fold_biases(e_b_ih, e_b_hh)
    d_gib, d_bhn = fold_biases(d_b_ih, d_b_hh)
    wout = (jnp.zeros((hp, vp), jnp.float32)
            .at[:hid, :vocab].set(jnp.transpose(out_w)).astype(bf16))
    bout = jnp.zeros((1, vp), jnp.float32).at[0, :vocab].set(out_b)

    return {
        "emb": embed_mat.astype(bf16),
        "e_wih": pack_w(e_w_ih), "e_whh": pack_w(e_w_hh, in_pad=hp),
        "e_gib": e_gib, "e_bhn": e_bhn,
        "d_wih": pack_w(d_w_ih), "d_whh": pack_w(d_w_hh, in_pad=hp),
        "d_gib": d_gib, "d_bhn": d_bhn,
        "wout": wout, "bout": bout,
    }


# ---------------------------------------------------------------------------
# Per-call forward (jit this; params come from prepare_s2s_params)
# ---------------------------------------------------------------------------
def s2s_forward(x_tokens, y_tokens, params):
    """Equivalent of S2S.forward(x, y): returns logits of shape (B, T_dec, vocab)."""
    emb = params["emb"]
    vocab, emb_dim = emb.shape
    hp = params["e_whh"].shape[0]
    vp = params["wout"].shape[1]
    batch, t_enc = x_tokens.shape
    _, t_dec = y_tokens.shape
    bp = _round_up(batch, 8)                       # full sublanes

    def embed_time_major(tokens):
        # Gather directly in time-major order (embedding already bf16).
        e = jnp.take(emb, tokens.T, axis=0)                     # (T, B, E)
        e = jnp.pad(e, ((0, 0), (0, bp - batch), (0, 0)))       # (T, Bp, E)
        return e.reshape(tokens.shape[1] * bp, emb_dim)

    xe = embed_time_major(x_tokens)
    ye = embed_time_major(y_tokens)

    kernel = _make_s2s_kernel(t_enc, t_dec, bp, hp)
    vmem = pltpu.MemorySpace.VMEM
    out = pl.pallas_call(
        kernel,
        out_shape=jax.ShapeDtypeStruct((t_dec * bp, vp), jnp.float32),
        # Single invocation (no grid): this is a latency-bound serial
        # recurrence; everything lives in VMEM except the decoder-side weights,
        # which are DMA'd manually so the copy overlaps the encoder phase.
        in_specs=([pl.BlockSpec(memory_space=vmem)] * 10
                  + [pl.BlockSpec(memory_space=pl.ANY)] * 2),
        out_specs=pl.BlockSpec(memory_space=vmem),
        scratch_shapes=[
            pltpu.VMEM((t_enc * bp, 3 * hp), jnp.float32),   # encoder gi (hoisted)
            pltpu.VMEM((t_dec * bp, 3 * hp), jnp.float32),   # decoder gi (hoisted)
            pltpu.VMEM((hp, 3 * hp), jnp.bfloat16),          # d_whh DMA landing buf
            pltpu.VMEM((hp, vp), jnp.bfloat16),              # wout DMA landing buf
            pltpu.SemaphoreType.DMA((2,)),
        ],
    )(xe, ye,
      params["e_wih"], params["e_whh"], params["e_gib"], params["e_bhn"],
      params["d_wih"], params["d_gib"], params["d_bhn"], params["bout"],
      params["d_whh"], params["wout"])

    logits = out.reshape(t_dec, bp, vp)[:, :batch, :vocab]
    return jnp.transpose(logits, (1, 0, 2))                  # (B, T_dec, vocab)


# ---------------------------------------------------------------------------
# Pure-JAX f32 reference of the PyTorch semantics (for the sanity check below).
# ---------------------------------------------------------------------------
def _gru_ref(emb, h0, w_ih, w_hh, b_ih, b_hh):
    B, T, _ = emb.shape
    H = w_hh.shape[1]
    h = h0
    hs = []
    for t in range(T):
        x_t = emb[:, t, :]
        gi = x_t @ w_ih.T + b_ih
        gh = h @ w_hh.T + b_hh
        r = jax.nn.sigmoid(gi[:, 0:H] + gh[:, 0:H])
        z = jax.nn.sigmoid(gi[:, H:2 * H] + gh[:, H:2 * H])
        n = jnp.tanh(gi[:, 2 * H:3 * H] + r * gh[:, 2 * H:3 * H])
        h = (1.0 - z) * n + z * h
        hs.append(h)
    return jnp.stack(hs, axis=1), h


def _s2s_reference(x, y, embed_mat, e_w_ih, e_w_hh, e_b_ih, e_b_hh,
                   d_w_ih, d_w_hh, d_b_ih, d_b_hh, out_w, out_b):
    B = x.shape[0]
    H = e_w_hh.shape[1]
    emb_x = jnp.take(embed_mat, x, axis=0)                      # (B, T_enc, E)
    _, h1_n = _gru_ref(emb_x, jnp.zeros((B, H), jnp.float32),
                       e_w_ih, e_w_hh, e_b_ih, e_b_hh)
    emb_y = jnp.take(embed_mat, y, axis=0)                      # (B, T_dec, E)
    h2, _ = _gru_ref(emb_y, h1_n, d_w_ih, d_w_hh, d_b_ih, d_b_hh)
    return h2 @ out_w.T + out_b                                 # dropout = identity


if __name__ == "__main__":
    vocab, E, H = 50, 32, 200          # hidden=200 fixed by the module
    B, T_enc, T_dec = 2, 8, 6

    key = jax.random.PRNGKey(0)
    ks = jax.random.split(key, 12)
    bound = 1.0 / math.sqrt(H)

    embed_mat = jax.random.normal(ks[0], (vocab, E), jnp.float32)
    e_w_ih = jax.random.uniform(ks[1], (3 * H, E), jnp.float32, -bound, bound)
    e_w_hh = jax.random.uniform(ks[2], (3 * H, H), jnp.float32, -bound, bound)
    e_b_ih = jax.random.uniform(ks[3], (3 * H,), jnp.float32, -bound, bound)
    e_b_hh = jax.random.uniform(ks[4], (3 * H,), jnp.float32, -bound, bound)
    d_w_ih = jax.random.uniform(ks[5], (3 * H, E), jnp.float32, -bound, bound)
    d_w_hh = jax.random.uniform(ks[6], (3 * H, H), jnp.float32, -bound, bound)
    d_b_ih = jax.random.uniform(ks[7], (3 * H,), jnp.float32, -bound, bound)
    d_b_hh = jax.random.uniform(ks[8], (3 * H,), jnp.float32, -bound, bound)
    out_w = jax.random.uniform(ks[9], (vocab, H), jnp.float32, -bound, bound)
    out_b = jax.random.uniform(ks[10], (vocab,), jnp.float32, -bound, bound)
    x_tok = jax.random.randint(ks[11], (B, T_enc), 0, vocab, jnp.int32)
    y_tok = jax.random.randint(jax.random.fold_in(key, 99), (B, T_dec), 0,
                               vocab, jnp.int32)

    # One-time weight preprocessing (outside the per-call jit path).
    params = jax.tree_util.tree_map(
        jax.block_until_ready,
        prepare_s2s_params(embed_mat,
                           e_w_ih, e_w_hh, e_b_ih, e_b_hh,
                           d_w_ih, d_w_hh, d_b_ih, d_b_hh,
                           out_w, out_b))

    fwd = jax.jit(s2s_forward)
    out = fwd(x_tok, y_tok, params)
    jax.block_until_ready(out)

    ref = _s2s_reference(x_tok, y_tok, embed_mat,
                         e_w_ih, e_w_hh, e_b_ih, e_b_hh,
                         d_w_ih, d_w_hh, d_b_ih, d_b_hh,
                         out_w, out_b)

    assert out.shape == (B, T_dec, vocab), out.shape
    max_err = float(jnp.max(jnp.abs(out - ref)))
    # bf16 matmul operands with f32 accumulation -> small deviation vs f32 ref.
    assert max_err < 2e-2, f"mismatch vs reference: max abs err {max_err}"

    print("KERNEL_OK")
</pallas_src>

<mosaic_0001>
module attributes {stable_mosaic.version = 11 : i64} {
  func.func @kernel(%arg0: memref<64x32xbf16, #tpu.memory_space<vmem>>, %arg1: memref<48x32xbf16, #tpu.memory_space<vmem>>, %arg2: memref<32x768xbf16, #tpu.memory_space<vmem>>, %arg3: memref<256x768xbf16, #tpu.memory_space<vmem>>, %arg4: memref<1x768xf32, #tpu.memory_space<vmem>>, %arg5: memref<1x256xf32, #tpu.memory_space<vmem>>, %arg6: memref<32x768xbf16, #tpu.memory_space<vmem>>, %arg7: memref<1x768xf32, #tpu.memory_space<vmem>>, %arg8: memref<1x256xf32, #tpu.memory_space<vmem>>, %arg9: memref<1x128xf32, #tpu.memory_space<vmem>>, %arg10: memref<256x768xbf16, #tpu.memory_space<any>>, %arg11: memref<256x128xbf16, #tpu.memory_space<any>>, %arg12: memref<48x128xf32, #tpu.memory_space<vmem>>, %arg13: memref<64x768xf32, #tpu.memory_space<vmem>>, %arg14: memref<48x768xf32, #tpu.memory_space<vmem>>, %arg15: memref<256x768xbf16, #tpu.memory_space<vmem>>, %arg16: memref<256x128xbf16, #tpu.memory_space<vmem>>, %arg17: memref<2x!tpu.dma_semaphore, #tpu.memory_space<semaphore_mem>>) attributes {dimension_semantics = [], scalar_prefetch = 0 : i64, scratch_operands = 5 : i64, tpu.core_type = #tpu.core_type<tc>} {
    %c0_i32 = arith.constant 0 : i32
    %0 = tpu.memref_slice %arg17[%c0_i32] : memref<2x!tpu.dma_semaphore, #tpu.memory_space<semaphore_mem>> -> memref<1x!tpu.dma_semaphore, #tpu.memory_space<semaphore_mem>>
    %1 = tpu.memref_squeeze %0 : memref<1x!tpu.dma_semaphore, #tpu.memory_space<semaphore_mem>> -> memref<!tpu.dma_semaphore, #tpu.memory_space<semaphore_mem>>
    tpu.enqueue_dma source(%arg10 : memref<256x768xbf16, #tpu.memory_space<any>>) target(%arg15 : memref<256x768xbf16, #tpu.memory_space<vmem>>) target_semaphore(%1 : memref<!tpu.dma_semaphore, #tpu.memory_space<semaphore_mem>>)
    %c1_i32 = arith.constant 1 : i32
    %2 = tpu.memref_slice %arg17[%c1_i32] : memref<2x!tpu.dma_semaphore, #tpu.memory_space<semaphore_mem>> -> memref<1x!tpu.dma_semaphore, #tpu.memory_space<semaphore_mem>>
    %3 = tpu.memref_squeeze %2 : memref<1x!tpu.dma_semaphore, #tpu.memory_space<semaphore_mem>> -> memref<!tpu.dma_semaphore, #tpu.memory_space<semaphore_mem>>
    tpu.enqueue_dma source(%arg11 : memref<256x128xbf16, #tpu.memory_space<any>>) target(%arg16 : memref<256x128xbf16, #tpu.memory_space<vmem>>) target_semaphore(%3 : memref<!tpu.dma_semaphore, #tpu.memory_space<semaphore_mem>>)
    %c0 = arith.constant 0 : index
    %c0_0 = arith.constant 0 : index
    %4 = vector.load %arg0[%c0, %c0_0] : memref<64x32xbf16, #tpu.memory_space<vmem>>, vector<64x32xbf16>
    %c0_1 = arith.constant 0 : index
    %c0_2 = arith.constant 0 : index
    %5 = vector.load %arg2[%c0_1, %c0_2] : memref<32x768xbf16, #tpu.memory_space<vmem>>, vector<32x768xbf16>
    %cst = arith.constant dense<0.000000e+00> : vector<64x768xf32>
    %6 = tpu.matmul %4, %5, %cst {dimension_numbers = #tpu.dot_dimension_numbers<[1], [0], [0], [1], [0, 0, 1, 1], [], []>} : vector<64x32xbf16>, vector<32x768xbf16>, vector<64x768xf32> -> vector<64x768xf32>
    %c0_3 = arith.constant 0 : index
    %c0_4 = arith.constant 0 : index
    %7 = vector.load %arg4[%c0_3, %c0_4] : memref<1x768xf32, #tpu.memory_space<vmem>>, vector<1x768xf32>
    %8 = vector.broadcast %7 : vector<1x768xf32> to vector<64x768xf32>
    %9 = arith.addf %6, %8 : vector<64x768xf32>
    %c0_5 = arith.constant 0 : index
    %c0_6 = arith.constant 0 : index
    %10 = vector.load %arg13[%c0_5, %c0_6] : memref<64x768xf32, #tpu.memory_space<vmem>>, vector<64x768xf32>
    tpu.vector_store %arg13[%c0_5, %c0_6], %9 {strides = array<i32>} : memref<64x768xf32, #tpu.memory_space<vmem>>, vector<64x768xf32>,
    %c0_7 = arith.constant 0 : index
    %c0_8 = arith.constant 0 : index
    %11 = vector.load %arg1[%c0_7, %c0_8] : memref<48x32xbf16, #tpu.memory_space<vmem>>, vector<48x32xbf16>
    %c0_9 = arith.constant 0 : index
    %c0_10 = arith.constant 0 : index
    %12 = vector.load %arg6[%c0_9, %c0_10] : memref<32x768xbf16, #tpu.memory_space<vmem>>, vector<32x768xbf16>
    %cst_11 = arith.constant dense<0.000000e+00> : vector<48x768xf32>
    %13 = tpu.matmul %11, %12, %cst_11 {dimension_numbers = #tpu.dot_dimension_numbers<[1], [0], [0], [1], [0, 0, 1, 1], [], []>} : vector<48x32xbf16>, vector<32x768xbf16>, vector<48x768xf32> -> vector<48x768xf32>
    %c0_12 = arith.constant 0 : index
    %c0_13 = arith.constant 0 : index
    %14 = vector.load %arg7[%c0_12, %c0_13] : memref<1x768xf32, #tpu.memory_space<vmem>>, vector<1x768xf32>
    %15 = vector.broadcast %14 : vector<1x768xf32> to vector<48x768xf32>
    %16 = arith.addf %13, %15 : vector<48x768xf32>
    %c0_14 = arith.constant 0 : index
    %c0_15 = arith.constant 0 : index
    %17 = vector.load %arg14[%c0_14, %c0_15] : memref<48x768xf32, #tpu.memory_space<vmem>>, vector<48x768xf32>
    tpu.vector_store %arg14[%c0_14, %c0_15], %16 {strides = array<i32>} : memref<48x768xf32, #tpu.memory_space<vmem>>, vector<48x768xf32>,
    %c0_16 = arith.constant 0 : index
    %c0_17 = arith.constant 0 : index
    %18 = vector.load %arg5[%c0_16, %c0_17] : memref<1x256xf32, #tpu.memory_space<vmem>>, vector<1x256xf32>
    %19 = vector.shape_cast %18 : vector<1x256xf32> to vector<1x256xf32>
    %20 = vector.broadcast %19 : vector<1x256xf32> to vector<8x256xf32>
    %c0_18 = arith.constant 0 : index
    %c0_19 = arith.constant 0 : index
    %21 = vector.load %arg8[%c0_18, %c0_19] : memref<1x256xf32, #tpu.memory_space<vmem>>, vector<1x256xf32>
    %22 = vector.shape_cast %21 : vector<1x256xf32> to vector<1x256xf32>
    %23 = vector.broadcast %22 : vector<1x256xf32> to vector<8x256xf32>
    %cst_20 = arith.constant 0.000000e+00 : f32
    %24 = vector.broadcast %cst_20 : f32 to vector<8x256xf32>
    %c0_21 = arith.constant 0 : index
    %c0_22 = arith.constant 0 : index
    %25 = vector.load %arg13[%c0_21, %c0_22] : memref<64x768xf32, #tpu.memory_space<vmem>>, vector<8x768xf32>
    %26 = arith.truncf %24 : vector<8x256xf32> to vector<8x256xbf16>
    %c0_23 = arith.constant 0 : index
    %c0_24 = arith.constant 0 : index
    %27 = vector.load %arg3[%c0_23, %c0_24] : memref<256x768xbf16, #tpu.memory_space<vmem>>, vector<256x512xbf16>
    %cst_25 = arith.constant dense<0.000000e+00> : vector<8x512xf32>
    %28 = tpu.matmul %26, %27, %cst_25 {dimension_numbers = #tpu.dot_dimension_numbers<[1], [0], [0], [1], [0, 0, 1, 1], [], []>} : vector<8x256xbf16>, vector<256x512xbf16>, vector<8x512xf32> -> vector<8x512xf32>
    %c0_26 = arith.constant 0 : index
    %c512 = arith.constant 512 : index
    %29 = vector.load %arg3[%c0_26, %c512] : memref<256x768xbf16, #tpu.memory_space<vmem>>, vector<256x256xbf16>
    %cst_27 = arith.constant dense<0.000000e+00> : vector<8x256xf32>
    %30 = tpu.matmul %26, %29, %cst_27 {dimension_numbers = #tpu.dot_dimension_numbers<[1], [0], [0], [1], [0, 0, 1, 1], [], []>} : vector<8x256xbf16>, vector<256x256xbf16>, vector<8x256xf32> -> vector<8x256xf32>
    %31 = vector.extract_strided_slice %25 {offsets = [0, 0], sizes = [8, 256], strides = [1, 1]} : vector<8x768xf32> to vector<8x256xf32>
    %32 = vector.extract_strided_slice %28 {offsets = [0, 0], sizes = [8, 256], strides = [1, 1]} : vector<8x512xf32> to vector<8x256xf32>
    %33 = arith.addf %31, %32 : vector<8x256xf32>
    %34 = arith.negf %33 : vector<8x256xf32>
    %35 = math.exp %34 : vector<8x256xf32>
    %cst_28 = arith.constant 1.000000e+00 : f32
    %36 = vector.broadcast %cst_28 : f32 to vector<8x256xf32>
    %37 = arith.addf %36, %35 : vector<8x256xf32>
    %38 = arith.divf %36, %37 : vector<8x256xf32>
    %39 = vector.extract_strided_slice %25 {offsets = [0, 256], sizes = [8, 256], strides = [1, 1]} : vector<8x768xf32> to vector<8x256xf32>
    %40 = vector.extract_strided_slice %28 {offsets = [0, 256], sizes = [8, 256], strides = [1, 1]} : vector<8x512xf32> to vector<8x256xf32>
    %41 = arith.addf %40, %20 : vector<8x256xf32>
    %42 = arith.mulf %38, %41 : vector<8x256xf32>
    %43 = arith.addf %39, %42 : vector<8x256xf32>
    %44 = math.tanh %43 : vector<8x256xf32>
    %45 = vector.extract_strided_slice %25 {offsets = [0, 512], sizes = [8, 256], strides = [1, 1]} : vector<8x768xf32> to vector<8x256xf32>
    %46 = arith.addf %45, %30 : vector<8x256xf32>
    %47 = arith.negf %46 : vector<8x256xf32>
    %48 = math.exp %47 : vector<8x256xf32>
    %cst_29 = arith.constant 1.000000e+00 : f32
    %49 = vector.broadcast %cst_29 : f32 to vector<8x256xf32>
    %50 = arith.addf %49, %48 : vector<8x256xf32>
    %51 = arith.divf %49, %50 : vector<8x256xf32>
    %cst_30 = arith.constant 1.000000e+00 : f32
    %52 = vector.broadcast %cst_30 : f32 to vector<8x256xf32>
    %53 = arith.subf %52, %51 : vector<8x256xf32>
    %54 = arith.mulf %53, %44 : vector<8x256xf32>
    %55 = arith.mulf %51, %24 : vector<8x256xf32>
    %56 = arith.addf %54, %55 : vector<8x256xf32>
    %c8 = arith.constant 8 : index
    %c0_31 = arith.constant 0 : index
    %57 = vector.load %arg13[%c8, %c0_31] : memref<64x768xf32, #tpu.memory_space<vmem>>, vector<8x768xf32>
    %58 = arith.truncf %56 : vector<8x256xf32> to vector<8x256xbf16>
    %c0_32 = arith.constant 0 : index
    %c0_33 = arith.constant 0 : index
    %59 = vector.load %arg3[%c0_32, %c0_33] : memref<256x768xbf16, #tpu.memory_space<vmem>>, vector<256x512xbf16>
    %cst_34 = arith.constant dense<0.000000e+00> : vector<8x512xf32>
    %60 = tpu.matmul %58, %59, %cst_34 {dimension_numbers = #tpu.dot_dimension_numbers<[1], [0], [0], [1], [0, 0, 1, 1], [], []>} : vector<8x256xbf16>, vector<256x512xbf16>, vector<8x512xf32> -> vector<8x512xf32>
    %c0_35 = arith.constant 0 : index
    %c512_36 = arith.constant 512 : index
    %61 = vector.load %arg3[%c0_35, %c512_36] : memref<256x768xbf16, #tpu.memory_space<vmem>>, vector<256x256xbf16>
    %cst_37 = arith.constant dense<0.000000e+00> : vector<8x256xf32>
    %62 = tpu.matmul %58, %61, %cst_37 {dimension_numbers = #tpu.dot_dimension_numbers<[1], [0], [0], [1], [0, 0, 1, 1], [], []>} : vector<8x256xbf16>, vector<256x256xbf16>, vector<8x256xf32> -> vector<8x256xf32>
    %63 = vector.extract_strided_slice %57 {offsets = [0, 0], sizes = [8, 256], strides = [1, 1]} : vector<8x768xf32> to vector<8x256xf32>
    %64 = vector.extract_strided_slice %60 {offsets = [0, 0], sizes = [8, 256], strides = [1, 1]} : vector<8x512xf32> to vector<8x256xf32>
    %65 = arith.addf %63, %64 : vector<8x256xf32>
    %66 = arith.negf %65 : vector<8x256xf32>
    %67 = math.exp %66 : vector<8x256xf32>
    %cst_38 = arith.constant 1.000000e+00 : f32
    %68 = vector.broadcast %cst_38 : f32 to vector<8x256xf32>
    %69 = arith.addf %68, %67 : vector<8x256xf32>
    %70 = arith.divf %68, %69 : vector<8x256xf32>
    %71 = vector.extract_strided_slice %57 {offsets = [0, 256], sizes = [8, 256], strides = [1, 1]} : vector<8x768xf32> to vector<8x256xf32>
    %72 = vector.extract_strided_slice %60 {offsets = [0, 256], sizes = [8, 256], strides = [1, 1]} : vector<8x512xf32> to vector<8x256xf32>
    %73 = arith.addf %72, %20 : vector<8x256xf32>
    %74 = arith.mulf %70, %73 : vector<8x256xf32>
    %75 = arith.addf %71, %74 : vector<8x256xf32>
    %76 = math.tanh %75 : vector<8x256xf32>
    %77 = vector.extract_strided_slice %57 {offsets = [0, 512], sizes = [8, 256], strides = [1, 1]} : vector<8x768xf32> to vector<8x256xf32>
    %78 = arith.addf %77, %62 : vector<8x256xf32>
    %79 = arith.negf %78 : vector<8x256xf32>
    %80 = math.exp %79 : vector<8x256xf32>
    %cst_39 = arith.constant 1.000000e+00 : f32
    %81 = vector.broadcast %cst_39 : f32 to vector<8x256xf32>
    %82 = arith.addf %81, %80 : vector<8x256xf32>
    %83 = arith.divf %81, %82 : vector<8x256xf32>
    %cst_40 = arith.constant 1.000000e+00 : f32
    %84 = vector.broadcast %cst_40 : f32 to vector<8x256xf32>
    %85 = arith.subf %84, %83 : vector<8x256xf32>
    %86 = arith.mulf %85, %76 : vector<8x256xf32>
    %87 = arith.mulf %83, %56 : vector<8x256xf32>
    %88 = arith.addf %86, %87 : vector<8x256xf32>
    %c16 = arith.constant 16 : index
    %c0_41 = arith.constant 0 : index
    %89 = vector.load %arg13[%c16, %c0_41] : memref<64x768xf32, #tpu.memory_space<vmem>>, vector<8x768xf32>
    %90 = arith.truncf %88 : vector<8x256xf32> to vector<8x256xbf16>
    %c0_42 = arith.constant 0 : index
    %c0_43 = arith.constant 0 : index
    %91 = vector.load %arg3[%c0_42, %c0_43] : memref<256x768xbf16, #tpu.memory_space<vmem>>, vector<256x512xbf16>
    %cst_44 = arith.constant dense<0.000000e+00> : vector<8x512xf32>
    %92 = tpu.matmul %90, %91, %cst_44 {dimension_numbers = #tpu.dot_dimension_numbers<[1], [0], [0], [1], [0, 0, 1, 1], [], []>} : vector<8x256xbf16>, vector<256x512xbf16>, vector<8x512xf32> -> vector<8x512xf32>
    %c0_45 = arith.constant 0 : index
    %c512_46 = arith.constant 512 : index
    %93 = vector.load %arg3[%c0_45, %c512_46] : memref<256x768xbf16, #tpu.memory_space<vmem>>, vector<256x256xbf16>
    %cst_47 = arith.constant dense<0.000000e+00> : vector<8x256xf32>
    %94 = tpu.matmul %90, %93, %cst_47 {dimension_numbers = #tpu.dot_dimension_numbers<[1], [0], [0], [1], [0, 0, 1, 1], [], []>} : vector<8x256xbf16>, vector<256x256xbf16>, vector<8x256xf32> -> vector<8x256xf32>
    %95 = vector.extract_strided_slice %89 {offsets = [0, 0], sizes = [8, 256], strides = [1, 1]} : vector<8x768xf32> to vector<8x256xf32>
    %96 = vector.extract_strided_slice %92 {offsets = [0, 0], sizes = [8, 256], strides = [1, 1]} : vector<8x512xf32> to vector<8x256xf32>
    %97 = arith.addf %95, %96 : vector<8x256xf32>
    %98 = arith.negf %97 : vector<8x256xf32>
    %99 = math.exp %98 : vector<8x256xf32>
    %cst_48 = arith.constant 1.000000e+00 : f32
    %100 = vector.broadcast %cst_48 : f32 to vector<8x256xf32>
    %101 = arith.addf %100, %99 : vector<8x256xf32>
    %102 = arith.divf %100, %101 : vector<8x256xf32>
    %103 = vector.extract_strided_slice %89 {offsets = [0, 256], sizes = [8, 256], strides = [1, 1]} : vector<8x768xf32> to vector<8x256xf32>
    %104 = vector.extract_strided_slice %92 {offsets = [0, 256], sizes = [8, 256], strides = [1, 1]} : vector<8x512xf32> to vector<8x256xf32>
    %105 = arith.addf %104, %20 : vector<8x256xf32>
    %106 = arith.mulf %102, %105 : vector<8x256xf32>
    %107 = arith.addf %103, %106 : vector<8x256xf32>
    %108 = math.tanh %107 : vector<8x256xf32>
    %109 = vector.extract_strided_slice %89 {offsets = [0, 512], sizes = [8, 256], strides = [1, 1]} : vector<8x768xf32> to vector<8x256xf32>
    %110 = arith.addf %109, %94 : vector<8x256xf32>
    %111 = arith.negf %110 : vector<8x256xf32>
    %112 = math.exp %111 : vector<8x256xf32>
    %cst_49 = arith.constant 1.000000e+00 : f32
    %113 = vector.broadcast %cst_49 : f32 to vector<8x256xf32>
    %114 = arith.addf %113, %112 : vector<8x256xf32>
    %115 = arith.divf %113, %114 : vector<8x256xf32>
    %cst_50 = arith.constant 1.000000e+00 : f32
    %116 = vector.broadcast %cst_50 : f32 to vector<8x256xf32>
    %117 = arith.subf %116, %115 : vector<8x256xf32>
    %118 = arith.mulf %117, %108 : vector<8x256xf32>
    %119 = arith.mulf %115, %88 : vector<8x256xf32>
    %120 = arith.addf %118, %119 : vector<8x256xf32>
    %c24 = arith.constant 24 : index
    %c0_51 = arith.constant 0 : index
    %121 = vector.load %arg13[%c24, %c0_51] : memref<64x768xf32, #tpu.memory_space<vmem>>, vector<8x768xf32>
    %122 = arith.truncf %120 : vector<8x256xf32> to vector<8x256xbf16>
    %c0_52 = arith.constant 0 : index
    %c0_53 = arith.constant 0 : index
    %123 = vector.load %arg3[%c0_52, %c0_53] : memref<256x768xbf16, #tpu.memory_space<vmem>>, vector<256x512xbf16>
    %cst_54 = arith.constant dense<0.000000e+00> : vector<8x512xf32>
    %124 = tpu.matmul %122, %123, %cst_54 {dimension_numbers = #tpu.dot_dimension_numbers<[1], [0], [0], [1], [0, 0, 1, 1], [], []>} : vector<8x256xbf16>, vector<256x512xbf16>, vector<8x512xf32> -> vector<8x512xf32>
    %c0_55 = arith.constant 0 : index
    %c512_56 = arith.constant 512 : index
    %125 = vector.load %arg3[%c0_55, %c512_56] : memref<256x768xbf16, #tpu.memory_space<vmem>>, vector<256x256xbf16>
    %cst_57 = arith.constant dense<0.000000e+00> : vector<8x256xf32>
    %126 = tpu.matmul %122, %125, %cst_57 {dimension_numbers = #tpu.dot_dimension_numbers<[1], [0], [0], [1], [0, 0, 1, 1], [], []>} : vector<8x256xbf16>, vector<256x256xbf16>, vector<8x256xf32> -> vector<8x256xf32>
    %127 = vector.extract_strided_slice %121 {offsets = [0, 0], sizes = [8, 256], strides = [1, 1]} : vector<8x768xf32> to vector<8x256xf32>
    %128 = vector.extract_strided_slice %124 {offsets = [0, 0], sizes = [8, 256], strides = [1, 1]} : vector<8x512xf32> to vector<8x256xf32>
    %129 = arith.addf %127, %128 : vector<8x256xf32>
    %130 = arith.negf %129 : vector<8x256xf32>
    %131 = math.exp %130 : vector<8x256xf32>
    %cst_58 = arith.constant 1.000000e+00 : f32
    %132 = vector.broadcast %cst_58 : f32 to vector<8x256xf32>
    %133 = arith.addf %132, %131 : vector<8x256xf32>
    %134 = arith.divf %132, %133 : vector<8x256xf32>
    %135 = vector.extract_strided_slice %121 {offsets = [0, 256], sizes = [8, 256], strides = [1, 1]} : vector<8x768xf32> to vector<8x256xf32>
    %136 = vector.extract_strided_slice %124 {offsets = [0, 256], sizes = [8, 256], strides = [1, 1]} : vector<8x512xf32> to vector<8x256xf32>
    %137 = arith.addf %136, %20 : vector<8x256xf32>
    %138 = arith.mulf %134, %137 : vector<8x256xf32>
    %139 = arith.addf %135, %138 : vector<8x256xf32>
    %140 = math.tanh %139 : vector<8x256xf32>
    %141 = vector.extract_strided_slice %121 {offsets = [0, 512], sizes = [8, 256], strides = [1, 1]} : vector<8x768xf32> to vector<8x256xf32>
    %142 = arith.addf %141, %126 : vector<8x256xf32>
    %143 = arith.negf %142 : vector<8x256xf32>
    %144 = math.exp %143 : vector<8x256xf32>
    %cst_59 = arith.constant 1.000000e+00 : f32
    %145 = vector.broadcast %cst_59 : f32 to vector<8x256xf32>
    %146 = arith.addf %145, %144 : vector<8x256xf32>
    %147 = arith.divf %145, %146 : vector<8x256xf32>
    %cst_60 = arith.constant 1.000000e+00 : f32
    %148 = vector.broadcast %cst_60 : f32 to vector<8x256xf32>
    %149 = arith.subf %148, %147 : vector<8x256xf32>
    %150 = arith.mulf %149, %140 : vector<8x256xf32>
    %151 = arith.mulf %147, %120 : vector<8x256xf32>
    %152 = arith.addf %150, %151 : vector<8x256xf32>
    %c32 = arith.constant 32 : index
    %c0_61 = arith.constant 0 : index
    %153 = vector.load %arg13[%c32, %c0_61] : memref<64x768xf32, #tpu.memory_space<vmem>>, vector<8x768xf32>
    %154 = arith.truncf %152 : vector<8x256xf32> to vector<8x256xbf16>
    %c0_62 = arith.constant 0 : index
    %c0_63 = arith.constant 0 : index
    %155 = vector.load %arg3[%c0_62, %c0_63] : memref<256x768xbf16, #tpu.memory_space<vmem>>, vector<256x512xbf16>
    %cst_64 = arith.constant dense<0.000000e+00> : vector<8x512xf32>
    %156 = tpu.matmul %154, %155, %cst_64 {dimension_numbers = #tpu.dot_dimension_numbers<[1], [0], [0], [1], [0, 0, 1, 1], [], []>} : vector<8x256xbf16>, vector<256x512xbf16>, vector<8x512xf32> -> vector<8x512xf32>
    %c0_65 = arith.constant 0 : index
    %c512_66 = arith.constant 512 : index
    %157 = vector.load %arg3[%c0_65, %c512_66] : memref<256x768xbf16, #tpu.memory_space<vmem>>, vector<256x256xbf16>
    %cst_67 = arith.constant dense<0.000000e+00> : vector<8x256xf32>
    %158 = tpu.matmul %154, %157, %cst_67 {dimension_numbers = #tpu.dot_dimension_numbers<[1], [0], [0], [1], [0, 0, 1, 1], [], []>} : vector<8x256xbf16>, vector<256x256xbf16>, vector<8x256xf32> -> vector<8x256xf32>
    %159 = vector.extract_strided_slice %153 {offsets = [0, 0], sizes = [8, 256], strides = [1, 1]} : vector<8x768xf32> to vector<8x256xf32>
    %160 = vector.extract_strided_slice %156 {offsets = [0, 0], sizes = [8, 256], strides = [1, 1]} : vector<8x512xf32> to vector<8x256xf32>
    %161 = arith.addf %159, %160 : vector<8x256xf32>
    %162 = arith.negf %161 : vector<8x256xf32>
    %163 = math.exp %162 : vector<8x256xf32>
    %cst_68 = arith.constant 1.000000e+00 : f32
    %164 = vector.broadcast %cst_68 : f32 to vector<8x256xf32>
    %165 = arith.addf %164, %163 : vector<8x256xf32>
    %166 = arith.divf %164, %165 : vector<8x256xf32>
    %167 = vector.extract_strided_slice %153 {offsets = [0, 256], sizes = [8, 256], strides = [1, 1]} : vector<8x768xf32> to vector<8x256xf32>
    %168 = vector.extract_strided_slice %156 {offsets = [0, 256], sizes = [8, 256], strides = [1, 1]} : vector<8x512xf32> to vector<8x256xf32>
    %169 = arith.addf %168, %20 : vector<8x256xf32>
    %170 = arith.mulf %166, %169 : vector<8x256xf32>
    %171 = arith.addf %167, %170 : vector<8x256xf32>
    %172 = math.tanh %171 : vector<8x256xf32>
    %173 = vector.extract_strided_slice %153 {offsets = [0, 512], sizes = [8, 256], strides = [1, 1]} : vector<8x768xf32> to vector<8x256xf32>
    %174 = arith.addf %173, %158 : vector<8x256xf32>
    %175 = arith.negf %174 : vector<8x256xf32>
    %176 = math.exp %175 : vector<8x256xf32>
    %cst_69 = arith.constant 1.000000e+00 : f32
    %177 = vector.broadcast %cst_69 : f32 to vector<8x256xf32>
    %178 = arith.addf %177, %176 : vector<8x256xf32>
    %179 = arith.divf %177, %178 : vector<8x256xf32>
    %cst_70 = arith.constant 1.000000e+00 : f32
    %180 = vector.broadcast %cst_70 : f32 to vector<8x256xf32>
    %181 = arith.subf %180, %179 : vector<8x256xf32>
    %182 = arith.mulf %181, %172 : vector<8x256xf32>
    %183 = arith.mulf %179, %152 : vector<8x256xf32>
    %184 = arith.addf %182, %183 : vector<8x256xf32>
    %c40 = arith.constant 40 : index
    %c0_71 = arith.constant 0 : index
    %185 = vector.load %arg13[%c40, %c0_71] : memref<64x768xf32, #tpu.memory_space<vmem>>, vector<8x768xf32>
    %186 = arith.truncf %184 : vector<8x256xf32> to vector<8x256xbf16>
    %c0_72 = arith.constant 0 : index
    %c0_73 = arith.constant 0 : index
    %187 = vector.load %arg3[%c0_72, %c0_73] : memref<256x768xbf16, #tpu.memory_space<vmem>>, vector<256x512xbf16>
    %cst_74 = arith.constant dense<0.000000e+00> : vector<8x512xf32>
    %188 = tpu.matmul %186, %187, %cst_74 {dimension_numbers = #tpu.dot_dimension_numbers<[1], [0], [0], [1], [0, 0, 1, 1], [], []>} : vector<8x256xbf16>, vector<256x512xbf16>, vector<8x512xf32> -> vector<8x512xf32>
    %c0_75 = arith.constant 0 : index
    %c512_76 = arith.constant 512 : index
    %189 = vector.load %arg3[%c0_75, %c512_76] : memref<256x768xbf16, #tpu.memory_space<vmem>>, vector<256x256xbf16>
    %cst_77 = arith.constant dense<0.000000e+00> : vector<8x256xf32>
    %190 = tpu.matmul %186, %189, %cst_77 {dimension_numbers = #tpu.dot_dimension_numbers<[1], [0], [0], [1], [0, 0, 1, 1], [], []>} : vector<8x256xbf16>, vector<256x256xbf16>, vector<8x256xf32> -> vector<8x256xf32>
    %191 = vector.extract_strided_slice %185 {offsets = [0, 0], sizes = [8, 256], strides = [1, 1]} : vector<8x768xf32> to vector<8x256xf32>
    %192 = vector.extract_strided_slice %188 {offsets = [0, 0], sizes = [8, 256], strides = [1, 1]} : vector<8x512xf32> to vector<8x256xf32>
    %193 = arith.addf %191, %192 : vector<8x256xf32>
    %194 = arith.negf %193 : vector<8x256xf32>
    %195 = math.exp %194 : vector<8x256xf32>
    %cst_78 = arith.constant 1.000000e+00 : f32
    %196 = vector.broadcast %cst_78 : f32 to vector<8x256xf32>
    %197 = arith.addf %196, %195 : vector<8x256xf32>
    %198 = arith.divf %196, %197 : vector<8x256xf32>
    %199 = vector.extract_strided_slice %185 {offsets = [0, 256], sizes = [8, 256], strides = [1, 1]} : vector<8x768xf32> to vector<8x256xf32>
    %200 = vector.extract_strided_slice %188 {offsets = [0, 256], sizes = [8, 256], strides = [1, 1]} : vector<8x512xf32> to vector<8x256xf32>
    %201 = arith.addf %200, %20 : vector<8x256xf32>
    %202 = arith.mulf %198, %201 : vector<8x256xf32>
    %203 = arith.addf %199, %202 : vector<8x256xf32>
    %204 = math.tanh %203 : vector<8x256xf32>
    %205 = vector.extract_strided_slice %185 {offsets = [0, 512], sizes = [8, 256], strides = [1, 1]} : vector<8x768xf32> to vector<8x256xf32>
    %206 = arith.addf %205, %190 : vector<8x256xf32>
    %207 = arith.negf %206 : vector<8x256xf32>
    %208 = math.exp %207 : vector<8x256xf32>
    %cst_79 = arith.constant 1.000000e+00 : f32
    %209 = vector.broadcast %cst_79 : f32 to vector<8x256xf32>
    %210 = arith.addf %209, %208 : vector<8x256xf32>
    %211 = arith.divf %209, %210 : vector<8x256xf32>
    %cst_80 = arith.constant 1.000000e+00 : f32
    %212 = vector.broadcast %cst_80 : f32 to vector<8x256xf32>
    %213 = arith.subf %212, %211 : vector<8x256xf32>
    %214 = arith.mulf %213, %204 : vector<8x256xf32>
    %215 = arith.mulf %211, %184 : vector<8x256xf32>
    %216 = arith.addf %214, %215 : vector<8x256xf32>
    %c48 = arith.constant 48 : index
    %c0_81 = arith.constant 0 : index
    %217 = vector.load %arg13[%c48, %c0_81] : memref<64x768xf32, #tpu.memory_space<vmem>>, vector<8x768xf32>
    %218 = arith.truncf %216 : vector<8x256xf32> to vector<8x256xbf16>
    %c0_82 = arith.constant 0 : index
    %c0_83 = arith.constant 0 : index
    %219 = vector.load %arg3[%c0_82, %c0_83] : memref<256x768xbf16, #tpu.memory_space<vmem>>, vector<256x512xbf16>
    %cst_84 = arith.constant dense<0.000000e+00> : vector<8x512xf32>
    %220 = tpu.matmul %218, %219, %cst_84 {dimension_numbers = #tpu.dot_dimension_numbers<[1], [0], [0], [1], [0, 0, 1, 1], [], []>} : vector<8x256xbf16>, vector<256x512xbf16>, vector<8x512xf32> -> vector<8x512xf32>
    %c0_85 = arith.constant 0 : index
    %c512_86 = arith.constant 512 : index
    %221 = vector.load %arg3[%c0_85, %c512_86] : memref<256x768xbf16, #tpu.memory_space<vmem>>, vector<256x256xbf16>
    %cst_87 = arith.constant dense<0.000000e+00> : vector<8x256xf32>
    %222 = tpu.matmul %218, %221, %cst_87 {dimension_numbers = #tpu.dot_dimension_numbers<[1], [0], [0], [1], [0, 0, 1, 1], [], []>} : vector<8x256xbf16>, vector<256x256xbf16>, vector<8x256xf32> -> vector<8x256xf32>
    %223 = vector.extract_strided_slice %217 {offsets = [0, 0], sizes = [8, 256], strides = [1, 1]} : vector<8x768xf32> to vector<8x256xf32>
    %224 = vector.extract_strided_slice %220 {offsets = [0, 0], sizes = [8, 256], strides = [1, 1]} : vector<8x512xf32> to vector<8x256xf32>
    %225 = arith.addf %223, %224 : vector<8x256xf32>
    %226 = arith.negf %225 : vector<8x256xf32>
    %227 = math.exp %226 : vector<8x256xf32>
    %cst_88 = arith.constant 1.000000e+00 : f32
    %228 = vector.broadcast %cst_88 : f32 to vector<8x256xf32>
    %229 = arith.addf %228, %227 : vector<8x256xf32>
    %230 = arith.divf %228, %229 : vector<8x256xf32>
    %231 = vector.extract_strided_slice %217 {offsets = [0, 256], sizes = [8, 256], strides = [1, 1]} : vector<8x768xf32> to vector<8x256xf32>
    %232 = vector.extract_strided_slice %220 {offsets = [0, 256], sizes = [8, 256], strides = [1, 1]} : vector<8x512xf32> to vector<8x256xf32>
    %233 = arith.addf %232, %20 : vector<8x256xf32>
    %234 = arith.mulf %230, %233 : vector<8x256xf32>
    %235 = arith.addf %231, %234 : vector<8x256xf32>
    %236 = math.tanh %235 : vector<8x256xf32>
    %237 = vector.extract_strided_slice %217 {offsets = [0, 512], sizes = [8, 256], strides = [1, 1]} : vector<8x768xf32> to vector<8x256xf32>
    %238 = arith.addf %237, %222 : vector<8x256xf32>
    %239 = arith.negf %238 : vector<8x256xf32>
    %240 = math.exp %239 : vector<8x256xf32>
    %cst_89 = arith.constant 1.000000e+00 : f32
    %241 = vector.broadcast %cst_89 : f32 to vector<8x256xf32>
    %242 = arith.addf %241, %240 : vector<8x256xf32>
    %243 = arith.divf %241, %242 : vector<8x256xf32>
    %cst_90 = arith.constant 1.000000e+00 : f32
    %244 = vector.broadcast %cst_90 : f32 to vector<8x256xf32>
    %245 = arith.subf %244, %243 : vector<8x256xf32>
    %246 = arith.mulf %245, %236 : vector<8x256xf32>
    %247 = arith.mulf %243, %216 : vector<8x256xf32>
    %248 = arith.addf %246, %247 : vector<8x256xf32>
    %c56 = arith.constant 56 : index
    %c0_91 = arith.constant 0 : index
    %249 = vector.load %arg13[%c56, %c0_91] : memref<64x768xf32, #tpu.memory_space<vmem>>, vector<8x768xf32>
    %250 = arith.truncf %248 : vector<8x256xf32> to vector<8x256xbf16>
    %c0_92 = arith.constant 0 : index
    %c0_93 = arith.constant 0 : index
    %251 = vector.load %arg3[%c0_92, %c0_93] : memref<256x768xbf16, #tpu.memory_space<vmem>>, vector<256x512xbf16>
    %cst_94 = arith.constant dense<0.000000e+00> : vector<8x512xf32>
    %252 = tpu.matmul %250, %251, %cst_94 {dimension_numbers = #tpu.dot_dimension_numbers<[1], [0], [0], [1], [0, 0, 1, 1], [], []>} : vector<8x256xbf16>, vector<256x512xbf16>, vector<8x512xf32> -> vector<8x512xf32>
    %c0_95 = arith.constant 0 : index
    %c512_96 = arith.constant 512 : index
    %253 = vector.load %arg3[%c0_95, %c512_96] : memref<256x768xbf16, #tpu.memory_space<vmem>>, vector<256x256xbf16>
    %cst_97 = arith.constant dense<0.000000e+00> : vector<8x256xf32>
    %254 = tpu.matmul %250, %253, %cst_97 {dimension_numbers = #tpu.dot_dimension_numbers<[1], [0], [0], [1], [0, 0, 1, 1], [], []>} : vector<8x256xbf16>, vector<256x256xbf16>, vector<8x256xf32> -> vector<8x256xf32>
    %255 = vector.extract_strided_slice %249 {offsets = [0, 0], sizes = [8, 256], strides = [1, 1]} : vector<8x768xf32> to vector<8x256xf32>
    %256 = vector.extract_strided_slice %252 {offsets = [0, 0], sizes = [8, 256], strides = [1, 1]} : vector<8x512xf32> to vector<8x256xf32>
    %257 = arith.addf %255, %256 : vector<8x256xf32>
    %258 = arith.negf %257 : vector<8x256xf32>
    %259 = math.exp %258 : vector<8x256xf32>
    %cst_98 = arith.constant 1.000000e+00 : f32
    %260 = vector.broadcast %cst_98 : f32 to vector<8x256xf32>
    %261 = arith.addf %260, %259 : vector<8x256xf32>
    %262 = arith.divf %260, %261 : vector<8x256xf32>
    %263 = vector.extract_strided_slice %249 {offsets = [0, 256], sizes = [8, 256], strides = [1, 1]} : vector<8x768xf32> to vector<8x256xf32>
    %264 = vector.extract_strided_slice %252 {offsets = [0, 256], sizes = [8, 256], strides = [1, 1]} : vector<8x512xf32> to vector<8x256xf32>
    %265 = arith.addf %264, %20 : vector<8x256xf32>
    %266 = arith.mulf %262, %265 : vector<8x256xf32>
    %267 = arith.addf %263, %266 : vector<8x256xf32>
    %268 = math.tanh %267 : vector<8x256xf32>
    %269 = vector.extract_strided_slice %249 {offsets = [0, 512], sizes = [8, 256], strides = [1, 1]} : vector<8x768xf32> to vector<8x256xf32>
    %270 = arith.addf %269, %254 : vector<8x256xf32>
    %271 = arith.negf %270 : vector<8x256xf32>
    %272 = math.exp %271 : vector<8x256xf32>
    %cst_99 = arith.constant 1.000000e+00 : f32
    %273 = vector.broadcast %cst_99 : f32 to vector<8x256xf32>
    %274 = arith.addf %273, %272 : vector<8x256xf32>
    %275 = arith.divf %273, %274 : vector<8x256xf32>
    %cst_100 = arith.constant 1.000000e+00 : f32
    %276 = vector.broadcast %cst_100 : f32 to vector<8x256xf32>
    %277 = arith.subf %276, %275 : vector<8x256xf32>
    %278 = arith.mulf %277, %268 : vector<8x256xf32>
    %279 = arith.mulf %275, %248 : vector<8x256xf32>
    %280 = arith.addf %278, %279 : vector<8x256xf32>
    %c0_i32_101 = arith.constant 0 : i32
    %281 = tpu.memref_slice %arg17[%c0_i32_101] : memref<2x!tpu.dma_semaphore, #tpu.memory_space<semaphore_mem>> -> memref<1x!tpu.dma_semaphore, #tpu.memory_space<semaphore_mem>>
    %282 = tpu.memref_squeeze %281 : memref<1x!tpu.dma_semaphore, #tpu.memory_space<semaphore_mem>> -> memref<!tpu.dma_semaphore, #tpu.memory_space<semaphore_mem>>
    tpu.wait_dma2 semaphore(%282 : memref<!tpu.dma_semaphore, #tpu.memory_space<semaphore_mem>>) src(%arg10 : memref<256x768xbf16, #tpu.memory_space<any>>) dst(%arg15 : memref<256x768xbf16, #tpu.memory_space<vmem>>)
    %c0_102 = arith.constant 0 : index
    %c0_103 = arith.constant 0 : index
    %283 = vector.load %arg14[%c0_102, %c0_103] : memref<48x768xf32, #tpu.memory_space<vmem>>, vector<8x768xf32>
    %284 = arith.truncf %280 : vector<8x256xf32> to vector<8x256xbf16>
    %c0_104 = arith.constant 0 : index
    %c0_105 = arith.constant 0 : index
    %285 = vector.load %arg15[%c0_104, %c0_105] : memref<256x768xbf16, #tpu.memory_space<vmem>>, vector<256x512xbf16>
    %cst_106 = arith.constant dense<0.000000e+00> : vector<8x512xf32>
    %286 = tpu.matmul %284, %285, %cst_106 {dimension_numbers = #tpu.dot_dimension_numbers<[1], [0], [0], [1], [0, 0, 1, 1], [], []>} : vector<8x256xbf16>, vector<256x512xbf16>, vector<8x512xf32> -> vector<8x512xf32>
    %c0_107 = arith.constant 0 : index
    %c512_108 = arith.constant 512 : index
    %287 = vector.load %arg15[%c0_107, %c512_108] : memref<256x768xbf16, #tpu.memory_space<vmem>>, vector<256x256xbf16>
    %cst_109 = arith.constant dense<0.000000e+00> : vector<8x256xf32>
    %288 = tpu.matmul %284, %287, %cst_109 {dimension_numbers = #tpu.dot_dimension_numbers<[1], [0], [0], [1], [0, 0, 1, 1], [], []>} : vector<8x256xbf16>, vector<256x256xbf16>, vector<8x256xf32> -> vector<8x256xf32>
    %289 = vector.extract_strided_slice %283 {offsets = [0, 0], sizes = [8, 256], strides = [1, 1]} : vector<8x768xf32> to vector<8x256xf32>
    %290 = vector.extract_strided_slice %286 {offsets = [0, 0], sizes = [8, 256], strides = [1, 1]} : vector<8x512xf32> to vector<8x256xf32>
    %291 = arith.addf %289, %290 : vector<8x256xf32>
    %292 = arith.negf %291 : vector<8x256xf32>
    %293 = math.exp %292 : vector<8x256xf32>
    %cst_110 = arith.constant 1.000000e+00 : f32
    %294 = vector.broadcast %cst_110 : f32 to vector<8x256xf32>
    %295 = arith.addf %294, %293 : vector<8x256xf32>
    %296 = arith.divf %294, %295 : vector<8x256xf32>
    %297 = vector.extract_strided_slice %283 {offsets = [0, 256], sizes = [8, 256], strides = [1, 1]} : vector<8x768xf32> to vector<8x256xf32>
    %298 = vector.extract_strided_slice %286 {offsets = [0, 256], sizes = [8, 256], strides = [1, 1]} : vector<8x512xf32> to vector<8x256xf32>
    %299 = arith.addf %298, %23 : vector<8x256xf32>
    %300 = arith.mulf %296, %299 : vector<8x256xf32>
    %301 = arith.addf %297, %300 : vector<8x256xf32>
    %302 = math.tanh %301 : vector<8x256xf32>
    %303 = vector.extract_strided_slice %283 {offsets = [0, 512], sizes = [8, 256], strides = [1, 1]} : vector<8x768xf32> to vector<8x256xf32>
    %304 = arith.addf %303, %288 : vector<8x256xf32>
    %305 = arith.negf %304 : vector<8x256xf32>
    %306 = math.exp %305 : vector<8x256xf32>
    %cst_111 = arith.constant 1.000000e+00 : f32
    %307 = vector.broadcast %cst_111 : f32 to vector<8x256xf32>
    %308 = arith.addf %307, %306 : vector<8x256xf32>
    %309 = arith.divf %307, %308 : vector<8x256xf32>
    %cst_112 = arith.constant 1.000000e+00 : f32
    %310 = vector.broadcast %cst_112 : f32 to vector<8x256xf32>
    %311 = arith.subf %310, %309 : vector<8x256xf32>
    %312 = arith.mulf %311, %302 : vector<8x256xf32>
    %313 = arith.mulf %309, %280 : vector<8x256xf32>
    %314 = arith.addf %312, %313 : vector<8x256xf32>
    %c8_113 = arith.constant 8 : index
    %c0_114 = arith.constant 0 : index
    %315 = vector.load %arg14[%c8_113, %c0_114] : memref<48x768xf32, #tpu.memory_space<vmem>>, vector<8x768xf32>
    %316 = arith.truncf %314 : vector<8x256xf32> to vector<8x256xbf16>
    %c0_115 = arith.constant 0 : index
    %c0_116 = arith.constant 0 : index
    %317 = vector.load %arg15[%c0_115, %c0_116] : memref<256x768xbf16, #tpu.memory_space<vmem>>, vector<256x512xbf16>
    %cst_117 = arith.constant dense<0.000000e+00> : vector<8x512xf32>
    %318 = tpu.matmul %316, %317, %cst_117 {dimension_numbers = #tpu.dot_dimension_numbers<[1], [0], [0], [1], [0, 0, 1, 1], [], []>} : vector<8x256xbf16>, vector<256x512xbf16>, vector<8x512xf32> -> vector<8x512xf32>
    %c0_118 = arith.constant 0 : index
    %c512_119 = arith.constant 512 : index
    %319 = vector.load %arg15[%c0_118, %c512_119] : memref<256x768xbf16, #tpu.memory_space<vmem>>, vector<256x256xbf16>
    %cst_120 = arith.constant dense<0.000000e+00> : vector<8x256xf32>
    %320 = tpu.matmul %316, %319, %cst_120 {dimension_numbers = #tpu.dot_dimension_numbers<[1], [0], [0], [1], [0, 0, 1, 1], [], []>} : vector<8x256xbf16>, vector<256x256xbf16>, vector<8x256xf32> -> vector<8x256xf32>
    %321 = vector.extract_strided_slice %315 {offsets = [0, 0], sizes = [8, 256], strides = [1, 1]} : vector<8x768xf32> to vector<8x256xf32>
    %322 = vector.extract_strided_slice %318 {offsets = [0, 0], sizes = [8, 256], strides = [1, 1]} : vector<8x512xf32> to vector<8x256xf32>
    %323 = arith.addf %321, %322 : vector<8x256xf32>
    %324 = arith.negf %323 : vector<8x256xf32>
    %325 = math.exp %324 : vector<8x256xf32>
    %cst_121 = arith.constant 1.000000e+00 : f32
    %326 = vector.broadcast %cst_121 : f32 to vector<8x256xf32>
    %327 = arith.addf %326, %325 : vector<8x256xf32>
    %328 = arith.divf %326, %327 : vector<8x256xf32>
    %329 = vector.extract_strided_slice %315 {offsets = [0, 256], sizes = [8, 256], strides = [1, 1]} : vector<8x768xf32> to vector<8x256xf32>
    %330 = vector.extract_strided_slice %318 {offsets = [0, 256], sizes = [8, 256], strides = [1, 1]} : vector<8x512xf32> to vector<8x256xf32>
    %331 = arith.addf %330, %23 : vector<8x256xf32>
    %332 = arith.mulf %328, %331 : vector<8x256xf32>
    %333 = arith.addf %329, %332 : vector<8x256xf32>
    %334 = math.tanh %333 : vector<8x256xf32>
    %335 = vector.extract_strided_slice %315 {offsets = [0, 512], sizes = [8, 256], strides = [1, 1]} : vector<8x768xf32> to vector<8x256xf32>
    %336 = arith.addf %335, %320 : vector<8x256xf32>
    %337 = arith.negf %336 : vector<8x256xf32>
    %338 = math.exp %337 : vector<8x256xf32>
    %cst_122 = arith.constant 1.000000e+00 : f32
    %339 = vector.broadcast %cst_122 : f32 to vector<8x256xf32>
    %340 = arith.addf %339, %338 : vector<8x256xf32>
    %341 = arith.divf %339, %340 : vector<8x256xf32>
    %cst_123 = arith.constant 1.000000e+00 : f32
    %342 = vector.broadcast %cst_123 : f32 to vector<8x256xf32>
    %343 = arith.subf %342, %341 : vector<8x256xf32>
    %344 = arith.mulf %343, %334 : vector<8x256xf32>
    %345 = arith.mulf %341, %314 : vector<8x256xf32>
    %346 = arith.addf %344, %345 : vector<8x256xf32>
    %c16_124 = arith.constant 16 : index
    %c0_125 = arith.constant 0 : index
    %347 = vector.load %arg14[%c16_124, %c0_125] : memref<48x768xf32, #tpu.memory_space<vmem>>, vector<8x768xf32>
    %348 = arith.truncf %346 : vector<8x256xf32> to vector<8x256xbf16>
    %c0_126 = arith.constant 0 : index
    %c0_127 = arith.constant 0 : index
    %349 = vector.load %arg15[%c0_126, %c0_127] : memref<256x768xbf16, #tpu.memory_space<vmem>>, vector<256x512xbf16>
    %cst_128 = arith.constant dense<0.000000e+00> : vector<8x512xf32>
    %350 = tpu.matmul %348, %349, %cst_128 {dimension_numbers = #tpu.dot_dimension_numbers<[1], [0], [0], [1], [0, 0, 1, 1], [], []>} : vector<8x256xbf16>, vector<256x512xbf16>, vector<8x512xf32> -> vector<8x512xf32>
    %c0_129 = arith.constant 0 : index
    %c512_130 = arith.constant 512 : index
    %351 = vector.load %arg15[%c0_129, %c512_130] : memref<256x768xbf16, #tpu.memory_space<vmem>>, vector<256x256xbf16>
    %cst_131 = arith.constant dense<0.000000e+00> : vector<8x256xf32>
    %352 = tpu.matmul %348, %351, %cst_131 {dimension_numbers = #tpu.dot_dimension_numbers<[1], [0], [0], [1], [0, 0, 1, 1], [], []>} : vector<8x256xbf16>, vector<256x256xbf16>, vector<8x256xf32> -> vector<8x256xf32>
    %353 = vector.extract_strided_slice %347 {offsets = [0, 0], sizes = [8, 256], strides = [1, 1]} : vector<8x768xf32> to vector<8x256xf32>
    %354 = vector.extract_strided_slice %350 {offsets = [0, 0], sizes = [8, 256], strides = [1, 1]} : vector<8x512xf32> to vector<8x256xf32>
    %355 = arith.addf %353, %354 : vector<8x256xf32>
    %356 = arith.negf %355 : vector<8x256xf32>
    %357 = math.exp %356 : vector<8x256xf32>
    %cst_132 = arith.constant 1.000000e+00 : f32
    %358 = vector.broadcast %cst_132 : f32 to vector<8x256xf32>
    %359 = arith.addf %358, %357 : vector<8x256xf32>
    %360 = arith.divf %358, %359 : vector<8x256xf32>
    %361 = vector.extract_strided_slice %347 {offsets = [0, 256], sizes = [8, 256], strides = [1, 1]} : vector<8x768xf32> to vector<8x256xf32>
    %362 = vector.extract_strided_slice %350 {offsets = [0, 256], sizes = [8, 256], strides = [1, 1]} : vector<8x512xf32> to vector<8x256xf32>
    %363 = arith.addf %362, %23 : vector<8x256xf32>
    %364 = arith.mulf %360, %363 : vector<8x256xf32>
    %365 = arith.addf %361, %364 : vector<8x256xf32>
    %366 = math.tanh %365 : vector<8x256xf32>
    %367 = vector.extract_strided_slice %347 {offsets = [0, 512], sizes = [8, 256], strides = [1, 1]} : vector<8x768xf32> to vector<8x256xf32>
    %368 = arith.addf %367, %352 : vector<8x256xf32>
    %369 = arith.negf %368 : vector<8x256xf32>
    %370 = math.exp %369 : vector<8x256xf32>
    %cst_133 = arith.constant 1.000000e+00 : f32
    %371 = vector.broadcast %cst_133 : f32 to vector<8x256xf32>
    %372 = arith.addf %371, %370 : vector<8x256xf32>
    %373 = arith.divf %371, %372 : vector<8x256xf32>
    %cst_134 = arith.constant 1.000000e+00 : f32
    %374 = vector.broadcast %cst_134 : f32 to vector<8x256xf32>
    %375 = arith.subf %374, %373 : vector<8x256xf32>
    %376 = arith.mulf %375, %366 : vector<8x256xf32>
    %377 = arith.mulf %373, %346 : vector<8x256xf32>
    %378 = arith.addf %376, %377 : vector<8x256xf32>
    %c24_135 = arith.constant 24 : index
    %c0_136 = arith.constant 0 : index
    %379 = vector.load %arg14[%c24_135, %c0_136] : memref<48x768xf32, #tpu.memory_space<vmem>>, vector<8x768xf32>
    %380 = arith.truncf %378 : vector<8x256xf32> to vector<8x256xbf16>
    %c0_137 = arith.constant 0 : index
    %c0_138 = arith.constant 0 : index
    %381 = vector.load %arg15[%c0_137, %c0_138] : memref<256x768xbf16, #tpu.memory_space<vmem>>, vector<256x512xbf16>
    %cst_139 = arith.constant dense<0.000000e+00> : vector<8x512xf32>
    %382 = tpu.matmul %380, %381, %cst_139 {dimension_numbers = #tpu.dot_dimension_numbers<[1], [0], [0], [1], [0, 0, 1, 1], [], []>} : vector<8x256xbf16>, vector<256x512xbf16>, vector<8x512xf32> -> vector<8x512xf32>
    %c0_140 = arith.constant 0 : index
    %c512_141 = arith.constant 512 : index
    %383 = vector.load %arg15[%c0_140, %c512_141] : memref<256x768xbf16, #tpu.memory_space<vmem>>, vector<256x256xbf16>
    %cst_142 = arith.constant dense<0.000000e+00> : vector<8x256xf32>
    %384 = tpu.matmul %380, %383, %cst_142 {dimension_numbers = #tpu.dot_dimension_numbers<[1], [0], [0], [1], [0, 0, 1, 1], [], []>} : vector<8x256xbf16>, vector<256x256xbf16>, vector<8x256xf32> -> vector<8x256xf32>
    %385 = vector.extract_strided_slice %379 {offsets = [0, 0], sizes = [8, 256], strides = [1, 1]} : vector<8x768xf32> to vector<8x256xf32>
    %386 = vector.extract_strided_slice %382 {offsets = [0, 0], sizes = [8, 256], strides = [1, 1]} : vector<8x512xf32> to vector<8x256xf32>
    %387 = arith.addf %385, %386 : vector<8x256xf32>
    %388 = arith.negf %387 : vector<8x256xf32>
    %389 = math.exp %388 : vector<8x256xf32>
    %cst_143 = arith.constant 1.000000e+00 : f32
    %390 = vector.broadcast %cst_143 : f32 to vector<8x256xf32>
    %391 = arith.addf %390, %389 : vector<8x256xf32>
    %392 = arith.divf %390, %391 : vector<8x256xf32>
    %393 = vector.extract_strided_slice %379 {offsets = [0, 256], sizes = [8, 256], strides = [1, 1]} : vector<8x768xf32> to vector<8x256xf32>
    %394 = vector.extract_strided_slice %382 {offsets = [0, 256], sizes = [8, 256], strides = [1, 1]} : vector<8x512xf32> to vector<8x256xf32>
    %395 = arith.addf %394, %23 : vector<8x256xf32>
    %396 = arith.mulf %392, %395 : vector<8x256xf32>
    %397 = arith.addf %393, %396 : vector<8x256xf32>
    %398 = math.tanh %397 : vector<8x256xf32>
    %399 = vector.extract_strided_slice %379 {offsets = [0, 512], sizes = [8, 256], strides = [1, 1]} : vector<8x768xf32> to vector<8x256xf32>
    %400 = arith.addf %399, %384 : vector<8x256xf32>
    %401 = arith.negf %400 : vector<8x256xf32>
    %402 = math.exp %401 : vector<8x256xf32>
    %cst_144 = arith.constant 1.000000e+00 : f32
    %403 = vector.broadcast %cst_144 : f32 to vector<8x256xf32>
    %404 = arith.addf %403, %402 : vector<8x256xf32>
    %405 = arith.divf %403, %404 : vector<8x256xf32>
    %cst_145 = arith.constant 1.000000e+00 : f32
    %406 = vector.broadcast %cst_145 : f32 to vector<8x256xf32>
    %407 = arith.subf %406, %405 : vector<8x256xf32>
    %408 = arith.mulf %407, %398 : vector<8x256xf32>
    %409 = arith.mulf %405, %378 : vector<8x256xf32>
    %410 = arith.addf %408, %409 : vector<8x256xf32>
    %c32_146 = arith.constant 32 : index
    %c0_147 = arith.constant 0 : index
    %411 = vector.load %arg14[%c32_146, %c0_147] : memref<48x768xf32, #tpu.memory_space<vmem>>, vector<8x768xf32>
    %412 = arith.truncf %410 : vector<8x256xf32> to vector<8x256xbf16>
    %c0_148 = arith.constant 0 : index
    %c0_149 = arith.constant 0 : index
    %413 = vector.load %arg15[%c0_148, %c0_149] : memref<256x768xbf16, #tpu.memory_space<vmem>>, vector<256x512xbf16>
    %cst_150 = arith.constant dense<0.000000e+00> : vector<8x512xf32>
    %414 = tpu.matmul %412, %413, %cst_150 {dimension_numbers = #tpu.dot_dimension_numbers<[1], [0], [0], [1], [0, 0, 1, 1], [], []>} : vector<8x256xbf16>, vector<256x512xbf16>, vector<8x512xf32> -> vector<8x512xf32>
    %c0_151 = arith.constant 0 : index
    %c512_152 = arith.constant 512 : index
    %415 = vector.load %arg15[%c0_151, %c512_152] : memref<256x768xbf16, #tpu.memory_space<vmem>>, vector<256x256xbf16>
    %cst_153 = arith.constant dense<0.000000e+00> : vector<8x256xf32>
    %416 = tpu.matmul %412, %415, %cst_153 {dimension_numbers = #tpu.dot_dimension_numbers<[1], [0], [0], [1], [0, 0, 1, 1], [], []>} : vector<8x256xbf16>, vector<256x256xbf16>, vector<8x256xf32> -> vector<8x256xf32>
    %417 = vector.extract_strided_slice %411 {offsets = [0, 0], sizes = [8, 256], strides = [1, 1]} : vector<8x768xf32> to vector<8x256xf32>
    %418 = vector.extract_strided_slice %414 {offsets = [0, 0], sizes = [8, 256], strides = [1, 1]} : vector<8x512xf32> to vector<8x256xf32>
    %419 = arith.addf %417, %418 : vector<8x256xf32>
    %420 = arith.negf %419 : vector<8x256xf32>
    %421 = math.exp %420 : vector<8x256xf32>
    %cst_154 = arith.constant 1.000000e+00 : f32
    %422 = vector.broadcast %cst_154 : f32 to vector<8x256xf32>
    %423 = arith.addf %422, %421 : vector<8x256xf32>
    %424 = arith.divf %422, %423 : vector<8x256xf32>
    %425 = vector.extract_strided_slice %411 {offsets = [0, 256], sizes = [8, 256], strides = [1, 1]} : vector<8x768xf32> to vector<8x256xf32>
    %426 = vector.extract_strided_slice %414 {offsets = [0, 256], sizes = [8, 256], strides = [1, 1]} : vector<8x512xf32> to vector<8x256xf32>
    %427 = arith.addf %426, %23 : vector<8x256xf32>
    %428 = arith.mulf %424, %427 : vector<8x256xf32>
    %429 = arith.addf %425, %428 : vector<8x256xf32>
    %430 = math.tanh %429 : vector<8x256xf32>
    %431 = vector.extract_strided_slice %411 {offsets = [0, 512], sizes = [8, 256], strides = [1, 1]} : vector<8x768xf32> to vector<8x256xf32>
    %432 = arith.addf %431, %416 : vector<8x256xf32>
    %433 = arith.negf %432 : vector<8x256xf32>
    %434 = math.exp %433 : vector<8x256xf32>
    %cst_155 = arith.constant 1.000000e+00 : f32
    %435 = vector.broadcast %cst_155 : f32 to vector<8x256xf32>
    %436 = arith.addf %435, %434 : vector<8x256xf32>
    %437 = arith.divf %435, %436 : vector<8x256xf32>
    %cst_156 = arith.constant 1.000000e+00 : f32
    %438 = vector.broadcast %cst_156 : f32 to vector<8x256xf32>
    %439 = arith.subf %438, %437 : vector<8x256xf32>
    %440 = arith.mulf %439, %430 : vector<8x256xf32>
    %441 = arith.mulf %437, %410 : vector<8x256xf32>
    %442 = arith.addf %440, %441 : vector<8x256xf32>
    %c40_157 = arith.constant 40 : index
    %c0_158 = arith.constant 0 : index
    %443 = vector.load %arg14[%c40_157, %c0_158] : memref<48x768xf32, #tpu.memory_space<vmem>>, vector<8x768xf32>
    %444 = arith.truncf %442 : vector<8x256xf32> to vector<8x256xbf16>
    %c0_159 = arith.constant 0 : index
    %c0_160 = arith.constant 0 : index
    %445 = vector.load %arg15[%c0_159, %c0_160] : memref<256x768xbf16, #tpu.memory_space<vmem>>, vector<256x512xbf16>
    %cst_161 = arith.constant dense<0.000000e+00> : vector<8x512xf32>
    %446 = tpu.matmul %444, %445, %cst_161 {dimension_numbers = #tpu.dot_dimension_numbers<[1], [0], [0], [1], [0, 0, 1, 1], [], []>} : vector<8x256xbf16>, vector<256x512xbf16>, vector<8x512xf32> -> vector<8x512xf32>
    %c0_162 = arith.constant 0 : index
    %c512_163 = arith.constant 512 : index
    %447 = vector.load %arg15[%c0_162, %c512_163] : memref<256x768xbf16, #tpu.memory_space<vmem>>, vector<256x256xbf16>
    %cst_164 = arith.constant dense<0.000000e+00> : vector<8x256xf32>
    %448 = tpu.matmul %444, %447, %cst_164 {dimension_numbers = #tpu.dot_dimension_numbers<[1], [0], [0], [1], [0, 0, 1, 1], [], []>} : vector<8x256xbf16>, vector<256x256xbf16>, vector<8x256xf32> -> vector<8x256xf32>
    %449 = vector.extract_strided_slice %443 {offsets = [0, 0], sizes = [8, 256], strides = [1, 1]} : vector<8x768xf32> to vector<8x256xf32>
    %450 = vector.extract_strided_slice %446 {offsets = [0, 0], sizes = [8, 256], strides = [1, 1]} : vector<8x512xf32> to vector<8x256xf32>
    %451 = arith.addf %449, %450 : vector<8x256xf32>
    %452 = arith.negf %451 : vector<8x256xf32>
    %453 = math.exp %452 : vector<8x256xf32>
    %cst_165 = arith.constant 1.000000e+00 : f32
    %454 = vector.broadcast %cst_165 : f32 to vector<8x256xf32>
    %455 = arith.addf %454, %453 : vector<8x256xf32>
    %456 = arith.divf %454, %455 : vector<8x256xf32>
    %457 = vector.extract_strided_slice %443 {offsets = [0, 256], sizes = [8, 256], strides = [1, 1]} : vector<8x768xf32> to vector<8x256xf32>
    %458 = vector.extract_strided_slice %446 {offsets = [0, 256], sizes = [8, 256], strides = [1, 1]} : vector<8x512xf32> to vector<8x256xf32>
    %459 = arith.addf %458, %23 : vector<8x256xf32>
    %460 = arith.mulf %456, %459 : vector<8x256xf32>
    %461 = arith.addf %457, %460 : vector<8x256xf32>
    %462 = math.tanh %461 : vector<8x256xf32>
    %463 = vector.extract_strided_slice %443 {offsets = [0, 512], sizes = [8, 256], strides = [1, 1]} : vector<8x768xf32> to vector<8x256xf32>
    %464 = arith.addf %463, %448 : vector<8x256xf32>
    %465 = arith.negf %464 : vector<8x256xf32>
    %466 = math.exp %465 : vector<8x256xf32>
    %cst_166 = arith.constant 1.000000e+00 : f32
    %467 = vector.broadcast %cst_166 : f32 to vector<8x256xf32>
    %468 = arith.addf %467, %466 : vector<8x256xf32>
    %469 = arith.divf %467, %468 : vector<8x256xf32>
    %cst_167 = arith.constant 1.000000e+00 : f32
    %470 = vector.broadcast %cst_167 : f32 to vector<8x256xf32>
    %471 = arith.subf %470, %469 : vector<8x256xf32>
    %472 = arith.mulf %471, %462 : vector<8x256xf32>
    %473 = arith.mulf %469, %442 : vector<8x256xf32>
    %474 = arith.addf %472, %473 : vector<8x256xf32>
    %c1_i32_168 = arith.constant 1 : i32
    %475 = tpu.memref_slice %arg17[%c1_i32_168] : memref<2x!tpu.dma_semaphore, #tpu.memory_space<semaphore_mem>> -> memref<1x!tpu.dma_semaphore, #tpu.memory_space<semaphore_mem>>
    %476 = tpu.memref_squeeze %475 : memref<1x!tpu.dma_semaphore, #tpu.memory_space<semaphore_mem>> -> memref<!tpu.dma_semaphore, #tpu.memory_space<semaphore_mem>>
    tpu.wait_dma2 semaphore(%476 : memref<!tpu.dma_semaphore, #tpu.memory_space<semaphore_mem>>) src(%arg11 : memref<256x128xbf16, #tpu.memory_space<any>>) dst(%arg16 : memref<256x128xbf16, #tpu.memory_space<vmem>>)
    %477 = tpu.concatenate %314, %346, %378, %410, %442, %474 in 0 : vector<8x256xf32>, vector<8x256xf32>, vector<8x256xf32>, vector<8x256xf32>, vector<8x256xf32>, vector<8x256xf32> -> vector<48x256xf32>
    %478 = arith.truncf %477 : vector<48x256xf32> to vector<48x256xbf16>
    %c0_169 = arith.constant 0 : index
    %c0_170 = arith.constant 0 : index
    %479 = vector.load %arg16[%c0_169, %c0_170] : memref<256x128xbf16, #tpu.memory_space<vmem>>, vector<256x128xbf16>
    %cst_171 = arith.constant dense<0.000000e+00> : vector<48x128xf32>
    %480 = tpu.matmul %478, %479, %cst_171 {dimension_numbers = #tpu.dot_dimension_numbers<[1], [0], [0], [1], [0, 0, 1, 1], [], []>} : vector<48x256xbf16>, vector<256x128xbf16>, vector<48x128xf32> -> vector<48x128xf32>
    %c0_172 = arith.constant 0 : index
    %c0_173 = arith.constant 0 : index
    %481 = vector.load %arg9[%c0_172, %c0_173] : memref<1x128xf32, #tpu.memory_space<vmem>>, vector<1x128xf32>
    %482 = vector.broadcast %481 : vector<1x128xf32> to vector<48x128xf32>
    %483 = arith.addf %480, %482 : vector<48x128xf32>
    %c0_174 = arith.constant 0 : index
    %c0_175 = arith.constant 0 : index
    %484 = vector.load %arg12[%c0_174, %c0_175] : memref<48x128xf32, #tpu.memory_space<vmem>>, vector<48x128xf32>
    tpu.vector_store %arg12[%c0_174, %c0_175], %483 {strides = array<i32>} : memref<48x128xf32, #tpu.memory_space<vmem>>, vector<48x128xf32>,
    return
  }
}

</mosaic_0001>

<llo_original>
// kernel: s2s_forward.1
$region0: #{s2s_forward.1}
  #allocation0 [shape = 'u32[]', space=smem, size = 0x4, offset = 0x4, fixed_abs, tag = 'smem constant byte address 0x4 - core index']
  #allocation1 [shape = 'u32[144,128]{1,0:T(1,128)}', space=vmem, size = 0x12000, scoped, tag = 'internal scratch']
  #allocation2 [shape = 'f32[64,768]{1,0:T(8,128)}', space=vmem, size = 0x30000, scoped, tag = 'scratch operand']
  #allocation3 [shape = 'f32[48,768]{1,0:T(8,128)}', space=vmem, size = 0x24000, scoped, tag = 'scratch operand']
  #allocation4 [shape = 'bf16[256,768]{1,0:T(8,128)(2,1)}', space=vmem, size = 0x60000, scoped, tag = 'scratch operand']
  #allocation5 [shape = 'bf16[256,128]{1,0:T(8,128)(2,1)}', space=vmem, size = 0x10000, scoped, tag = 'scratch operand']
  #allocation6 [shape = 's32[2]{0}', space=sflag, size = 0x8, scoped, tag = 'scratch operand']
  #allocation9 [shape = 's32[]', space=sflag, size = 0x4, offset = 0, fixed_abs, tag = 'sflag constant byte address 0x0 - dummy sync flag']
  #allocation10 [shape = 's32[]', space=sflag, size = 0x4, offset = 0, fixed_abs, tag = 'sflag constant byte address 0x0 - dummy sync flag']
  #allocation11 [shape = 'u32[]', space=smem, size = 0x4, offset = 0x44, fixed_abs, tag = 'smem constant byte address 0x44 - assertion arg 0']
  #allocation12 [shape = 'u32[]', space=smem, size = 0x4, offset = 0x48, fixed_abs, tag = 'smem constant byte address 0x48 - assertion arg 1']
  #allocation13 [shape = 's32[]', space=sflag, size = 0x4, offset = 0, fixed_abs, tag = 'sflag constant byte address 0x0 - dummy sync flag']
  %s0 = inlined_call_operand.vmem [shape: bf16[64,32], index: 0, kind: input, shape index: {}]
  %s1 = inlined_call_operand.vmem [shape: bf16[48,32], index: 1, kind: input, shape index: {}]
  %s2 = inlined_call_operand.vmem [shape: bf16[32,768], index: 2, kind: input, shape index: {}]
  %s3 = inlined_call_operand.hbm [shape: bf16[256,768], index: 3, kind: input, shape index: {}]
  %s4 = inlined_call_operand.vmem [shape: f32[1,768], index: 4, kind: input, shape index: {}]
  %s5 = inlined_call_operand.vmem [shape: f32[1,256], index: 5, kind: input, shape index: {}]
  %s6 = inlined_call_operand.vmem [shape: bf16[32,768], index: 6, kind: input, shape index: {}]
  %s7 = inlined_call_operand.vmem [shape: f32[1,768], index: 7, kind: input, shape index: {}]
  %s8 = inlined_call_operand.vmem [shape: f32[1,256], index: 8, kind: input, shape index: {}]
  %s9 = inlined_call_operand.vmem [shape: f32[1,128], index: 9, kind: input, shape index: {}]
  %s10 = inlined_call_operand.hbm [shape: bf16[256,768], index: 10, kind: input, shape index: {}]
  %s11 = inlined_call_operand.vmem [shape: bf16[256,128], index: 11, kind: input, shape index: {}]
  %s12 = inlined_call_operand.vmem [shape: f32[48,128], index: 12, kind: output, shape index: {}]
  %s13 = sld [smem:[#allocation0]]
  $region92: #{s2s_forward.1} parent=0
    _
  %s15 = ssub.s32 1, %s13
  %s16 = scalar_select 0, %s15, %s13
  $region1: #{s2s_forward.1} parent=0
    #allocation7 [shape = 'u8[393216]{0}', space=vmem, size = 0x60000, scoped, tag = 'input window, operand 3, single buffered']
    #allocation8 [shape = 's32[1]{0}', space=sflag, size = 0x4, scoped, tag = 'scoped memory for s2s_forward.1']
    %17 = vsyncpa [#allocation8], 0
    // Predicated region
    $region2: #{s2s_forward.1} parent=1 // pred_check
      _
    $region3: #{s2s_forward.1} parent=1 // pred_check_branch
      %19 = sbr.rel (0) target = $region5
    $region4: #{s2s_forward.1} parent=1 // pred_region
      _
    $region5: #{s2s_forward.1} parent=1 // pred_fallthru
      _
    // Predicated region
    $region6: #{s2s_forward.1} parent=1 // pred_check
      _
    $region7: #{s2s_forward.1} parent=1 // pred_check_branch
      %21 = sbr.rel (0) target = $region9
    $region8: #{s2s_forward.1} parent=1 // pred_region
      _
    $region9: #{s2s_forward.1} parent=1 // pred_fallthru
      _
    // Predicated region
    $region10: #{s2s_forward.1} parent=1 // pred_check
      _
    $region11: #{s2s_forward.1} parent=1 // pred_check_branch
      %23 = sbr.rel (0) target = $region13
    $region12: #{s2s_forward.1} parent=1 // pred_region
      _
    $region13: #{s2s_forward.1} parent=1 // pred_fallthru
      _
    // Predicated region
    $region14: #{s2s_forward.1} parent=1 // pred_check
      _
    $region15: #{s2s_forward.1} parent=1 // pred_check_branch
      %25 = sbr.rel (0) target = $region17
    $region16: #{s2s_forward.1} parent=1 // pred_region
      %s27 = ssub.s32 12288, 12288
      %28 = vsyncadd [#allocation8], %s27
      %s29 = sshll.u32 [#allocation7], 4
      %s30 = int_to_ptr.vmem [resolvable:$true] %s29
      %35 = dma.hbm_to_vmem [thread:$0]  %s3, 12288, %s30, [#allocation8], 384, 384, 24
    $region17: #{s2s_forward.1} parent=1 // pred_fallthru
      _
    // Predicated region
    $region18: #{s2s_forward.1} parent=1 // pred_check
      _
    $region19: #{s2s_forward.1} parent=1 // pred_check_branch
      %37 = sbr.rel (0) target = $region21
    $region20: #{s2s_forward.1} parent=1 // pred_region
      _
    $region21: #{s2s_forward.1} parent=1 // pred_fallthru
      _
    // Predicated region
    $region22: #{s2s_forward.1} parent=1 // pred_check
      _
    $region23: #{s2s_forward.1} parent=1 // pred_check_branch
      %39 = sbr.rel (0) target = $region25
    $region24: #{s2s_forward.1} parent=1 // pred_region
      _
    $region25: #{s2s_forward.1} parent=1 // pred_fallthru
      _
    // Predicated region
    $region26: #{s2s_forward.1} parent=1 // pred_check
      _
    $region27: #{s2s_forward.1} parent=1 // pred_check_branch
      %41 = sbr.rel (0) target = $region29
    $region28: #{s2s_forward.1} parent=1 // pred_region
      _
    $region29: #{s2s_forward.1} parent=1 // pred_fallthru
      _
    // Predicated region
    $region30: #{s2s_forward.1} parent=1 // pred_check
      _
    $region31: #{s2s_forward.1} parent=1 // pred_check_branch
      %43 = sbr.rel (0) target = $region33
    $region32: #{s2s_forward.1} parent=1 // pred_region
      _
    $region33: #{s2s_forward.1} parent=1 // pred_fallthru
      _
    // Predicated region
    $region34: #{s2s_forward.1} parent=1 // pred_check
      _
    $region35: #{s2s_forward.1} parent=1 // pred_check_branch
      %45 = sbr.rel (0) target = $region37
    $region36: #{s2s_forward.1} parent=1 // pred_region
      _
    $region37: #{s2s_forward.1} parent=1 // pred_fallthru
      _
    // Predicated region
    $region38: #{s2s_forward.1} parent=1 // pred_check
      _
    $region39: #{s2s_forward.1} parent=1 // pred_check_branch
      %47 = sbr.rel (0) target = $region41
    $region40: #{s2s_forward.1} parent=1 // pred_region
      _
    $region41: #{s2s_forward.1} parent=1 // pred_fallthru
      _
    // Predicated region
    $region42: #{s2s_forward.1} parent=1 // pred_check
      _
    $region43: #{s2s_forward.1} parent=1 // pred_check_branch
      %49 = sbr.rel (0) target = $region45
    $region44: #{s2s_forward.1} parent=1 // pred_region
      %50 = dma.done [#allocation8], 12288
    $region45: #{s2s_forward.1} parent=1 // pred_fallthru
      _
    // Predicated region
    $region46: #{s2s_forward.1} parent=1 // pred_check
      _
    $region47: #{s2s_forward.1} parent=1 // pred_check_branch
      %53 = sbr.rel target = $region49
    $region48: #{s2s_forward.1} parent=1 // pred_region
      %54 = sst [smem:[#allocation11]] [#allocation10]
      %55 = sst [smem:[#allocation12]] [#allocation9]
    $region49: #{s2s_forward.1} parent=1 // pred_fallthru
      _
    %57 = shalt.err (0)
    %s59 = sshll.u32 [#allocation4], 4
    %s60 = int_to_ptr.vmem [resolvable:$true] %s59
    %62 = dma.hbm_to_vmem [thread:$0]  %s10, 12288, %s60, [#allocation6]
    %s63 = scalar_lea.sflag [#allocation6], 1
    %p65 = scmp.lt.u32.totalorder 128, 8
    %p66 = pneg %p65
    // Predicated region
    $region50: #{s2s_forward.1} parent=1 // pred_check
      _
    $region51: #{s2s_forward.1} parent=1 // pred_check_branch
      %68 = sbr.rel (%p65) target = $region53
    $region52: #{s2s_forward.1} parent=1 // pred_region
      %s84 = sand.u32 128, 7
      %p85 = scmp.eq.s32.totalorder %s84, 0
      // Predicated region
      $region65: #{s2s_forward.1} parent=52 // pred_check
        %p86 = pneg %p85
      $region66: #{s2s_forward.1} parent=52 // pred_check_branch
        %88 = sbr.rel (%p86) target = $region68
      $region67: #{s2s_forward.1} parent=52 // pred_region
        loop: start=0, step=1, limit=1
        $region69: #{s2s_forward.1} parent=67 // loop_pre_header
          _
        $region70: #{s2s_forward.1} parent=67 // loop_header
          %s90 = sphi 0, %s94
          %p91 = scmp.ge.s32.totalorder %s90, 1
          %s95 = sphi %s11, %s11
          %s96 = sphi [#allocation5], [#allocation5]
        $region71: #{s2s_forward.1} parent=67 // loop_header_branch
          %93 = sbr.rel (%p91) target = $region75
        $region72: #{s2s_forward.1} parent=67 // loop_body
          %v97 = vld [vmem:[%s95] sm:$0xff]
          %98 = vst [vmem:[%s96] sm:$0xff] %v97
          %v99 = vld [vmem:[%s95 + $0x8] sm:$0xff]
          %100 = vst [vmem:[%s96 + $0x8] sm:$0xff] %v99
          %v101 = vld [vmem:[%s95 + $0x10] sm:$0xff]
          %102 = vst [vmem:[%s96 + $0x10] sm:$0xff] %v101
          %v103 = vld [vmem:[%s95 + $0x18] sm:$0xff]
          %104 = vst [vmem:[%s96 + $0x18] sm:$0xff] %v103
          %v105 = vld [vmem:[%s95 + $0x20] sm:$0xff]
          %106 = vst [vmem:[%s96 + $0x20] sm:$0xff] %v105
          %v107 = vld [vmem:[%s95 + $0x28] sm:$0xff]
          %108 = vst [vmem:[%s96 + $0x28] sm:$0xff] %v107
          %v109 = vld [vmem:[%s95 + $0x30] sm:$0xff]
          %110 = vst [vmem:[%s96 + $0x30] sm:$0xff] %v109
          %v111 = vld [vmem:[%s95 + $0x38] sm:$0xff]
          %112 = vst [vmem:[%s96 + $0x38] sm:$0xff] %v111
          %v113 = vld [vmem:[%s95 + $0x40] sm:$0xff]
          %114 = vst [vmem:[%s96 + $0x40] sm:$0xff] %v113
          %v115 = vld [vmem:[%s95 + $0x48] sm:$0xff]
          %116 = vst [vmem:[%s96 + $0x48] sm:$0xff] %v115
          %v117 = vld [vmem:[%s95 + $0x50] sm:$0xff]
          %118 = vst [vmem:[%s96 + $0x50] sm:$0xff] %v117
          %v119 = vld [vmem:[%s95 + $0x58] sm:$0xff]
          %120 = vst [vmem:[%s96 + $0x58] sm:$0xff] %v119
          %v121 = vld [vmem:[%s95 + $0x60] sm:$0xff]
          %122 = vst [vmem:[%s96 + $0x60] sm:$0xff] %v121
          %v123 = vld [vmem:[%s95 + $0x68] sm:$0xff]
          %124 = vst [vmem:[%s96 + $0x68] sm:$0xff] %v123
          %v125 = vld [vmem:[%s95 + $0x70] sm:$0xff]
          %126 = vst [vmem:[%s96 + $0x70] sm:$0xff] %v125
          %v127 = vld [vmem:[%s95 + $0x78] sm:$0xff]
          %128 = vst [vmem:[%s96 + $0x78] sm:$0xff] %v127
        $region73: #{s2s_forward.1} parent=67 // loop_footer
          %s94 = sadd.s32 1, %s90
        $region74: #{s2s_forward.1} parent=67 // loop_footer_branch
          %89 = sbr.rel target = $region70
        $region75: #{s2s_forward.1} parent=67 // loop_exit
          _
      $region68: #{s2s_forward.1} parent=52 // pred_fallthru
        _
      %p129 = pneg %p85
      // Predicated region
      $region76: #{s2s_forward.1} parent=52 // pred_check
        _
      $region77: #{s2s_forward.1} parent=52 // pred_check_branch
        %131 = sbr.rel (%p85) target = $region79
      $region78: #{s2s_forward.1} parent=52 // pred_region
        %s132 = sand.u32 128, 7
      $region79: #{s2s_forward.1} parent=52 // pred_fallthru
        _
    $region53: #{s2s_forward.1} parent=1 // pred_fallthru
      _
    // Predicated region
    $region54: #{s2s_forward.1} parent=1 // pred_check
      %p69 = pneg %p65
    $region55: #{s2s_forward.1} parent=1 // pred_check_branch
      %71 = sbr.rel (%p69) target = $region57
    $region56: #{s2s_forward.1} parent=1 // pred_region
      %s72 = sshll.u32 1, 128
      %s73 = ssub.s32 %s72, 1
      loop: start=0, step=1, limit=1
      $region58: #{s2s_forward.1} parent=56 // loop_pre_header
        _
      $region59: #{s2s_forward.1} parent=56 // loop_header
        %s75 = sphi 0, %s79
        %p76 = scmp.ge.s32.totalorder %s75, 1
        %s80 = sphi %s11, %s11
        %s81 = sphi [#allocation5], [#allocation5]
      $region60: #{s2s_forward.1} parent=56 // loop_header_branch
        %78 = sbr.rel (%p76) target = $region64
      $region61: #{s2s_forward.1} parent=56 // loop_body
        %v82 = vld [vmem:[%s80] sm:%s73]
        %83 = vst [vmem:[%s81] sm:%s73] %v82
      $region62: #{s2s_forward.1} parent=56 // loop_footer
        %s79 = sadd.s32 1, %s75
      $region63: #{s2s_forward.1} parent=56 // loop_footer_branch
        %74 = sbr.rel target = $region59
      $region64: #{s2s_forward.1} parent=56 // loop_exit
        _
    $region57: #{s2s_forward.1} parent=1 // pred_fallthru
      _
    // Predicated region
    $region80: #{s2s_forward.1} parent=1 // pred_check
      _
    $region81: #{s2s_forward.1} parent=1 // pred_check_branch
      %135 = sbr.rel (0) target = $region83
    $region82: #{s2s_forward.1} parent=1 // pred_region
      %136 = vsyncadd %s63, 2048
    $region83: #{s2s_forward.1} parent=1 // pred_fallthru
      _
    %v137 = vld [vmem:[%s0] sm:$0xf]
    %v138 = vld [vmem:[%s0 + $0x4] sm:$0xf]
    %v139 = vld [vmem:[%s0 + $0x8] sm:$0xf]
    %v140 = vld [vmem:[%s0 + $0xc] sm:$0xf]
    %v141 = vld [vmem:[%s0 + $0x10] sm:$0xf]
    %v142 = vld [vmem:[%s0 + $0x14] sm:$0xf]
    %v143 = vld [vmem:[%s0 + $0x18] sm:$0xf]
    %v144 = vld [vmem:[%s0 + $0x1c] sm:$0xf]
    %v145 = vld [vmem:[%s2] sm:$0xff]
    %v146 = vld [vmem:[%s2 + $0x8] sm:$0xff]
    %v147 = vld [vmem:[%s2 + $0x10] sm:$0xff]
    %v148 = vld [vmem:[%s2 + $0x18] sm:$0xff]
    %v149 = vld [vmem:[%s2 + $0x20] sm:$0xff]
    %v150 = vld [vmem:[%s2 + $0x28] sm:$0xff]
    %v151 = vld [vmem:[%s2 + $0x30] sm:$0xff]
    %v152 = vld [vmem:[%s2 + $0x38] sm:$0xff]
    %v153 = vld [vmem:[%s2 + $0x40] sm:$0xff]
    %v154 = vld [vmem:[%s2 + $0x48] sm:$0xff]
    %v155 = vld [vmem:[%s2 + $0x50] sm:$0xff]
    %v156 = vld [vmem:[%s2 + $0x58] sm:$0xff]
    %v157 = vld [vmem:[%s4] sm:$0x3f]
    %v159 = vlaneseq
    %v160 = vshrl.u32 %v159, 7
    %v161 = vsub.s32 0, %v160
    %v162 = vrot.slane %v157, %v161
    %v163 = vlaneseq
    %v164 = vshrl.u32 %v163, 7
    %v165 = vsub.s32 1, %v164
    %v166 = vrot.slane %v157, %v165
    %v167 = vlaneseq
    %v168 = vshrl.u32 %v167, 7
    %v169 = vsub.s32 2, %v168
    %v170 = vrot.slane %v157, %v169
    %v171 = vlaneseq
    %v172 = vshrl.u32 %v171, 7
    %v173 = vsub.s32 3, %v172
    %v174 = vrot.slane %v157, %v173
    %v175 = vlaneseq
    %v176 = vshrl.u32 %v175, 7
    %v177 = vsub.s32 4, %v176
    %v178 = vrot.slane %v157, %v177
    %v179 = vlaneseq
    %v180 = vshrl.u32 %v179, 7
    %v181 = vsub.s32 5, %v180
    %v182 = vrot.slane %v157, %v181
    %v197 = vunpack.c.l.b16 %v137
    %v198 = vunpack.c.l.b16 %v138
    %v199 = vunpack.c.l.b16 %v139
    %v200 = vunpack.c.l.b16 %v140
    %v201 = vunpack.c.l.b16 %v141
    %v202 = vunpack.c.l.b16 %v142
    %v203 = vunpack.c.l.b16 %v143
    %v204 = vunpack.c.l.b16 %v144
    %v205 = vpack.c.b16 %v198, %v197
    %v206 = vpack.c.b16 %v200, %v199
    %v207 = vpack.c.b16 %v202, %v201
    %v208 = vpack.c.b16 %v204, %v203
    %v221 = vunpack.c.l.b16 %v145
    %v222 = vunpack.c.h.b16 %v145
    %v223 = vunpack.c.l.b16 %v146
    %v224 = vunpack.c.h.b16 %v146
    %v225 = vunpack.c.l.b16 %v147
    %v226 = vunpack.c.h.b16 %v147
    %v227 = vunpack.c.l.b16 %v148
    %v228 = vunpack.c.h.b16 %v148
    %v229 = vunpack.c.l.b16 %v149
    %v230 = vunpack.c.h.b16 %v149
    %v231 = vunpack.c.l.b16 %v150
    %v232 = vunpack.c.h.b16 %v150
    %v233 = vunpack.c.l.b16 %v151
    %v234 = vunpack.c.h.b16 %v151
    %v235 = vunpack.c.l.b16 %v152
    %v236 = vunpack.c.h.b16 %v152
    %v237 = vunpack.c.l.b16 %v153
    %v238 = vunpack.c.h.b16 %v153
    %v239 = vunpack.c.l.b16 %v154
    %v240 = vunpack.c.h.b16 %v154
    %v241 = vunpack.c.l.b16 %v155
    %v242 = vunpack.c.h.b16 %v155
    %v243 = vunpack.c.l.b16 %v156
    %v244 = vunpack.c.h.b16 %v156
    %v245 = vpack.c.b16 %v227, %v221
    %v246 = vpack.c.b16 %v228, %v222
    %v247 = vpack.c.b16 %v229, %v223
    %v248 = vpack.c.b16 %v230, %v224
    %v249 = vpack.c.b16 %v231, %v225
    %v250 = vpack.c.b16 %v232, %v226
    %v251 = vpack.c.b16 %v239, %v233
    %v252 = vpack.c.b16 %v240, %v234
    %v253 = vpack.c.b16 %v241, %v235
    %v254 = vpack.c.b16 %v242, %v236
    %v255 = vpack.c.b16 %v243, %v237
    %v256 = vpack.c.b16 %v244, %v238
    %vm269 = vcmask 261120
    %v271 = vsel %vm269, %v205, 0
    %v274 = vsel %vm269, %v206, 0
    %v277 = vsel %vm269, %v207, 0
    %v280 = vsel %vm269, %v208, 0
    %282 = vmatprep.subr.bf16.mxu0 0
    %283 = vmatpush1.bf16.msra.mxu0 0
    %284 = vmatprep.subr.bf16.mxu0 0
    %285 = vmatpush1.bf16.msra.mxu0 0
    %286 = vmatprep.subr.bf16.mxu0 0
    %287 = vmatpush1.bf16.msra.mxu0 0
    %288 = vmatprep.subr.bf16.mxu0 0
    %289 = vmatpush1.bf16.msra.mxu0 0
    %290 = vmatprep.subr.bf16.mxu0 0
    %291 = vmatpush1.bf16.msra.mxu0 0
    %292 = vmatprep.subr.bf16.mxu0 0
    %293 = vmatpush1.bf16.msra.mxu0 0
    %294 = vmatprep.subr.bf16.mxu0 %v252
    %295 = vmatpush1.bf16.msra.mxu0 %v251
    %296 = vmatprep.subr.bf16.mxu0 %v246
    %297 = vmatpush1.bf16.msra.mxu0 %v245
    %298 = vmatprep.subr.bf16.mxu0 0
    %299 = vmatpush2.bf16.msra.mxu0 0
    %300 = vmatprep.subr.bf16.mxu0 0
    %301 = vmatpush2.bf16.msra.mxu0 0
    %302 = vmatprep.subr.bf16.mxu0 0
    %303 = vmatpush2.bf16.msra.mxu0 0
    %304 = vmatprep.subr.bf16.mxu0 0
    %305 = vmatpush2.bf16.msra.mxu0 0
    %306 = vmatprep.subr.bf16.mxu0 0
    %307 = vmatpush2.bf16.msra.mxu0 0
    %308 = vmatprep.subr.bf16.mxu0 0
    %309 = vmatpush2.bf16.msra.mxu0 0
    %310 = vmatprep.subr.bf16.mxu0 0
    %311 = vmatpush2.bf16.msra.mxu0 0
    %312 = vmatprep.subr.bf16.mxu0 0
    %313 = vmatpush2.bf16.msra.mxu0 0
    %314 = vmatprep.mubr.bf16.mxu0 0
    %315 = vmatmul.mubr.bf16.gmra.mxu0 %v271
    %v316 = vpop.f32.mrf.mxu0
    %v317 = vadd.f32 %v162, %v316
    %v318 = vpop.f32.mrf.mxu0
    %v319 = vadd.f32 %v166, %v318
    %v320 = vpop.f32.mrf.mxu0
    %v321 = vadd.f32 %v162, %v320
    %v322 = vpop.f32.mrf.mxu0
    %v323 = vadd.f32 %v166, %v322
    %324 = vmatprep.mubr.bf16.mxu0 0
    %325 = vmatmul.mubr.bf16.gmra.mxu0 %v274
    %v326 = vpop.f32.mrf.mxu0
    %v327 = vadd.f32 %v162, %v326
    %v328 = vpop.f32.mrf.mxu0
    %v329 = vadd.f32 %v166, %v328
    %v330 = vpop.f32.mrf.mxu0
    %v331 = vadd.f32 %v162, %v330
    %v332 = vpop.f32.mrf.mxu0
    %v333 = vadd.f32 %v166, %v332
    %334 = vmatprep.mubr.bf16.mxu0 0
    %335 = vmatmul.mubr.bf16.gmra.mxu0 %v277
    %v336 = vpop.f32.mrf.mxu0
    %v337 = vadd.f32 %v162, %v336
    %v338 = vpop.f32.mrf.mxu0
    %v339 = vadd.f32 %v166, %v338
    %v340 = vpop.f32.mrf.mxu0
    %v341 = vadd.f32 %v162, %v340
    %v342 = vpop.f32.mrf.mxu0
    %v343 = vadd.f32 %v166, %v342
    %344 = vmatprep.mubr.bf16.mxu0 0
    %345 = vmatmul.mubr.bf16.gmra.mxu0 %v280
    %v346 = vpop.f32.mrf.mxu0
    %v347 = vadd.f32 %v162, %v346
    %v348 = vpop.f32.mrf.mxu0
    %v349 = vadd.f32 %v166, %v348
    %v350 = vpop.f32.mrf.mxu0
    %v351 = vadd.f32 %v162, %v350
    %v352 = vpop.f32.mrf.mxu0
    %v353 = vadd.f32 %v166, %v352
    %354 = vdwg.mxu0
    %355 = vmatprep.subr.bf16.mxu0 0
    %356 = vmatpush1.bf16.msra.mxu0 0
    %357 = vmatprep.subr.bf16.mxu0 0
    %358 = vmatpush1.bf16.msra.mxu0 0
    %359 = vmatprep.subr.bf16.mxu0 0
    %360 = vmatpush1.bf16.msra.mxu0 0
    %361 = vmatprep.subr.bf16.mxu0 0
    %362 = vmatpush1.bf16.msra.mxu0 0
    %363 = vmatprep.subr.bf16.mxu0 0
    %364 = vmatpush1.bf16.msra.mxu0 0
    %365 = vmatprep.subr.bf16.mxu0 0
    %366 = vmatpush1.bf16.msra.mxu0 0
    %367 = vmatprep.subr.bf16.mxu0 %v254
    %368 = vmatpush1.bf16.msra.mxu0 %v253
    %369 = vmatprep.subr.bf16.mxu0 %v248
    %370 = vmatpush1.bf16.msra.mxu0 %v247
    %371 = vmatprep.subr.bf16.mxu0 0
    %372 = vmatpush2.bf16.msra.mxu0 0
    %373 = vmatprep.subr.bf16.mxu0 0
    %374 = vmatpush2.bf16.msra.mxu0 0
    %375 = vmatprep.subr.bf16.mxu0 0
    %376 = vmatpush2.bf16.msra.mxu0 0
    %377 = vmatprep.subr.bf16.mxu0 0
    %378 = vmatpush2.bf16.msra.mxu0 0
    %379 = vmatprep.subr.bf16.mxu0 0
    %380 = vmatpush2.bf16.msra.mxu0 0
    %381 = vmatprep.subr.bf16.mxu0 0
    %382 = vmatpush2.bf16.msra.mxu0 0
    %383 = vmatprep.subr.bf16.mxu0 0
    %384 = vmatpush2.bf16.msra.mxu0 0
    %385 = vmatprep.subr.bf16.mxu0 0
    %386 = vmatpush2.bf16.msra.mxu0 0
    %387 = vmatprep.mubr.bf16.mxu0 0
    %388 = vmatmul.mubr.bf16.gmra.mxu0 %v271
    %v389 = vpop.f32.mrf.mxu0
    %v390 = vadd.f32 %v170, %v389
    %v391 = vpop.f32.mrf.mxu0
    %v392 = vadd.f32 %v174, %v391
    %v393 = vpop.f32.mrf.mxu0
    %v394 = vadd.f32 %v170, %v393
    %v395 = vpop.f32.mrf.mxu0
    %v396 = vadd.f32 %v174, %v395
    %397 = vmatprep.mubr.bf16.mxu0 0
    %398 = vmatmul.mubr.bf16.gmra.mxu0 %v274
    %v399 = vpop.f32.mrf.mxu0
    %v400 = vadd.f32 %v170, %v399
    %v401 = vpop.f32.mrf.mxu0
    %v402 = vadd.f32 %v174, %v401
    %v403 = vpop.f32.mrf.mxu0
    %v404 = vadd.f32 %v170, %v403
    %v405 = vpop.f32.mrf.mxu0
    %v406 = vadd.f32 %v174, %v405
    %407 = vmatprep.mubr.bf16.mxu0 0
    %408 = vmatmul.mubr.bf16.gmra.mxu0 %v277
    %v409 = vpop.f32.mrf.mxu0
    %v410 = vadd.f32 %v170, %v409
    %v411 = vpop.f32.mrf.mxu0
    %v412 = vadd.f32 %v174, %v411
    %v413 = vpop.f32.mrf.mxu0
    %v414 = vadd.f32 %v170, %v413
    %v415 = vpop.f32.mrf.mxu0
    %v416 = vadd.f32 %v174, %v415
    %417 = vmatprep.mubr.bf16.mxu0 0
    %418 = vmatmul.mubr.bf16.gmra.mxu0 %v280
    %v419 = vpop.f32.mrf.mxu0
    %v420 = vadd.f32 %v170, %v419
    %v421 = vpop.f32.mrf.mxu0
    %v422 = vadd.f32 %v174, %v421
    %v423 = vpop.f32.mrf.mxu0
    %v424 = vadd.f32 %v170, %v423
    %v425 = vpop.f32.mrf.mxu0
    %v426 = vadd.f32 %v174, %v425
    %427 = vdwg.mxu0
    %428 = vmatprep.subr.bf16.mxu0 0
    %429 = vmatpush1.bf16.msra.mxu0 0
    %430 = vmatprep.subr.bf16.mxu0 0
    %431 = vmatpush1.bf16.msra.mxu0 0
    %432 = vmatprep.subr.bf16.mxu0 0
    %433 = vmatpush1.bf16.msra.mxu0 0
    %434 = vmatprep.subr.bf16.mxu0 0
    %435 = vmatpush1.bf16.msra.mxu0 0
    %436 = vmatprep.subr.bf16.mxu0 0
    %437 = vmatpush1.bf16.msra.mxu0 0
    %438 = vmatprep.subr.bf16.mxu0 0
    %439 = vmatpush1.bf16.msra.mxu0 0
    %440 = vmatprep.subr.bf16.mxu0 %v256
    %441 = vmatpush1.bf16.msra.mxu0 %v255
    %442 = vmatprep.subr.bf16.mxu0 %v250
    %443 = vmatpush1.bf16.msra.mxu0 %v249
    %444 = vmatprep.subr.bf16.mxu0 0
    %445 = vmatpush2.bf16.msra.mxu0 0
    %446 = vmatprep.subr.bf16.mxu0 0
    %447 = vmatpush2.bf16.msra.mxu0 0
    %448 = vmatprep.subr.bf16.mxu0 0
    %449 = vmatpush2.bf16.msra.mxu0 0
    %450 = vmatprep.subr.bf16.mxu0 0
    %451 = vmatpush2.bf16.msra.mxu0 0
    %452 = vmatprep.subr.bf16.mxu0 0
    %453 = vmatpush2.bf16.msra.mxu0 0
    %454 = vmatprep.subr.bf16.mxu0 0
    %455 = vmatpush2.bf16.msra.mxu0 0
    %456 = vmatprep.subr.bf16.mxu0 0
    %457 = vmatpush2.bf16.msra.mxu0 0
    %458 = vmatprep.subr.bf16.mxu0 0
    %459 = vmatpush2.bf16.msra.mxu0 0
    %460 = vmatprep.mubr.bf16.mxu0 0
    %461 = vmatmul.mubr.bf16.gmra.mxu0 %v271
    %v462 = vpop.f32.mrf.mxu0
    %v463 = vadd.f32 %v178, %v462
    %v464 = vpop.f32.mrf.mxu0
    %v465 = vadd.f32 %v182, %v464
    %v466 = vpop.f32.mrf.mxu0
    %v467 = vadd.f32 %v178, %v466
    %v468 = vpop.f32.mrf.mxu0
    %v469 = vadd.f32 %v182, %v468
    %470 = vmatprep.mubr.bf16.mxu0 0
    %471 = vmatmul.mubr.bf16.gmra.mxu0 %v274
    %v472 = vpop.f32.mrf.mxu0
    %v473 = vadd.f32 %v178, %v472
    %v474 = vpop.f32.mrf.mxu0
    %v475 = vadd.f32 %v182, %v474
    %v476 = vpop.f32.mrf.mxu0
    %v477 = vadd.f32 %v178, %v476
    %v478 = vpop.f32.mrf.mxu0
    %v479 = vadd.f32 %v182, %v478
    %480 = vmatprep.mubr.bf16.mxu0 0
    %481 = vmatmul.mubr.bf16.gmra.mxu0 %v277
    %v482 = vpop.f32.mrf.mxu0
    %v483 = vadd.f32 %v178, %v482
    %v484 = vpop.f32.mrf.mxu0
    %v485 = vadd.f32 %v182, %v484
    %v486 = vpop.f32.mrf.mxu0
    %v487 = vadd.f32 %v178, %v486
    %v488 = vpop.f32.mrf.mxu0
    %v489 = vadd.f32 %v182, %v488
    %490 = vmatprep.mubr.bf16.mxu0 0
    %491 = vmatmul.mubr.bf16.gmra.mxu0 %v280
    %v492 = vpop.f32.mrf.mxu0
    %v493 = vadd.f32 %v178, %v492
    %v494 = vpop.f32.mrf.mxu0
    %v495 = vadd.f32 %v182, %v494
    %v496 = vpop.f32.mrf.mxu0
    %v497 = vadd.f32 %v178, %v496
    %v498 = vpop.f32.mrf.mxu0
    %v499 = vadd.f32 %v182, %v498
    %500 = vdwg.mxu0
    %501 = vst [vmem:[#allocation2] sm:$0xff] %v317
    %502 = vst [vmem:[#allocation2 + $0x8] sm:$0xff] %v319
    %503 = vst [vmem:[#allocation2 + $0x10] sm:$0xff] %v390
    %504 = vst [vmem:[#allocation2 + $0x18] sm:$0xff] %v392
    %505 = vst [vmem:[#allocation2 + $0x20] sm:$0xff] %v463
    %506 = vst [vmem:[#allocation2 + $0x28] sm:$0xff] %v465
    %507 = vst [vmem:[#allocation2 + $0x30] sm:$0xff] %v321
    %508 = vst [vmem:[#allocation2 + $0x38] sm:$0xff] %v323
    %509 = vst [vmem:[#allocation2 + $0x40] sm:$0xff] %v394
    %510 = vst [vmem:[#allocation2 + $0x48] sm:$0xff] %v396
    %511 = vst [vmem:[#allocation2 + $0x50] sm:$0xff] %v467
    %512 = vst [vmem:[#allocation2 + $0x58] sm:$0xff] %v469
    %513 = vst [vmem:[#allocation2 + $0x60] sm:$0xff] %v327
    %514 = vst [vmem:[#allocation2 + $0x68] sm:$0xff] %v329
    %515 = vst [vmem:[#allocation2 + $0x70] sm:$0xff] %v400
    %516 = vst [vmem:[#allocation2 + $0x78] sm:$0xff] %v402
    %517 = vst [vmem:[#allocation2 + $0x80] sm:$0xff] %v473
    %518 = vst [vmem:[#allocation2 + $0x88] sm:$0xff] %v475
    %519 = vst [vmem:[#allocation2 + $0x90] sm:$0xff] %v331
    %520 = vst [vmem:[#allocation2 + $0x98] sm:$0xff] %v333
    %521 = vst [vmem:[#allocation2 + $0xa0] sm:$0xff] %v404
    %522 = vst [vmem:[#allocation2 + $0xa8] sm:$0xff] %v406
    %523 = vst [vmem:[#allocation2 + $0xb0] sm:$0xff] %v477
    %524 = vst [vmem:[#allocation2 + $0xb8] sm:$0xff] %v479
    %525 = vst [vmem:[#allocation2 + $0xc0] sm:$0xff] %v337
    %526 = vst [vmem:[#allocation2 + $0xc8] sm:$0xff] %v339
    %527 = vst [vmem:[#allocation2 + $0xd0] sm:$0xff] %v410
    %528 = vst [vmem:[#allocation2 + $0xd8] sm:$0xff] %v412
    %529 = vst [vmem:[#allocation2 + $0xe0] sm:$0xff] %v483
    %530 = vst [vmem:[#allocation2 + $0xe8] sm:$0xff] %v485
    %531 = vst [vmem:[#allocation2 + $0xf0] sm:$0xff] %v341
    %532 = vst [vmem:[#allocation2 + $0xf8] sm:$0xff] %v343
    %533 = vst [vmem:[#allocation2 + $0x100] sm:$0xff] %v414
    %534 = vst [vmem:[#allocation2 + $0x108] sm:$0xff] %v416
    %535 = vst [vmem:[#allocation2 + $0x110] sm:$0xff] %v487
    %536 = vst [vmem:[#allocation2 + $0x118] sm:$0xff] %v489
    %537 = vst [vmem:[#allocation2 + $0x120] sm:$0xff] %v347
    %538 = vst [vmem:[#allocation2 + $0x128] sm:$0xff] %v349
    %539 = vst [vmem:[#allocation2 + $0x130] sm:$0xff] %v420
    %540 = vst [vmem:[#allocation2 + $0x138] sm:$0xff] %v422
    %541 = vst [vmem:[#allocation2 + $0x140] sm:$0xff] %v493
    %542 = vst [vmem:[#allocation2 + $0x148] sm:$0xff] %v495
    %543 = vst [vmem:[#allocation2 + $0x150] sm:$0xff] %v351
    %544 = vst [vmem:[#allocation2 + $0x158] sm:$0xff] %v353
    %545 = vst [vmem:[#allocation2 + $0x160] sm:$0xff] %v424
    %546 = vst [vmem:[#allocation2 + $0x168] sm:$0xff] %v426
    %547 = vst [vmem:[#allocation2 + $0x170] sm:$0xff] %v497
    %548 = vst [vmem:[#allocation2 + $0x178] sm:$0xff] %v499
    %v549 = vld [vmem:[%s1] sm:$0xf]
    %v550 = vld [vmem:[%s1 + $0x4] sm:$0xf]
    %v551 = vld [vmem:[%s1 + $0x8] sm:$0xf]
    %v552 = vld [vmem:[%s1 + $0xc] sm:$0xf]
    %v553 = vld [vmem:[%s1 + $0x10] sm:$0xf]
    %v554 = vld [vmem:[%s1 + $0x14] sm:$0xf]
    %v555 = vld [vmem:[%s6] sm:$0xff]
    %v556 = vld [vmem:[%s6 + $0x8] sm:$0xff]
    %v557 = vld [vmem:[%s6 + $0x10] sm:$0xff]
    %v558 = vld [vmem:[%s6 + $0x18] sm:$0xff]
    %v559 = vld [vmem:[%s6 + $0x20] sm:$0xff]
    %v560 = vld [vmem:[%s6 + $0x28] sm:$0xff]
    %v561 = vld [vmem:[%s6 + $0x30] sm:$0xff]
    %v562 = vld [vmem:[%s6 + $0x38] sm:$0xff]
    %v563 = vld [vmem:[%s6 + $0x40] sm:$0xff]
    %v564 = vld [vmem:[%s6 + $0x48] sm:$0xff]
    %v565 = vld [vmem:[%s6 + $0x50] sm:$0xff]
    %v566 = vld [vmem:[%s6 + $0x58] sm:$0xff]
    %v567 = vld [vmem:[%s7] sm:$0x3f]
    %v569 = vlaneseq
    %v570 = vshrl.u32 %v569, 7
    %v571 = vsub.s32 0, %v570
    %v572 = vrot.slane %v567, %v571
    %v573 = vlaneseq
    %v574 = vshrl.u32 %v573, 7
    %v575 = vsub.s32 1, %v574
    %v576 = vrot.slane %v567, %v575
    %v577 = vlaneseq
    %v578 = vshrl.u32 %v577, 7
    %v579 = vsub.s32 2, %v578
    %v580 = vrot.slane %v567, %v579
    %v581 = vlaneseq
    %v582 = vshrl.u32 %v581, 7
    %v583 = vsub.s32 3, %v582
    %v584 = vrot.slane %v567, %v583
    %v585 = vlaneseq
    %v586 = vshrl.u32 %v585, 7
    %v587 = vsub.s32 4, %v586
    %v588 = vrot.slane %v567, %v587
    %v589 = vlaneseq
    %v590 = vshrl.u32 %v589, 7
    %v591 = vsub.s32 5, %v590
    %v592 = vrot.slane %v567, %v591
    %v605 = vunpack.c.l.b16 %v549
    %v606 = vunpack.c.l.b16 %v550
    %v607 = vunpack.c.l.b16 %v551
    %v608 = vunpack.c.l.b16 %v552
    %v609 = vunpack.c.l.b16 %v553
    %v610 = vunpack.c.l.b16 %v554
    %v611 = vpack.c.b16 %v606, %v605
    %v612 = vpack.c.b16 %v608, %v607
    %v613 = vpack.c.b16 %v610, %v609
    %v626 = vunpack.c.l.b16 %v555
    %v627 = vunpack.c.h.b16 %v555
    %v628 = vunpack.c.l.b16 %v556
    %v629 = vunpack.c.h.b16 %v556
    %v630 = vunpack.c.l.b16 %v557
    %v631 = vunpack.c.h.b16 %v557
    %v632 = vunpack.c.l.b16 %v558
    %v633 = vunpack.c.h.b16 %v558
    %v634 = vunpack.c.l.b16 %v559
    %v635 = vunpack.c.h.b16 %v559
    %v636 = vunpack.c.l.b16 %v560
    %v637 = vunpack.c.h.b16 %v560
    %v638 = vunpack.c.l.b16 %v561
    %v639 = vunpack.c.h.b16 %v561
    %v640 = vunpack.c.l.b16 %v562
    %v641 = vunpack.c.h.b16 %v562
    %v642 = vunpack.c.l.b16 %v563
    %v643 = vunpack.c.h.b16 %v563
    %v644 = vunpack.c.l.b16 %v564
    %v645 = vunpack.c.h.b16 %v564
    %v646 = vunpack.c.l.b16 %v565
    %v647 = vunpack.c.h.b16 %v565
    %v648 = vunpack.c.l.b16 %v566
    %v649 = vunpack.c.h.b16 %v566
    %v650 = vpack.c.b16 %v632, %v626
    %v651 = vpack.c.b16 %v633, %v627
    %v652 = vpack.c.b16 %v634, %v628
    %v653 = vpack.c.b16 %v635, %v629
    %v654 = vpack.c.b16 %v636, %v630
    %v655 = vpack.c.b16 %v637, %v631
    %v656 = vpack.c.b16 %v644, %v638
    %v657 = vpack.c.b16 %v645, %v639
    %v658 = vpack.c.b16 %v646, %v640
    %v659 = vpack.c.b16 %v647, %v641
    %v660 = vpack.c.b16 %v648, %v642
    %v661 = vpack.c.b16 %v649, %v643
    %v675 = vsel %vm269, %v611, 0
    %v678 = vsel %vm269, %v612, 0
    %v681 = vsel %vm269, %v613, 0
    %683 = vmatprep.subr.bf16.mxu0 0
    %684 = vmatpush1.bf16.msra.mxu0 0
    %685 = vmatprep.subr.bf16.mxu0 0
    %686 = vmatpush1.bf16.msra.mxu0 0
    %687 = vmatprep.subr.bf16.mxu0 0
    %688 = vmatpush1.bf16.msra.mxu0 0
    %689 = vmatprep.subr.bf16.mxu0 0
    %690 = vmatpush1.bf16.msra.mxu0 0
    %691 = vmatprep.subr.bf16.mxu0 0
    %692 = vmatpush1.bf16.msra.mxu0 0
    %693 = vmatprep.subr.bf16.mxu0 0
    %694 = vmatpush1.bf16.msra.mxu0 0
    %695 = vmatprep.subr.bf16.mxu0 %v657
    %696 = vmatpush1.bf16.msra.mxu0 %v656
    %697 = vmatprep.subr.bf16.mxu0 %v651
    %698 = vmatpush1.bf16.msra.mxu0 %v650
    %699 = vmatprep.subr.bf16.mxu0 0
    %700 = vmatpush2.bf16.msra.mxu0 0
    %701 = vmatprep.subr.bf16.mxu0 0
    %702 = vmatpush2.bf16.msra.mxu0 0
    %703 = vmatprep.subr.bf16.mxu0 0
    %704 = vmatpush2.bf16.msra.mxu0 0
    %705 = vmatprep.subr.bf16.mxu0 0
    %706 = vmatpush2.bf16.msra.mxu0 0
    %707 = vmatprep.subr.bf16.mxu0 0
    %708 = vmatpush2.bf16.msra.mxu0 0
    %709 = vmatprep.subr.bf16.mxu0 0
    %710 = vmatpush2.bf16.msra.mxu0 0
    %711 = vmatprep.subr.bf16.mxu0 0
    %712 = vmatpush2.bf16.msra.mxu0 0
    %713 = vmatprep.subr.bf16.mxu0 0
    %714 = vmatpush2.bf16.msra.mxu0 0
    %715 = vmatprep.mubr.bf16.mxu0 0
    %716 = vmatmul.mubr.bf16.gmra.mxu0 %v675
    %v717 = vpop.f32.mrf.mxu0
    %v718 = vadd.f32 %v572, %v717
    %v719 = vpop.f32.mrf.mxu0
    %v720 = vadd.f32 %v576, %v719
    %v721 = vpop.f32.mrf.mxu0
    %v722 = vadd.f32 %v572, %v721
    %v723 = vpop.f32.mrf.mxu0
    %v724 = vadd.f32 %v576, %v723
    %725 = vmatprep.mubr.bf16.mxu0 0
    %726 = vmatmul.mubr.bf16.gmra.mxu0 %v678
    %v727 = vpop.f32.mrf.mxu0
    %v728 = vadd.f32 %v572, %v727
    %v729 = vpop.f32.mrf.mxu0
    %v730 = vadd.f32 %v576, %v729
    %v731 = vpop.f32.mrf.mxu0
    %v732 = vadd.f32 %v572, %v731
    %v733 = vpop.f32.mrf.mxu0
    %v734 = vadd.f32 %v576, %v733
    %735 = vmatprep.mubr.bf16.mxu0 0
    %736 = vmatmul.mubr.bf16.gmra.mxu0 %v681
    %v737 = vpop.f32.mrf.mxu0
    %v738 = vadd.f32 %v572, %v737
    %v739 = vpop.f32.mrf.mxu0
    %v740 = vadd.f32 %v576, %v739
    %v741 = vpop.f32.mrf.mxu0
    %v742 = vadd.f32 %v572, %v741
    %v743 = vpop.f32.mrf.mxu0
    %v744 = vadd.f32 %v576, %v743
    %745 = vdwg.mxu0
    %746 = vmatprep.subr.bf16.mxu0 0
    %747 = vmatpush1.bf16.msra.mxu0 0
    %748 = vmatprep.subr.bf16.mxu0 0
    %749 = vmatpush1.bf16.msra.mxu0 0
    %750 = vmatprep.subr.bf16.mxu0 0
    %751 = vmatpush1.bf16.msra.mxu0 0
    %752 = vmatprep.subr.bf16.mxu0 0
    %753 = vmatpush1.bf16.msra.mxu0 0
    %754 = vmatprep.subr.bf16.mxu0 0
    %755 = vmatpush1.bf16.msra.mxu0 0
    %756 = vmatprep.subr.bf16.mxu0 0
    %757 = vmatpush1.bf16.msra.mxu0 0
    %758 = vmatprep.subr.bf16.mxu0 %v659
    %759 = vmatpush1.bf16.msra.mxu0 %v658
    %760 = vmatprep.subr.bf16.mxu0 %v653
    %761 = vmatpush1.bf16.msra.mxu0 %v652
    %762 = vmatprep.subr.bf16.mxu0 0
    %763 = vmatpush2.bf16.msra.mxu0 0
    %764 = vmatprep.subr.bf16.mxu0 0
    %765 = vmatpush2.bf16.msra.mxu0 0
    %766 = vmatprep.subr.bf16.mxu0 0
    %767 = vmatpush2.bf16.msra.mxu0 0
    %768 = vmatprep.subr.bf16.mxu0 0
    %769 = vmatpush2.bf16.msra.mxu0 0
    %770 = vmatprep.subr.bf16.mxu0 0
    %771 = vmatpush2.bf16.msra.mxu0 0
    %772 = vmatprep.subr.bf16.mxu0 0
    %773 = vmatpush2.bf16.msra.mxu0 0
    %774 = vmatprep.subr.bf16.mxu0 0
    %775 = vmatpush2.bf16.msra.mxu0 0
    %776 = vmatprep.subr.bf16.mxu0 0
    %777 = vmatpush2.bf16.msra.mxu0 0
    %778 = vmatprep.mubr.bf16.mxu0 0
    %779 = vmatmul.mubr.bf16.gmra.mxu0 %v675
    %v780 = vpop.f32.mrf.mxu0
    %v781 = vadd.f32 %v580, %v780
    %v782 = vpop.f32.mrf.mxu0
    %v783 = vadd.f32 %v584, %v782
    %v784 = vpop.f32.mrf.mxu0
    %v785 = vadd.f32 %v580, %v784
    %v786 = vpop.f32.mrf.mxu0
    %v787 = vadd.f32 %v584, %v786
    %788 = vmatprep.mubr.bf16.mxu0 0
    %789 = vmatmul.mubr.bf16.gmra.mxu0 %v678
    %v790 = vpop.f32.mrf.mxu0
    %v791 = vadd.f32 %v580, %v790
    %v792 = vpop.f32.mrf.mxu0
    %v793 = vadd.f32 %v584, %v792
    %v794 = vpop.f32.mrf.mxu0
    %v795 = vadd.f32 %v580, %v794
    %v796 = vpop.f32.mrf.mxu0
    %v797 = vadd.f32 %v584, %v796
    %798 = vmatprep.mubr.bf16.mxu0 0
    %799 = vmatmul.mubr.bf16.gmra.mxu0 %v681
    %v800 = vpop.f32.mrf.mxu0
    %v801 = vadd.f32 %v580, %v800
    %v802 = vpop.f32.mrf.mxu0
    %v803 = vadd.f32 %v584, %v802
    %v804 = vpop.f32.mrf.mxu0
    %v805 = vadd.f32 %v580, %v804
    %v806 = vpop.f32.mrf.mxu0
    %v807 = vadd.f32 %v584, %v806
    %808 = vdwg.mxu0
    %809 = vmatprep.subr.bf16.mxu0 0
    %810 = vmatpush1.bf16.msra.mxu0 0
    %811 = vmatprep.subr.bf16.mxu0 0
    %812 = vmatpush1.bf16.msra.mxu0 0
    %813 = vmatprep.subr.bf16.mxu0 0
    %814 = vmatpush1.bf16.msra.mxu0 0
    %815 = vmatprep.subr.bf16.mxu0 0
    %816 = vmatpush1.bf16.msra.mxu0 0
    %817 = vmatprep.subr.bf16.mxu0 0
    %818 = vmatpush1.bf16.msra.mxu0 0
    %819 = vmatprep.subr.bf16.mxu0 0
    %820 = vmatpush1.bf16.msra.mxu0 0
    %821 = vmatprep.subr.bf16.mxu0 %v661
    %822 = vmatpush1.bf16.msra.mxu0 %v660
    %823 = vmatprep.subr.bf16.mxu0 %v655
    %824 = vmatpush1.bf16.msra.mxu0 %v654
    %825 = vmatprep.subr.bf16.mxu0 0
    %826 = vmatpush2.bf16.msra.mxu0 0
    %827 = vmatprep.subr.bf16.mxu0 0
    %828 = vmatpush2.bf16.msra.mxu0 0
    %829 = vmatprep.subr.bf16.mxu0 0
    %830 = vmatpush2.bf16.msra.mxu0 0
    %831 = vmatprep.subr.bf16.mxu0 0
    %832 = vmatpush2.bf16.msra.mxu0 0
    %833 = vmatprep.subr.bf16.mxu0 0
    %834 = vmatpush2.bf16.msra.mxu0 0
    %835 = vmatprep.subr.bf16.mxu0 0
    %836 = vmatpush2.bf16.msra.mxu0 0
    %837 = vmatprep.subr.bf16.mxu0 0
    %838 = vmatpush2.bf16.msra.mxu0 0
    %839 = vmatprep.subr.bf16.mxu0 0
    %840 = vmatpush2.bf16.msra.mxu0 0
    %841 = vmatprep.mubr.bf16.mxu0 0
    %842 = vmatmul.mubr.bf16.gmra.mxu0 %v675
    %v843 = vpop.f32.mrf.mxu0
    %v844 = vadd.f32 %v588, %v843
    %v845 = vpop.f32.mrf.mxu0
    %v846 = vadd.f32 %v592, %v845
    %v847 = vpop.f32.mrf.mxu0
    %v848 = vadd.f32 %v588, %v847
    %v849 = vpop.f32.mrf.mxu0
    %v850 = vadd.f32 %v592, %v849
    %851 = vmatprep.mubr.bf16.mxu0 0
    %852 = vmatmul.mubr.bf16.gmra.mxu0 %v678
    %v853 = vpop.f32.mrf.mxu0
    %v854 = vadd.f32 %v588, %v853
    %v855 = vpop.f32.mrf.mxu0
    %v856 = vadd.f32 %v592, %v855
    %v857 = vpop.f32.mrf.mxu0
    %v858 = vadd.f32 %v588, %v857
    %v859 = vpop.f32.mrf.mxu0
    %v860 = vadd.f32 %v592, %v859
    %861 = vmatprep.mubr.bf16.mxu0 0
    %862 = vmatmul.mubr.bf16.gmra.mxu0 %v681
    %v863 = vpop.f32.mrf.mxu0
    %v864 = vadd.f32 %v588, %v863
    %v865 = vpop.f32.mrf.mxu0
    %v866 = vadd.f32 %v592, %v865
    %v867 = vpop.f32.mrf.mxu0
    %v868 = vadd.f32 %v588, %v867
    %v869 = vpop.f32.mrf.mxu0
    %v870 = vadd.f32 %v592, %v869
    %871 = vdwg.mxu0
    %872 = vst [vmem:[#allocation3] sm:$0xff] %v718
    %873 = vst [vmem:[#allocation3 + $0x8] sm:$0xff] %v720
    %874 = vst [vmem:[#allocation3 + $0x10] sm:$0xff] %v781
    %875 = vst [vmem:[#allocation3 + $0x18] sm:$0xff] %v783
    %876 = vst [vmem:[#allocation3 + $0x20] sm:$0xff] %v844
    %877 = vst [vmem:[#allocation3 + $0x28] sm:$0xff] %v846
    %878 = vst [vmem:[#allocation3 + $0x30] sm:$0xff] %v722
    %879 = vst [vmem:[#allocation3 + $0x38] sm:$0xff] %v724
    %880 = vst [vmem:[#allocation3 + $0x40] sm:$0xff] %v785
    %881 = vst [vmem:[#allocation3 + $0x48] sm:$0xff] %v787
    %882 = vst [vmem:[#allocation3 + $0x50] sm:$0xff] %v848
    %883 = vst [vmem:[#allocation3 + $0x58] sm:$0xff] %v850
    %884 = vst [vmem:[#allocation3 + $0x60] sm:$0xff] %v728
    %885 = vst [vmem:[#allocation3 + $0x68] sm:$0xff] %v730
    %886 = vst [vmem:[#allocation3 + $0x70] sm:$0xff] %v791
    %887 = vst [vmem:[#allocation3 + $0x78] sm:$0xff] %v793
    %888 = vst [vmem:[#allocation3 + $0x80] sm:$0xff] %v854
    %889 = vst [vmem:[#allocation3 + $0x88] sm:$0xff] %v856
    %890 = vst [vmem:[#allocation3 + $0x90] sm:$0xff] %v732
    %891 = vst [vmem:[#allocation3 + $0x98] sm:$0xff] %v734
    %892 = vst [vmem:[#allocation3 + $0xa0] sm:$0xff] %v795
    %893 = vst [vmem:[#allocation3 + $0xa8] sm:$0xff] %v797
    %894 = vst [vmem:[#allocation3 + $0xb0] sm:$0xff] %v858
    %895 = vst [vmem:[#allocation3 + $0xb8] sm:$0xff] %v860
    %896 = vst [vmem:[#allocation3 + $0xc0] sm:$0xff] %v738
    %897 = vst [vmem:[#allocation3 + $0xc8] sm:$0xff] %v740
    %898 = vst [vmem:[#allocation3 + $0xd0] sm:$0xff] %v801
    %899 = vst [vmem:[#allocation3 + $0xd8] sm:$0xff] %v803
    %900 = vst [vmem:[#allocation3 + $0xe0] sm:$0xff] %v864
    %901 = vst [vmem:[#allocation3 + $0xe8] sm:$0xff] %v866
    %902 = vst [vmem:[#allocation3 + $0xf0] sm:$0xff] %v742
    %903 = vst [vmem:[#allocation3 + $0xf8] sm:$0xff] %v744
    %904 = vst [vmem:[#allocation3 + $0x100] sm:$0xff] %v805
    %905 = vst [vmem:[#allocation3 + $0x108] sm:$0xff] %v807
    %906 = vst [vmem:[#allocation3 + $0x110] sm:$0xff] %v868
    %907 = vst [vmem:[#allocation3 + $0x118] sm:$0xff] %v870
    %v908 = vld [vmem:[%s5] sm:$0x3]
    %v910 = vlaneseq
    %v911 = vshrl.u32 %v910, 7
    %v912 = vsub.s32 0, %v911
    %v913 = vrot.slane %v908, %v912
    %v914 = vlaneseq
    %v915 = vshrl.u32 %v914, 7
    %v916 = vsub.s32 1, %v915
    %v917 = vrot.slane %v908, %v916
    %v920 = vld [vmem:[%s8] sm:$0x3]
    %v922 = vlaneseq
    %v923 = vshrl.u32 %v922, 7
    %v924 = vsub.s32 0, %v923
    %v925 = vrot.slane %v920, %v924
    %v926 = vlaneseq
    %v927 = vshrl.u32 %v926, 7
    %v928 = vsub.s32 1, %v927
    %v929 = vrot.slane %v920, %v928
    %v932 = vld [vmem:[#allocation2] sm:$0xff]
    %v933 = vld [vmem:[#allocation2 + $0x8] sm:$0xff]
    %v934 = vld [vmem:[#allocation2 + $0x10] sm:$0xff]
    %v935 = vld [vmem:[#allocation2 + $0x18] sm:$0xff]
    %v936 = vld [vmem:[#allocation2 + $0x20] sm:$0xff]
    %v937 = vld [vmem:[#allocation2 + $0x28] sm:$0xff]
    %v938 = vld [vmem:[#allocation7] sm:$0xff]
    %v939 = vld [vmem:[#allocation7 + $0x8] sm:$0xff]
    %v940 = vld [vmem:[#allocation7 + $0x18] sm:$0xff]
    %v941 = vld [vmem:[#allocation7 + $0x20] sm:$0xff]
    %v942 = vld [vmem:[#allocation7 + $0x30] sm:$0xff]
    %v943 = vld [vmem:[#allocation7 + $0x38] sm:$0xff]
    %v944 = vld [vmem:[#allocation7 + $0x48] sm:$0xff]
    %v945 = vld [vmem:[#allocation7 + $0x50] sm:$0xff]
    %v946 = vld [vmem:[#allocation7 + $0x60] sm:$0xff]
    %v947 = vld [vmem:[#allocation7 + $0x68] sm:$0xff]
    %v948 = vld [vmem:[#allocation7 + $0x78] sm:$0xff]
    %v949 = vld [vmem:[#allocation7 + $0x80] sm:$0xff]
    %v950 = vld [vmem:[#allocation7 + $0x90] sm:$0xff]
    %v951 = vld [vmem:[#allocation7 + $0x98] sm:$0xff]
    %v952 = vld [vmem:[#allocation7 + $0xa8] sm:$0xff]
    %v953 = vld [vmem:[#allocation7 + $0xb0] sm:$0xff]
    %v954 = vld [vmem:[#allocation7 + $0xc0] sm:$0xff]
    %v955 = vld [vmem:[#allocation7 + $0xc8] sm:$0xff]
    %v956 = vld [vmem:[#allocation7 + $0xd8] sm:$0xff]
    %v957 = vld [vmem:[#allocation7 + $0xe0] sm:$0xff]
    %v958 = vld [vmem:[#allocation7 + $0xf0] sm:$0xff]
    %v959 = vld [vmem:[#allocation7 + $0xf8] sm:$0xff]
    %v960 = vld [vmem:[#allocation7 + $0x108] sm:$0xff]
    %v961 = vld [vmem:[#allocation7 + $0x110] sm:$0xff]
    %v962 = vld [vmem:[#allocation7 + $0x120] sm:$0xff]
    %v963 = vld [vmem:[#allocation7 + $0x128] sm:$0xff]
    %v964 = vld [vmem:[#allocation7 + $0x138] sm:$0xff]
    %v965 = vld [vmem:[#allocation7 + $0x140] sm:$0xff]
    %v966 = vld [vmem:[#allocation7 + $0x150] sm:$0xff]
    %v967 = vld [vmem:[#allocation7 + $0x158] sm:$0xff]
    %v968 = vld [vmem:[#allocation7 + $0x168] sm:$0xff]
    %v969 = vld [vmem:[#allocation7 + $0x170] sm:$0xff]
    %v970 = vld [vmem:[#allocation7 + $0x180] sm:$0xff]
    %v971 = vld [vmem:[#allocation7 + $0x188] sm:$0xff]
    %v972 = vld [vmem:[#allocation7 + $0x198] sm:$0xff]
    %v973 = vld [vmem:[#allocation7 + $0x1a0] sm:$0xff]
    %v974 = vld [vmem:[#allocation7 + $0x1b0] sm:$0xff]
    %v975 = vld [vmem:[#allocation7 + $0x1b8] sm:$0xff]
    %v976 = vld [vmem:[#allocation7 + $0x1c8] sm:$0xff]
    %v977 = vld [vmem:[#allocation7 + $0x1d0] sm:$0xff]
    %v978 = vld [vmem:[#allocation7 + $0x1e0] sm:$0xff]
    %v979 = vld [vmem:[#allocation7 + $0x1e8] sm:$0xff]
    %v980 = vld [vmem:[#allocation7 + $0x1f8] sm:$0xff]
    %v981 = vld [vmem:[#allocation7 + $0x200] sm:$0xff]
    %v982 = vld [vmem:[#allocation7 + $0x210] sm:$0xff]
    %v983 = vld [vmem:[#allocation7 + $0x218] sm:$0xff]
    %v984 = vld [vmem:[#allocation7 + $0x228] sm:$0xff]
    %v985 = vld [vmem:[#allocation7 + $0x230] sm:$0xff]
    %v986 = vld [vmem:[#allocation7 + $0x240] sm:$0xff]
    %v987 = vld [vmem:[#allocation7 + $0x248] sm:$0xff]
    %v988 = vld [vmem:[#allocation7 + $0x258] sm:$0xff]
    %v989 = vld [vmem:[#allocation7 + $0x260] sm:$0xff]
    %v990 = vld [vmem:[#allocation7 + $0x270] sm:$0xff]
    %v991 = vld [vmem:[#allocation7 + $0x278] sm:$0xff]
    %v992 = vld [vmem:[#allocation7 + $0x288] sm:$0xff]
    %v993 = vld [vmem:[#allocation7 + $0x290] sm:$0xff]
    %v994 = vld [vmem:[#allocation7 + $0x2a0] sm:$0xff]
    %v995 = vld [vmem:[#allocation7 + $0x2a8] sm:$0xff]
    %v996 = vld [vmem:[#allocation7 + $0x2b8] sm:$0xff]
    %v997 = vld [vmem:[#allocation7 + $0x2c0] sm:$0xff]
    %v998 = vld [vmem:[#allocation7 + $0x2d0] sm:$0xff]
    %v999 = vld [vmem:[#allocation7 + $0x2d8] sm:$0xff]
    %v1000 = vld [vmem:[#allocation7 + $0x2e8] sm:$0xff]
    %v1001 = vld [vmem:[#allocation7 + $0x2f0] sm:$0xff]
    %v1066 = vunpack.c.l.b16 %v938
    %v1067 = vunpack.c.h.b16 %v938
    %v1068 = vunpack.c.l.b16 %v939
    %v1069 = vunpack.c.h.b16 %v939
    %v1070 = vunpack.c.l.b16 %v940
    %v1071 = vunpack.c.h.b16 %v940
    %v1072 = vunpack.c.l.b16 %v941
    %v1073 = vunpack.c.h.b16 %v941
    %v1074 = vunpack.c.l.b16 %v942
    %v1075 = vunpack.c.h.b16 %v942
    %v1076 = vunpack.c.l.b16 %v943
    %v1077 = vunpack.c.h.b16 %v943
    %v1078 = vunpack.c.l.b16 %v944
    %v1079 = vunpack.c.h.b16 %v944
    %v1080 = vunpack.c.l.b16 %v945
    %v1081 = vunpack.c.h.b16 %v945
    %v1082 = vunpack.c.l.b16 %v946
    %v1083 = vunpack.c.h.b16 %v946
    %v1084 = vunpack.c.l.b16 %v947
    %v1085 = vunpack.c.h.b16 %v947
    %v1086 = vunpack.c.l.b16 %v948
    %v1087 = vunpack.c.h.b16 %v948
    %v1088 = vunpack.c.l.b16 %v949
    %v1089 = vunpack.c.h.b16 %v949
    %v1090 = vunpack.c.l.b16 %v950
    %v1091 = vunpack.c.h.b16 %v950
    %v1092 = vunpack.c.l.b16 %v951
    %v1093 = vunpack.c.h.b16 %v951
    %v1094 = vunpack.c.l.b16 %v952
    %v1095 = vunpack.c.h.b16 %v952
    %v1096 = vunpack.c.l.b16 %v953
    %v1097 = vunpack.c.h.b16 %v953
    %v1098 = vunpack.c.l.b16 %v954
    %v1099 = vunpack.c.h.b16 %v954
    %v1100 = vunpack.c.l.b16 %v955
    %v1101 = vunpack.c.h.b16 %v955
    %v1102 = vunpack.c.l.b16 %v956
    %v1103 = vunpack.c.h.b16 %v956
    %v1104 = vunpack.c.l.b16 %v957
    %v1105 = vunpack.c.h.b16 %v957
    %v1106 = vunpack.c.l.b16 %v958
    %v1107 = vunpack.c.h.b16 %v958
    %v1108 = vunpack.c.l.b16 %v959
    %v1109 = vunpack.c.h.b16 %v959
    %v1110 = vunpack.c.l.b16 %v960
    %v1111 = vunpack.c.h.b16 %v960
    %v1112 = vunpack.c.l.b16 %v961
    %v1113 = vunpack.c.h.b16 %v961
    %v1114 = vunpack.c.l.b16 %v962
    %v1115 = vunpack.c.h.b16 %v962
    %v1116 = vunpack.c.l.b16 %v963
    %v1117 = vunpack.c.h.b16 %v963
    %v1118 = vunpack.c.l.b16 %v964
    %v1119 = vunpack.c.h.b16 %v964
    %v1120 = vunpack.c.l.b16 %v965
    %v1121 = vunpack.c.h.b16 %v965
    %v1122 = vunpack.c.l.b16 %v966
    %v1123 = vunpack.c.h.b16 %v966
    %v1124 = vunpack.c.l.b16 %v967
    %v1125 = vunpack.c.h.b16 %v967
    %v1126 = vunpack.c.l.b16 %v968
    %v1127 = vunpack.c.h.b16 %v968
    %v1128 = vunpack.c.l.b16 %v969
    %v1129 = vunpack.c.h.b16 %v969
    %v1130 = vunpack.c.l.b16 %v970
    %v1131 = vunpack.c.h.b16 %v970
    %v1132 = vunpack.c.l.b16 %v971
    %v1133 = vunpack.c.h.b16 %v971
    %v1134 = vunpack.c.l.b16 %v972
    %v1135 = vunpack.c.h.b16 %v972
    %v1136 = vunpack.c.l.b16 %v973
    %v1137 = vunpack.c.h.b16 %v973
    %v1138 = vunpack.c.l.b16 %v974
    %v1139 = vunpack.c.h.b16 %v974
    %v1140 = vunpack.c.l.b16 %v975
    %v1141 = vunpack.c.h.b16 %v975
    %v1142 = vunpack.c.l.b16 %v976
    %v1143 = vunpack.c.h.b16 %v976
    %v1144 = vunpack.c.l.b16 %v977
    %v1145 = vunpack.c.h.b16 %v977
    %v1146 = vunpack.c.l.b16 %v978
    %v1147 = vunpack.c.h.b16 %v978
    %v1148 = vunpack.c.l.b16 %v979
    %v1149 = vunpack.c.h.b16 %v979
    %v1150 = vunpack.c.l.b16 %v980
    %v1151 = vunpack.c.h.b16 %v980
    %v1152 = vunpack.c.l.b16 %v981
    %v1153 = vunpack.c.h.b16 %v981
    %v1154 = vunpack.c.l.b16 %v982
    %v1155 = vunpack.c.h.b16 %v982
    %v1156 = vunpack.c.l.b16 %v983
    %v1157 = vunpack.c.h.b16 %v983
    %v1158 = vunpack.c.l.b16 %v984
    %v1159 = vunpack.c.h.b16 %v984
    %v1160 = vunpack.c.l.b16 %v985
    %v1161 = vunpack.c.h.b16 %v985
    %v1162 = vunpack.c.l.b16 %v986
    %v1163 = vunpack.c.h.b16 %v986
    %v1164 = vunpack.c.l.b16 %v987
    %v1165 = vunpack.c.h.b16 %v987
    %v1166 = vunpack.c.l.b16 %v988
    %v1167 = vunpack.c.h.b16 %v988
    %v1168 = vunpack.c.l.b16 %v989
    %v1169 = vunpack.c.h.b16 %v989
    %v1170 = vunpack.c.l.b16 %v990
    %v1171 = vunpack.c.h.b16 %v990
    %v1172 = vunpack.c.l.b16 %v991
    %v1173 = vunpack.c.h.b16 %v991
    %v1174 = vunpack.c.l.b16 %v992
    %v1175 = vunpack.c.h.b16 %v992
    %v1176 = vunpack.c.l.b16 %v993
    %v1177 = vunpack.c.h.b16 %v993
    %v1178 = vunpack.c.l.b16 %v994
    %v1179 = vunpack.c.h.b16 %v994
    %v1180 = vunpack.c.l.b16 %v995
    %v1181 = vunpack.c.h.b16 %v995
    %v1182 = vunpack.c.l.b16 %v996
    %v1183 = vunpack.c.h.b16 %v996
    %v1184 = vunpack.c.l.b16 %v997
    %v1185 = vunpack.c.h.b16 %v997
    %v1186 = vunpack.c.l.b16 %v998
    %v1187 = vunpack.c.h.b16 %v998
    %v1188 = vunpack.c.l.b16 %v999
    %v1189 = vunpack.c.h.b16 %v999
    %v1190 = vunpack.c.l.b16 %v1000
    %v1191 = vunpack.c.h.b16 %v1000
    %v1192 = vunpack.c.l.b16 %v1001
    %v1193 = vunpack.c.h.b16 %v1001
    %v1194 = vpack.c.b16 %v1070, %v1066
    %v1195 = vpack.c.b16 %v1071, %v1067
    %v1196 = vpack.c.b16 %v1072, %v1068
    %v1197 = vpack.c.b16 %v1073, %v1069
    %v1198 = vpack.c.b16 %v1078, %v1074
    %v1199 = vpack.c.b16 %v1079, %v1075
    %v1200 = vpack.c.b16 %v1080, %v1076
    %v1201 = vpack.c.b16 %v1081, %v1077
    %v1202 = vpack.c.b16 %v1086, %v1082
    %v1203 = vpack.c.b16 %v1087, %v1083
    %v1204 = vpack.c.b16 %v1088, %v1084
    %v1205 = vpack.c.b16 %v1089, %v1085
    %v1206 = vpack.c.b16 %v1094, %v1090
    %v1207 = vpack.c.b16 %v1095, %v1091
    %v1208 = vpack.c.b16 %v1096, %v1092
    %v1209 = vpack.c.b16 %v1097, %v1093
    %v1210 = vpack.c.b16 %v1102, %v1098
    %v1211 = vpack.c.b16 %v1103, %v1099
    %v1212 = vpack.c.b16 %v1104, %v1100
    %v1213 = vpack.c.b16 %v1105, %v1101
    %v1214 = vpack.c.b16 %v1110, %v1106
    %v1215 = vpack.c.b16 %v1111, %v1107
    %v1216 = vpack.c.b16 %v1112, %v1108
    %v1217 = vpack.c.b16 %v1113, %v1109
    %v1218 = vpack.c.b16 %v1118, %v1114
    %v1219 = vpack.c.b16 %v1119, %v1115
    %v1220 = vpack.c.b16 %v1120, %v1116
    %v1221 = vpack.c.b16 %v1121, %v1117
    %v1222 = vpack.c.b16 %v1126, %v1122
    %v1223 = vpack.c.b16 %v1127, %v1123
    %v1224 = vpack.c.b16 %v1128, %v1124
    %v1225 = vpack.c.b16 %v1129, %v1125
    %v1226 = vpack.c.b16 %v1134, %v1130
    %v1227 = vpack.c.b16 %v1135, %v1131
    %v1228 = vpack.c.b16 %v1136, %v1132
    %v1229 = vpack.c.b16 %v1137, %v1133
    %v1230 = vpack.c.b16 %v1142, %v1138
    %v1231 = vpack.c.b16 %v1143, %v1139
    %v1232 = vpack.c.b16 %v1144, %v1140
    %v1233 = vpack.c.b16 %v1145, %v1141
    %v1234 = vpack.c.b16 %v1150, %v1146
    %v1235 = vpack.c.b16 %v1151, %v1147
    %v1236 = vpack.c.b16 %v1152, %v1148
    %v1237 = vpack.c.b16 %v1153, %v1149
    %v1238 = vpack.c.b16 %v1158, %v1154
    %v1239 = vpack.c.b16 %v1159, %v1155
    %v1240 = vpack.c.b16 %v1160, %v1156
    %v1241 = vpack.c.b16 %v1161, %v1157
    %v1242 = vpack.c.b16 %v1166, %v1162
    %v1243 = vpack.c.b16 %v1167, %v1163
    %v1244 = vpack.c.b16 %v1168, %v1164
    %v1245 = vpack.c.b16 %v1169, %v1165
    %v1246 = vpack.c.b16 %v1174, %v1170
    %v1247 = vpack.c.b16 %v1175, %v1171
    %v1248 = vpack.c.b16 %v1176, %v1172
    %v1249 = vpack.c.b16 %v1177, %v1173
    %v1250 = vpack.c.b16 %v1182, %v1178
    %v1251 = vpack.c.b16 %v1183, %v1179
    %v1252 = vpack.c.b16 %v1184, %v1180
    %v1253 = vpack.c.b16 %v1185, %v1181
    %v1254 = vpack.c.b16 %v1190, %v1186
    %v1255 = vpack.c.b16 %v1191, %v1187
    %v1256 = vpack.c.b16 %v1192, %v1188
    %v1257 = vpack.c.b16 %v1193, %v1189
    %1322 = vmatprep.subr.bf16.mxu0 %v1223
    %1323 = vmatpush1.bf16.msra.mxu0 %v1222
    %1324 = vmatprep.subr.bf16.mxu0 %v1219
    %1325 = vmatpush1.bf16.msra.mxu0 %v1218
    %1326 = vmatprep.subr.bf16.mxu0 %v1215
    %1327 = vmatpush1.bf16.msra.mxu0 %v1214
    %1328 = vmatprep.subr.bf16.mxu0 %v1211
    %1329 = vmatpush1.bf16.msra.mxu0 %v1210
    %1330 = vmatprep.subr.bf16.mxu0 %v1207
    %1331 = vmatpush1.bf16.msra.mxu0 %v1206
    %1332 = vmatprep.subr.bf16.mxu0 %v1203
    %1333 = vmatpush1.bf16.msra.mxu0 %v1202
    %1334 = vmatprep.subr.bf16.mxu0 %v1199
    %1335 = vmatpush1.bf16.msra.mxu0 %v1198
    %1336 = vmatprep.subr.bf16.mxu0 %v1195
    %1337 = vmatpush1.bf16.msra.mxu0 %v1194
    %1338 = vmatprep.subr.bf16.mxu0 %v1255
    %1339 = vmatpush2.bf16.msra.mxu0 %v1254
    %1340 = vmatprep.subr.bf16.mxu0 %v1251
    %1341 = vmatpush2.bf16.msra.mxu0 %v1250
    %1342 = vmatprep.subr.bf16.mxu0 %v1247
    %1343 = vmatpush2.bf16.msra.mxu0 %v1246
    %1344 = vmatprep.subr.bf16.mxu0 %v1243
    %1345 = vmatpush2.bf16.msra.mxu0 %v1242
    %1346 = vmatprep.subr.bf16.mxu0 %v1239
    %1347 = vmatpush2.bf16.msra.mxu0 %v1238
    %1348 = vmatprep.subr.bf16.mxu0 %v1235
    %1349 = vmatpush2.bf16.msra.mxu0 %v1234
    %1350 = vmatprep.subr.bf16.mxu0 %v1231
    %1351 = vmatpush2.bf16.msra.mxu0 %v1230
    %1352 = vmatprep.subr.bf16.mxu0 %v1227
    %1353 = vmatpush2.bf16.msra.mxu0 %v1226
    %1354 = vmatprep.mubr.bf16.mxu0 0
    %1355 = vmatmul.mubr.bf16.gmra.mxu0 0
    %v1356 = vpop.f32.mrf.mxu0
    %v1357 = vadd.f32 0.0, %v1356
    %v1358 = vpop.f32.mrf.mxu0
    %v1359 = vadd.f32 0.0, %v1358
    %v1360 = vpop.f32.mrf.mxu0
    %v1361 = vpop.f32.mrf.mxu0
    %1362 = vdwg.mxu0
    %1363 = vmatprep.subr.bf16.mxu0 %v1225
    %1364 = vmatpush1.bf16.msra.mxu0 %v1224
    %1365 = vmatprep.subr.bf16.mxu0 %v1221
    %1366 = vmatpush1.bf16.msra.mxu0 %v1220
    %1367 = vmatprep.subr.bf16.mxu0 %v1217
    %1368 = vmatpush1.bf16.msra.mxu0 %v1216
    %1369 = vmatprep.subr.bf16.mxu0 %v1213
    %1370 = vmatpush1.bf16.msra.mxu0 %v1212
    %1371 = vmatprep.subr.bf16.mxu0 %v1209
    %1372 = vmatpush1.bf16.msra.mxu0 %v1208
    %1373 = vmatprep.subr.bf16.mxu0 %v1205
    %1374 = vmatpush1.bf16.msra.mxu0 %v1204
    %1375 = vmatprep.subr.bf16.mxu0 %v1201
    %1376 = vmatpush1.bf16.msra.mxu0 %v1200
    %1377 = vmatprep.subr.bf16.mxu0 %v1197
    %1378 = vmatpush1.bf16.msra.mxu0 %v1196
    %1379 = vmatprep.subr.bf16.mxu0 %v1257
    %1380 = vmatpush2.bf16.msra.mxu0 %v1256
    %1381 = vmatprep.subr.bf16.mxu0 %v1253
    %1382 = vmatpush2.bf16.msra.mxu0 %v1252
    %1383 = vmatprep.subr.bf16.mxu0 %v1249
    %1384 = vmatpush2.bf16.msra.mxu0 %v1248
    %1385 = vmatprep.subr.bf16.mxu0 %v1245
    %1386 = vmatpush2.bf16.msra.mxu0 %v1244
    %1387 = vmatprep.subr.bf16.mxu0 %v1241
    %1388 = vmatpush2.bf16.msra.mxu0 %v1240
    %1389 = vmatprep.subr.bf16.mxu0 %v1237
    %1390 = vmatpush2.bf16.msra.mxu0 %v1236
    %1391 = vmatprep.subr.bf16.mxu0 %v1233
    %1392 = vmatpush2.bf16.msra.mxu0 %v1232
    %1393 = vmatprep.subr.bf16.mxu0 %v1229
    %1394 = vmatpush2.bf16.msra.mxu0 %v1228
    %1395 = vmatprep.mubr.bf16.mxu0 0
    %1396 = vmatmul.mubr.bf16.gmra.mxu0 0
    %v1397 = vpop.f32.mrf.mxu0
    %v1398 = vadd.f32 0.0, %v1397
    %v1399 = vpop.f32.mrf.mxu0
    %v1400 = vadd.f32 0.0, %v1399
    %v1401 = vpop.f32.mrf.mxu0
    %v1402 = vpop.f32.mrf.mxu0
    %1403 = vdwg.mxu0
    %v1404 = vld [vmem:[#allocation7 + $0x10] sm:$0xff]
    %v1405 = vld [vmem:[#allocation7 + $0x28] sm:$0xff]
    %v1406 = vld [vmem:[#allocation7 + $0x40] sm:$0xff]
    %v1407 = vld [vmem:[#allocation7 + $0x58] sm:$0xff]
    %v1408 = vld [vmem:[#allocation7 + $0x70] sm:$0xff]
    %v1409 = vld [vmem:[#allocation7 + $0x88] sm:$0xff]
    %v1410 = vld [vmem:[#allocation7 + $0xa0] sm:$0xff]
    %v1411 = vld [vmem:[#allocation7 + $0xb8] sm:$0xff]
    %v1412 = vld [vmem:[#allocation7 + $0xd0] sm:$0xff]
    %v1413 = vld [vmem:[#allocation7 + $0xe8] sm:$0xff]
    %v1414 = vld [vmem:[#allocation7 + $0x100] sm:$0xff]
    %v1415 = vld [vmem:[#allocation7 + $0x118] sm:$0xff]
    %v1416 = vld [vmem:[#allocation7 + $0x130] sm:$0xff]
    %v1417 = vld [vmem:[#allocation7 + $0x148] sm:$0xff]
    %v1418 = vld [vmem:[#allocation7 + $0x160] sm:$0xff]
    %v1419 = vld [vmem:[#allocation7 + $0x178] sm:$0xff]
    %v1420 = vld [vmem:[#allocation7 + $0x190] sm:$0xff]
    %v1421 = vld [vmem:[#allocation7 + $0x1a8] sm:$0xff]
    %v1422 = vld [vmem:[#allocation7 + $0x1c0] sm:$0xff]
    %v1423 = vld [vmem:[#allocation7 + $0x1d8] sm:$0xff]
    %v1424 = vld [vmem:[#allocation7 + $0x1f0] sm:$0xff]
    %v1425 = vld [vmem:[#allocation7 + $0x208] sm:$0xff]
    %v1426 = vld [vmem:[#allocation7 + $0x220] sm:$0xff]
    %v1427 = vld [vmem:[#allocation7 + $0x238] sm:$0xff]
    %v1428 = vld [vmem:[#allocation7 + $0x250] sm:$0xff]
    %v1429 = vld [vmem:[#allocation7 + $0x268] sm:$0xff]
    %v1430 = vld [vmem:[#allocation7 + $0x280] sm:$0xff]
    %v1431 = vld [vmem:[#allocation7 + $0x298] sm:$0xff]
    %v1432 = vld [vmem:[#allocation7 + $0x2b0] sm:$0xff]
    %v1433 = vld [vmem:[#allocation7 + $0x2c8] sm:$0xff]
    %v1434 = vld [vmem:[#allocation7 + $0x2e0] sm:$0xff]
    %v1435 = vld [vmem:[#allocation7 + $0x2f8] sm:$0xff]
    %v1468 = vunpack.c.l.b16 %v1404
    %v1469 = vunpack.c.h.b16 %v1404
    %v1470 = vunpack.c.l.b16 %v1405
    %v1471 = vunpack.c.h.b16 %v1405
    %v1472 = vunpack.c.l.b16 %v1406
    %v1473 = vunpack.c.h.b16 %v1406
    %v1474 = vunpack.c.l.b16 %v1407
    %v1475 = vunpack.c.h.b16 %v1407
    %v1476 = vunpack.c.l.b16 %v1408
    %v1477 = vunpack.c.h.b16 %v1408
    %v1478 = vunpack.c.l.b16 %v1409
    %v1479 = vunpack.c.h.b16 %v1409
    %v1480 = vunpack.c.l.b16 %v1410
    %v1481 = vunpack.c.h.b16 %v1410
    %v1482 = vunpack.c.l.b16 %v1411
    %v1483 = vunpack.c.h.b16 %v1411
    %v1484 = vunpack.c.l.b16 %v1412
    %v1485 = vunpack.c.h.b16 %v1412
    %v1486 = vunpack.c.l.b16 %v1413
    %v1487 = vunpack.c.h.b16 %v1413
    %v1488 = vunpack.c.l.b16 %v1414
    %v1489 = vunpack.c.h.b16 %v1414
    %v1490 = vunpack.c.l.b16 %v1415
    %v1491 = vunpack.c.h.b16 %v1415
    %v1492 = vunpack.c.l.b16 %v1416
    %v1493 = vunpack.c.h.b16 %v1416
    %v1494 = vunpack.c.l.b16 %v1417
    %v1495 = vunpack.c.h.b16 %v1417
    %v1496 = vunpack.c.l.b16 %v1418
    %v1497 = vunpack.c.h.b16 %v1418
    %v1498 = vunpack.c.l.b16 %v1419
    %v1499 = vunpack.c.h.b16 %v1419
    %v1500 = vunpack.c.l.b16 %v1420
    %v1501 = vunpack.c.h.b16 %v1420
    %v1502 = vunpack.c.l.b16 %v1421
    %v1503 = vunpack.c.h.b16 %v1421
    %v1504 = vunpack.c.l.b16 %v1422
    %v1505 = vunpack.c.h.b16 %v1422
    %v1506 = vunpack.c.l.b16 %v1423
    %v1507 = vunpack.c.h.b16 %v1423
    %v1508 = vunpack.c.l.b16 %v1424
    %v1509 = vunpack.c.h.b16 %v1424
    %v1510 = vunpack.c.l.b16 %v1425
    %v1511 = vunpack.c.h.b16 %v1425
    %v1512 = vunpack.c.l.b16 %v1426
    %v1513 = vunpack.c.h.b16 %v1426
    %v1514 = vunpack.c.l.b16 %v1427
    %v1515 = vunpack.c.h.b16 %v1427
    %v1516 = vunpack.c.l.b16 %v1428
    %v1517 = vunpack.c.h.b16 %v1428
    %v1518 = vunpack.c.l.b16 %v1429
    %v1519 = vunpack.c.h.b16 %v1429
    %v1520 = vunpack.c.l.b16 %v1430
    %v1521 = vunpack.c.h.b16 %v1430
    %v1522 = vunpack.c.l.b16 %v1431
    %v1523 = vunpack.c.h.b16 %v1431
    %v1524 = vunpack.c.l.b16 %v1432
    %v1525 = vunpack.c.h.b16 %v1432
    %v1526 = vunpack.c.l.b16 %v1433
    %v1527 = vunpack.c.h.b16 %v1433
    %v1528 = vunpack.c.l.b16 %v1434
    %v1529 = vunpack.c.h.b16 %v1434
    %v1530 = vunpack.c.l.b16 %v1435
    %v1531 = vunpack.c.h.b16 %v1435
    %v1532 = vpack.c.b16 %v1470, %v1468
    %v1533 = vpack.c.b16 %v1471, %v1469
    %v1534 = vpack.c.b16 %v1474, %v1472
    %v1535 = vpack.c.b16 %v1475, %v1473
    %v1536 = vpack.c.b16 %v1478, %v1476
    %v1537 = vpack.c.b16 %v1479, %v1477
    %v1538 = vpack.c.b16 %v1482, %v1480
    %v1539 = vpack.c.b16 %v1483, %v1481
    %v1540 = vpack.c.b16 %v1486, %v1484
    %v1541 = vpack.c.b16 %v1487, %v1485
    %v1542 = vpack.c.b16 %v1490, %v1488
    %v1543 = vpack.c.b16 %v1491, %v1489
    %v1544 = vpack.c.b16 %v1494, %v1492
    %v1545 = vpack.c.b16 %v1495, %v1493
    %v1546 = vpack.c.b16 %v1498, %v1496
    %v1547 = vpack.c.b16 %v1499, %v1497
    %v1548 = vpack.c.b16 %v1502, %v1500
    %v1549 = vpack.c.b16 %v1503, %v1501
    %v1550 = vpack.c.b16 %v1506, %v1504
    %v1551 = vpack.c.b16 %v1507, %v1505
    %v1552 = vpack.c.b16 %v1510, %v1508
    %v1553 = vpack.c.b16 %v1511, %v1509
    %v1554 = vpack.c.b16 %v1514, %v1512
    %v1555 = vpack.c.b16 %v1515, %v1513
    %v1556 = vpack.c.b16 %v1518, %v1516
    %v1557 = vpack.c.b16 %v1519, %v1517
    %v1558 = vpack.c.b16 %v1522, %v1520
    %v1559 = vpack.c.b16 %v1523, %v1521
    %v1560 = vpack.c.b16 %v1526, %v1524
    %v1561 = vpack.c.b16 %v1527, %v1525
    %v1562 = vpack.c.b16 %v1530, %v1528
    %v1563 = vpack.c.b16 %v1531, %v1529
    %1596 = vmatprep.subr.bf16.mxu0 %v1547
    %1597 = vmatpush1.bf16.msra.mxu0 %v1546
    %1598 = vmatprep.subr.bf16.mxu0 %v1545
    %1599 = vmatpush1.bf16.msra.mxu0 %v1544
    %1600 = vmatprep.subr.bf16.mxu0 %v1543
    %1601 = vmatpush1.bf16.msra.mxu0 %v1542
    %1602 = vmatprep.subr.bf16.mxu0 %v1541
    %1603 = vmatpush1.bf16.msra.mxu0 %v1540
    %1604 = vmatprep.subr.bf16.mxu0 %v1539
    %1605 = vmatpush1.bf16.msra.mxu0 %v1538
    %1606 = vmatprep.subr.bf16.mxu0 %v1537
    %1607 = vmatpush1.bf16.msra.mxu0 %v1536
    %1608 = vmatprep.subr.bf16.mxu0 %v1535
    %1609 = vmatpush1.bf16.msra.mxu0 %v1534
    %1610 = vmatprep.subr.bf16.mxu0 %v1533
    %1611 = vmatpush1.bf16.msra.mxu0 %v1532
    %1612 = vmatprep.subr.bf16.mxu0 %v1563
    %1613 = vmatpush2.bf16.msra.mxu0 %v1562
    %1614 = vmatprep.subr.bf16.mxu0 %v1561
    %1615 = vmatpush2.bf16.msra.mxu0 %v1560
    %1616 = vmatprep.subr.bf16.mxu0 %v1559
    %1617 = vmatpush2.bf16.msra.mxu0 %v1558
    %1618 = vmatprep.subr.bf16.mxu0 %v1557
    %1619 = vmatpush2.bf16.msra.mxu0 %v1556
    %1620 = vmatprep.subr.bf16.mxu0 %v1555
    %1621 = vmatpush2.bf16.msra.mxu0 %v1554
    %1622 = vmatprep.subr.bf16.mxu0 %v1553
    %1623 = vmatpush2.bf16.msra.mxu0 %v1552
    %1624 = vmatprep.subr.bf16.mxu0 %v1551
    %1625 = vmatpush2.bf16.msra.mxu0 %v1550
    %1626 = vmatprep.subr.bf16.mxu0 %v1549
    %1627 = vmatpush2.bf16.msra.mxu0 %v1548
    %1628 = vmatprep.mubr.bf16.mxu0 0
    %1629 = vmatmul.mubr.bf16.gmra.mxu0 0
    %v1630 = vpop.f32.mrf.mxu0
    %v1631 = vadd.f32 0.0, %v1630
    %v1632 = vpop.f32.mrf.mxu0
    %v1633 = vadd.f32 0.0, %v1632
    %v1634 = vpop.f32.mrf.mxu0
    %v1635 = vpop.f32.mrf.mxu0
    %1636 = vdwg.mxu0
    %v1637 = vadd.f32 %v932, %v1357
    %v1638 = vadd.f32 %v933, %v1359
    %v1639 = vxor.u32 %v1637, 2147483648
    %v1640 = vxor.u32 %v1638, 2147483648
    %v1641 = vmul.f32 %v1639, 1.442695
    %v1642 = vpow.pop %v1641
    %v1643 = vmul.f32 %v1640, 1.442695
    %v1644 = vpow.pop %v1643
    %v1645 = vadd.f32 %v1642, 1.0
    %v1646 = vadd.f32 %v1644, 1.0
    %v1647 = vrcp.pop %v1645
    %v1648 = vmul.f32 1.0, %v1647
    %v1649 = vrcp.pop %v1646
    %v1650 = vmul.f32 1.0, %v1649
    %v1651 = vadd.f32 %v1398, %v913
    %v1652 = vadd.f32 %v1400, %v917
    %v1653 = vmul.f32 %v1648, %v1651
    %v1654 = vmul.f32 %v1650, %v1652
    %v1655 = vadd.f32 %v934, %v1653
    %v1656 = vadd.f32 %v935, %v1654
    %v1657 = vtanh.pop %v1655
    %v1658 = vtanh.pop %v1656
    %v1659 = vadd.f32 %v936, %v1631
    %v1660 = vadd.f32 %v937, %v1633
    %v1661 = vxor.u32 %v1659, 2147483648
    %v1662 = vxor.u32 %v1660, 2147483648
    %v1663 = vmul.f32 %v1661, 1.442695
    %v1664 = vpow.pop %v1663
    %v1665 = vmul.f32 %v1662, 1.442695
    %v1666 = vpow.pop %v1665
    %v1667 = vadd.f32 %v1664, 1.0
    %v1668 = vadd.f32 %v1666, 1.0
    %v1669 = vrcp.pop %v1667
    %v1670 = vmul.f32 1.0, %v1669
    %v1671 = vrcp.pop %v1668
    %v1672 = vmul.f32 1.0, %v1671
    %v1673 = vsub.f32 1.0, %v1670
    %v1674 = vsub.f32 1.0, %v1672
    %v1675 = vmul.f32 %v1673, %v1657
    %v1676 = vmul.f32 %v1674, %v1658
    %v1677 = vmul.f32 %v1670, 0.0
    %v1678 = vmul.f32 %v1672, 0.0
    %v1679 = vadd.f32 %v1675, %v1677
    %v1680 = vadd.f32 %v1676, %v1678
    %v1681 = vld [vmem:[#allocation2 + $0x30] sm:$0xff]
    %v1682 = vld [vmem:[#allocation2 + $0x38] sm:$0xff]
    %v1683 = vld [vmem:[#allocation2 + $0x40] sm:$0xff]
    %v1684 = vld [vmem:[#allocation2 + $0x48] sm:$0xff]
    %v1685 = vld [vmem:[#allocation2 + $0x50] sm:$0xff]
    %v1686 = vld [vmem:[#allocation2 + $0x58] sm:$0xff]
    %v1687 = vpack.c.bf16 %v1679, %v1679
    %v1688 = vpack.c.bf16 %v1680, %v1680
    %1689 = vmatprep.subr.bf16.mxu0 %v1223
    %1690 = vmatpush1.bf16.msra.mxu0 %v1222
    %1691 = vmatprep.subr.bf16.mxu0 %v1219
    %1692 = vmatpush1.bf16.msra.mxu0 %v1218
    %1693 = vmatprep.subr.bf16.mxu0 %v1215
    %1694 = vmatpush1.bf16.msra.mxu0 %v1214
    %1695 = vmatprep.subr.bf16.mxu0 %v1211
    %1696 = vmatpush1.bf16.msra.mxu0 %v1210
    %1697 = vmatprep.subr.bf16.mxu0 %v1207
    %1698 = vmatpush1.bf16.msra.mxu0 %v1206
    %1699 = vmatprep.subr.bf16.mxu0 %v1203
    %1700 = vmatpush1.bf16.msra.mxu0 %v1202
    %1701 = vmatprep.subr.bf16.mxu0 %v1199
    %1702 = vmatpush1.bf16.msra.mxu0 %v1198
    %1703 = vmatprep.subr.bf16.mxu0 %v1195
    %1704 = vmatpush1.bf16.msra.mxu0 %v1194
    %1705 = vmatprep.subr.bf16.mxu0 %v1255
    %1706 = vmatpush2.bf16.msra.mxu0 %v1254
    %1707 = vmatprep.subr.bf16.mxu0 %v1251
    %1708 = vmatpush2.bf16.msra.mxu0 %v1250
    %1709 = vmatprep.subr.bf16.mxu0 %v1247
    %1710 = vmatpush2.bf16.msra.mxu0 %v1246
    %1711 = vmatprep.subr.bf16.mxu0 %v1243
    %1712 = vmatpush2.bf16.msra.mxu0 %v1242
    %1713 = vmatprep.subr.bf16.mxu0 %v1239
    %1714 = vmatpush2.bf16.msra.mxu0 %v1238
    %1715 = vmatprep.subr.bf16.mxu0 %v1235
    %1716 = vmatpush2.bf16.msra.mxu0 %v1234
    %1717 = vmatprep.subr.bf16.mxu0 %v1231
    %1718 = vmatpush2.bf16.msra.mxu0 %v1230
    %1719 = vmatprep.subr.bf16.mxu0 %v1227
    %1720 = vmatpush2.bf16.msra.mxu0 %v1226
    %1721 = vmatprep.mubr.bf16.mxu0 %v1688
    %1722 = vmatmul.mubr.bf16.gmra.mxu0 %v1687
    %v1723 = vpop.f32.mrf.mxu0
    %v1724 = vadd.f32 0.0, %v1723
    %v1725 = vpop.f32.mrf.mxu0
    %v1726 = vadd.f32 0.0, %v1725
    %v1727 = vpop.f32.mrf.mxu0
    %v1728 = vpop.f32.mrf.mxu0
    %1729 = vdwg.mxu0
    %1730 = vmatprep.subr.bf16.mxu0 %v1225
    %1731 = vmatpush1.bf16.msra.mxu0 %v1224
    %1732 = vmatprep.subr.bf16.mxu0 %v1221
    %1733 = vmatpush1.bf16.msra.mxu0 %v1220
    %1734 = vmatprep.subr.bf16.mxu0 %v1217
    %1735 = vmatpush1.bf16.msra.mxu0 %v1216
    %1736 = vmatprep.subr.bf16.mxu0 %v1213
    %1737 = vmatpush1.bf16.msra.mxu0 %v1212
    %1738 = vmatprep.subr.bf16.mxu0 %v1209
    %1739 = vmatpush1.bf16.msra.mxu0 %v1208
    %1740 = vmatprep.subr.bf16.mxu0 %v1205
    %1741 = vmatpush1.bf16.msra.mxu0 %v1204
    %1742 = vmatprep.subr.bf16.mxu0 %v1201
    %1743 = vmatpush1.bf16.msra.mxu0 %v1200
    %1744 = vmatprep.subr.bf16.mxu0 %v1197
    %1745 = vmatpush1.bf16.msra.mxu0 %v1196
    %1746 = vmatprep.subr.bf16.mxu0 %v1257
    %1747 = vmatpush2.bf16.msra.mxu0 %v1256
    %1748 = vmatprep.subr.bf16.mxu0 %v1253
    %1749 = vmatpush2.bf16.msra.mxu0 %v1252
    %1750 = vmatprep.subr.bf16.mxu0 %v1249
    %1751 = vmatpush2.bf16.msra.mxu0 %v1248
    %1752 = vmatprep.subr.bf16.mxu0 %v1245
    %1753 = vmatpush2.bf16.msra.mxu0 %v1244
    %1754 = vmatprep.subr.bf16.mxu0 %v1241
    %1755 = vmatpush2.bf16.msra.mxu0 %v1240
    %1756 = vmatprep.subr.bf16.mxu0 %v1237
    %1757 = vmatpush2.bf16.msra.mxu0 %v1236
    %1758 = vmatprep.subr.bf16.mxu0 %v1233
    %1759 = vmatpush2.bf16.msra.mxu0 %v1232
    %1760 = vmatprep.subr.bf16.mxu0 %v1229
    %1761 = vmatpush2.bf16.msra.mxu0 %v1228
    %1762 = vmatprep.mubr.bf16.mxu0 %v1688
    %1763 = vmatmul.mubr.bf16.gmra.mxu0 %v1687
    %v1764 = vpop.f32.mrf.mxu0
    %v1765 = vadd.f32 0.0, %v1764
    %v1766 = vpop.f32.mrf.mxu0
    %v1767 = vadd.f32 0.0, %v1766
    %v1768 = vpop.f32.mrf.mxu0
    %v1769 = vpop.f32.mrf.mxu0
    %1770 = vdwg.mxu0
    %1771 = vmatprep.subr.bf16.mxu0 %v1547
    %1772 = vmatpush1.bf16.msra.mxu0 %v1546
    %1773 = vmatprep.subr.bf16.mxu0 %v1545
    %1774 = vmatpush1.bf16.msra.mxu0 %v1544
    %1775 = vmatprep.subr.bf16.mxu0 %v1543
    %1776 = vmatpush1.bf16.msra.mxu0 %v1542
    %1777 = vmatprep.subr.bf16.mxu0 %v1541
    %1778 = vmatpush1.bf16.msra.mxu0 %v1540
    %1779 = vmatprep.subr.bf16.mxu0 %v1539
    %1780 = vmatpush1.bf16.msra.mxu0 %v1538
    %1781 = vmatprep.subr.bf16.mxu0 %v1537
    %1782 = vmatpush1.bf16.msra.mxu0 %v1536
    %1783 = vmatprep.subr.bf16.mxu0 %v1535
    %1784 = vmatpush1.bf16.msra.mxu0 %v1534
    %1785 = vmatprep.subr.bf16.mxu0 %v1533
    %1786 = vmatpush1.bf16.msra.mxu0 %v1532
    %1787 = vmatprep.subr.bf16.mxu0 %v1563
    %1788 = vmatpush2.bf16.msra.mxu0 %v1562
    %1789 = vmatprep.subr.bf16.mxu0 %v1561
    %1790 = vmatpush2.bf16.msra.mxu0 %v1560
    %1791 = vmatprep.subr.bf16.mxu0 %v1559
    %1792 = vmatpush2.bf16.msra.mxu0 %v1558
    %1793 = vmatprep.subr.bf16.mxu0 %v1557
    %1794 = vmatpush2.bf16.msra.mxu0 %v1556
    %1795 = vmatprep.subr.bf16.mxu0 %v1555
    %1796 = vmatpush2.bf16.msra.mxu0 %v1554
    %1797 = vmatprep.subr.bf16.mxu0 %v1553
    %1798 = vmatpush2.bf16.msra.mxu0 %v1552
    %1799 = vmatprep.subr.bf16.mxu0 %v1551
    %1800 = vmatpush2.bf16.msra.mxu0 %v1550
    %1801 = vmatprep.subr.bf16.mxu0 %v1549
    %1802 = vmatpush2.bf16.msra.mxu0 %v1548
    %1803 = vmatprep.mubr.bf16.mxu0 %v1688
    %1804 = vmatmul.mubr.bf16.gmra.mxu0 %v1687
    %v1805 = vpop.f32.mrf.mxu0
    %v1806 = vadd.f32 0.0, %v1805
    %v1807 = vpop.f32.mrf.mxu0
    %v1808 = vadd.f32 0.0, %v1807
    %v1809 = vpop.f32.mrf.mxu0
    %v1810 = vpop.f32.mrf.mxu0
    %1811 = vdwg.mxu0
    %v1812 = vadd.f32 %v1681, %v1724
    %v1813 = vadd.f32 %v1682, %v1726
    %v1814 = vxor.u32 %v1812, 2147483648
    %v1815 = vxor.u32 %v1813, 2147483648
    %v1816 = vmul.f32 %v1814, 1.442695
    %v1817 = vpow.pop %v1816
    %v1818 = vmul.f32 %v1815, 1.442695
    %v1819 = vpow.pop %v1818
    %v1820 = vadd.f32 %v1817, 1.0
    %v1821 = vadd.f32 %v1819, 1.0
    %v1822 = vrcp.pop %v1820
    %v1823 = vmul.f32 1.0, %v1822
    %v1824 = vrcp.pop %v1821
    %v1825 = vmul.f32 1.0, %v1824
    %v1826 = vadd.f32 %v1765, %v913
    %v1827 = vadd.f32 %v1767, %v917
    %v1828 = vmul.f32 %v1823, %v1826
    %v1829 = vmul.f32 %v1825, %v1827
    %v1830 = vadd.f32 %v1683, %v1828
    %v1831 = vadd.f32 %v1684, %v1829
    %v1832 = vtanh.pop %v1830
    %v1833 = vtanh.pop %v1831
    %v1834 = vadd.f32 %v1685, %v1806
    %v1835 = vadd.f32 %v1686, %v1808
    %v1836 = vxor.u32 %v1834, 2147483648
    %v1837 = vxor.u32 %v1835, 2147483648
    %v1838 = vmul.f32 %v1836, 1.442695
    %v1839 = vpow.pop %v1838
    %v1840 = vmul.f32 %v1837, 1.442695
    %v1841 = vpow.pop %v1840
    %v1842 = vadd.f32 %v1839, 1.0
    %v1843 = vadd.f32 %v1841, 1.0
    %v1844 = vrcp.pop %v1842
    %v1845 = vmul.f32 1.0, %v1844
    %v1846 = vrcp.pop %v1843
    %v1847 = vmul.f32 1.0, %v1846
    %v1848 = vsub.f32 1.0, %v1845
    %v1849 = vsub.f32 1.0, %v1847
    %v1850 = vmul.f32 %v1848, %v1832
    %v1851 = vmul.f32 %v1849, %v1833
    %v1852 = vmul.f32 %v1845, %v1679
    %v1853 = vmul.f32 %v1847, %v1680
    %v1854 = vadd.f32 %v1850, %v1852
    %v1855 = vadd.f32 %v1851, %v1853
    %v1856 = vld [vmem:[#allocation2 + $0x60] sm:$0xff]
    %v1857 = vld [vmem:[#allocation2 + $0x68] sm:$0xff]
    %v1858 = vld [vmem:[#allocation2 + $0x70] sm:$0xff]
    %v1859 = vld [vmem:[#allocation2 + $0x78] sm:$0xff]
    %v1860 = vld [vmem:[#allocation2 + $0x80] sm:$0xff]
    %v1861 = vld [vmem:[#allocation2 + $0x88] sm:$0xff]
    %v1862 = vpack.c.bf16 %v1854, %v1854
    %v1863 = vpack.c.bf16 %v1855, %v1855
    %1864 = vmatprep.subr.bf16.mxu0 %v1223
    %1865 = vmatpush1.bf16.msra.mxu0 %v1222
    %1866 = vmatprep.subr.bf16.mxu0 %v1219
    %1867 = vmatpush1.bf16.msra.mxu0 %v1218
    %1868 = vmatprep.subr.bf16.mxu0 %v1215
    %1869 = vmatpush1.bf16.msra.mxu0 %v1214
    %1870 = vmatprep.subr.bf16.mxu0 %v1211
    %1871 = vmatpush1.bf16.msra.mxu0 %v1210
    %1872 = vmatprep.subr.bf16.mxu0 %v1207
    %1873 = vmatpush1.bf16.msra.mxu0 %v1206
    %1874 = vmatprep.subr.bf16.mxu0 %v1203
    %1875 = vmatpush1.bf16.msra.mxu0 %v1202
    %1876 = vmatprep.subr.bf16.mxu0 %v1199
    %1877 = vmatpush1.bf16.msra.mxu0 %v1198
    %1878 = vmatprep.subr.bf16.mxu0 %v1195
    %1879 = vmatpush1.bf16.msra.mxu0 %v1194
    %1880 = vmatprep.subr.bf16.mxu0 %v1255
    %1881 = vmatpush2.bf16.msra.mxu0 %v1254
    %1882 = vmatprep.subr.bf16.mxu0 %v1251
    %1883 = vmatpush2.bf16.msra.mxu0 %v1250
    %1884 = vmatprep.subr.bf16.mxu0 %v1247
    %1885 = vmatpush2.bf16.msra.mxu0 %v1246
    %1886 = vmatprep.subr.bf16.mxu0 %v1243
    %1887 = vmatpush2.bf16.msra.mxu0 %v1242
    %1888 = vmatprep.subr.bf16.mxu0 %v1239
    %1889 = vmatpush2.bf16.msra.mxu0 %v1238
    %1890 = vmatprep.subr.bf16.mxu0 %v1235
    %1891 = vmatpush2.bf16.msra.mxu0 %v1234
    %1892 = vmatprep.subr.bf16.mxu0 %v1231
    %1893 = vmatpush2.bf16.msra.mxu0 %v1230
    %1894 = vmatprep.subr.bf16.mxu0 %v1227
    %1895 = vmatpush2.bf16.msra.mxu0 %v1226
    %1896 = vmatprep.mubr.bf16.mxu0 %v1863
    %1897 = vmatmul.mubr.bf16.gmra.mxu0 %v1862
    %v1898 = vpop.f32.mrf.mxu0
    %v1899 = vadd.f32 0.0, %v1898
    %v1900 = vpop.f32.mrf.mxu0
    %v1901 = vadd.f32 0.0, %v1900
    %v1902 = vpop.f32.mrf.mxu0
    %v1903 = vpop.f32.mrf.mxu0
    %1904 = vdwg.mxu0
    %1905 = vmatprep.subr.bf16.mxu0 %v1225
    %1906 = vmatpush1.bf16.msra.mxu0 %v1224
    %1907 = vmatprep.subr.bf16.mxu0 %v1221
    %1908 = vmatpush1.bf16.msra.mxu0 %v1220
    %1909 = vmatprep.subr.bf16.mxu0 %v1217
    %1910 = vmatpush1.bf16.msra.mxu0 %v1216
    %1911 = vmatprep.subr.bf16.mxu0 %v1213
    %1912 = vmatpush1.bf16.msra.mxu0 %v1212
    %1913 = vmatprep.subr.bf16.mxu0 %v1209
    %1914 = vmatpush1.bf16.msra.mxu0 %v1208
    %1915 = vmatprep.subr.bf16.mxu0 %v1205
    %1916 = vmatpush1.bf16.msra.mxu0 %v1204
    %1917 = vmatprep.subr.bf16.mxu0 %v1201
    %1918 = vmatpush1.bf16.msra.mxu0 %v1200
    %1919 = vmatprep.subr.bf16.mxu0 %v1197
    %1920 = vmatpush1.bf16.msra.mxu0 %v1196
    %1921 = vmatprep.subr.bf16.mxu0 %v1257
    %1922 = vmatpush2.bf16.msra.mxu0 %v1256
    %1923 = vmatprep.subr.bf16.mxu0 %v1253
    %1924 = vmatpush2.bf16.msra.mxu0 %v1252
    %1925 = vmatprep.subr.bf16.mxu0 %v1249
    %1926 = vmatpush2.bf16.msra.mxu0 %v1248
    %1927 = vmatprep.subr.bf16.mxu0 %v1245
    %1928 = vmatpush2.bf16.msra.mxu0 %v1244
    %1929 = vmatprep.subr.bf16.mxu0 %v1241
    %1930 = vmatpush2.bf16.msra.mxu0 %v1240
    %1931 = vmatprep.subr.bf16.mxu0 %v1237
    %1932 = vmatpush2.bf16.msra.mxu0 %v1236
    %1933 = vmatprep.subr.bf16.mxu0 %v1233
    %1934 = vmatpush2.bf16.msra.mxu0 %v1232
    %1935 = vmatprep.subr.bf16.mxu0 %v1229
    %1936 = vmatpush2.bf16.msra.mxu0 %v1228
    %1937 = vmatprep.mubr.bf16.mxu0 %v1863
    %1938 = vmatmul.mubr.bf16.gmra.mxu0 %v1862
    %v1939 = vpop.f32.mrf.mxu0
    %v1940 = vadd.f32 0.0, %v1939
    %v1941 = vpop.f32.mrf.mxu0
    %v1942 = vadd.f32 0.0, %v1941
    %v1943 = vpop.f32.mrf.mxu0
    %v1944 = vpop.f32.mrf.mxu0
    %1945 = vdwg.mxu0
    %1946 = vmatprep.subr.bf16.mxu0 %v1547
    %1947 = vmatpush1.bf16.msra.mxu0 %v1546
    %1948 = vmatprep.subr.bf16.mxu0 %v1545
    %1949 = vmatpush1.bf16.msra.mxu0 %v1544
    %1950 = vmatprep.subr.bf16.mxu0 %v1543
    %1951 = vmatpush1.bf16.msra.mxu0 %v1542
    %1952 = vmatprep.subr.bf16.mxu0 %v1541
    %1953 = vmatpush1.bf16.msra.mxu0 %v1540
    %1954 = vmatprep.subr.bf16.mxu0 %v1539
    %1955 = vmatpush1.bf16.msra.mxu0 %v1538
    %1956 = vmatprep.subr.bf16.mxu0 %v1537
    %1957 = vmatpush1.bf16.msra.mxu0 %v1536
    %1958 = vmatprep.subr.bf16.mxu0 %v1535
    %1959 = vmatpush1.bf16.msra.mxu0 %v1534
    %1960 = vmatprep.subr.bf16.mxu0 %v1533
    %1961 = vmatpush1.bf16.msra.mxu0 %v1532
    %1962 = vmatprep.subr.bf16.mxu0 %v1563
    %1963 = vmatpush2.bf16.msra.mxu0 %v1562
    %1964 = vmatprep.subr.bf16.mxu0 %v1561
    %1965 = vmatpush2.bf16.msra.mxu0 %v1560
    %1966 = vmatprep.subr.bf16.mxu0 %v1559
    %1967 = vmatpush2.bf16.msra.mxu0 %v1558
    %1968 = vmatprep.subr.bf16.mxu0 %v1557
    %1969 = vmatpush2.bf16.msra.mxu0 %v1556
    %1970 = vmatprep.subr.bf16.mxu0 %v1555
    %1971 = vmatpush2.bf16.msra.mxu0 %v1554
    %1972 = vmatprep.subr.bf16.mxu0 %v1553
    %1973 = vmatpush2.bf16.msra.mxu0 %v1552
    %1974 = vmatprep.subr.bf16.mxu0 %v1551
    %1975 = vmatpush2.bf16.msra.mxu0 %v1550
    %1976 = vmatprep.subr.bf16.mxu0 %v1549
    %1977 = vmatpush2.bf16.msra.mxu0 %v1548
    %1978 = vmatprep.mubr.bf16.mxu0 %v1863
    %1979 = vmatmul.mubr.bf16.gmra.mxu0 %v1862
    %v1980 = vpop.f32.mrf.mxu0
    %v1981 = vadd.f32 0.0, %v1980
    %v1982 = vpop.f32.mrf.mxu0
    %v1983 = vadd.f32 0.0, %v1982
    %v1984 = vpop.f32.mrf.mxu0
    %v1985 = vpop.f32.mrf.mxu0
    %1986 = vdwg.mxu0
    %v1987 = vadd.f32 %v1856, %v1899
    %v1988 = vadd.f32 %v1857, %v1901
    %v1989 = vxor.u32 %v1987, 2147483648
    %v1990 = vxor.u32 %v1988, 2147483648
    %v1991 = vmul.f32 %v1989, 1.442695
    %v1992 = vpow.pop %v1991
    %v1993 = vmul.f32 %v1990, 1.442695
    %v1994 = vpow.pop %v1993
    %v1995 = vadd.f32 %v1992, 1.0
    %v1996 = vadd.f32 %v1994, 1.0
    %v1997 = vrcp.pop %v1995
    %v1998 = vmul.f32 1.0, %v1997
    %v1999 = vrcp.pop %v1996
    %v2000 = vmul.f32 1.0, %v1999
    %v2001 = vadd.f32 %v1940, %v913
    %v2002 = vadd.f32 %v1942, %v917
    %v2003 = vmul.f32 %v1998, %v2001
    %v2004 = vmul.f32 %v2000, %v2002
    %v2005 = vadd.f32 %v1858, %v2003
    %v2006 = vadd.f32 %v1859, %v2004
    %v2007 = vtanh.pop %v2005
    %v2008 = vtanh.pop %v2006
    %v2009 = vadd.f32 %v1860, %v1981
    %v2010 = vadd.f32 %v1861, %v1983
    %v2011 = vxor.u32 %v2009, 2147483648
    %v2012 = vxor.u32 %v2010, 2147483648
    %v2013 = vmul.f32 %v2011, 1.442695
    %v2014 = vpow.pop %v2013
    %v2015 = vmul.f32 %v2012, 1.442695
    %v2016 = vpow.pop %v2015
    %v2017 = vadd.f32 %v2014, 1.0
    %v2018 = vadd.f32 %v2016, 1.0
    %v2019 = vrcp.pop %v2017
    %v2020 = vmul.f32 1.0, %v2019
    %v2021 = vrcp.pop %v2018
    %v2022 = vmul.f32 1.0, %v2021
    %v2023 = vsub.f32 1.0, %v2020
    %v2024 = vsub.f32 1.0, %v2022
    %v2025 = vmul.f32 %v2023, %v2007
    %v2026 = vmul.f32 %v2024, %v2008
    %v2027 = vmul.f32 %v2020, %v1854
    %v2028 = vmul.f32 %v2022, %v1855
    %v2029 = vadd.f32 %v2025, %v2027
    %v2030 = vadd.f32 %v2026, %v2028
    %v2031 = vld [vmem:[#allocation2 + $0x90] sm:$0xff]
    %v2032 = vld [vmem:[#allocation2 + $0x98] sm:$0xff]
    %v2033 = vld [vmem:[#allocation2 + $0xa0] sm:$0xff]
    %v2034 = vld [vmem:[#allocation2 + $0xa8] sm:$0xff]
    %v2035 = vld [vmem:[#allocation2 + $0xb0] sm:$0xff]
    %v2036 = vld [vmem:[#allocation2 + $0xb8] sm:$0xff]
    %v2037 = vpack.c.bf16 %v2029, %v2029
    %v2038 = vpack.c.bf16 %v2030, %v2030
    %2039 = vmatprep.subr.bf16.mxu0 %v1223
    %2040 = vmatpush1.bf16.msra.mxu0 %v1222
    %2041 = vmatprep.subr.bf16.mxu0 %v1219
    %2042 = vmatpush1.bf16.msra.mxu0 %v1218
    %2043 = vmatprep.subr.bf16.mxu0 %v1215
    %2044 = vmatpush1.bf16.msra.mxu0 %v1214
    %2045 = vmatprep.subr.bf16.mxu0 %v1211
    %2046 = vmatpush1.bf16.msra.mxu0 %v1210
    %2047 = vmatprep.subr.bf16.mxu0 %v1207
    %2048 = vmatpush1.bf16.msra.mxu0 %v1206
    %2049 = vmatprep.subr.bf16.mxu0 %v1203
    %2050 = vmatpush1.bf16.msra.mxu0 %v1202
    %2051 = vmatprep.subr.bf16.mxu0 %v1199
    %2052 = vmatpush1.bf16.msra.mxu0 %v1198
    %2053 = vmatprep.subr.bf16.mxu0 %v1195
    %2054 = vmatpush1.bf16.msra.mxu0 %v1194
    %2055 = vmatprep.subr.bf16.mxu0 %v1255
    %2056 = vmatpush2.bf16.msra.mxu0 %v1254
    %2057 = vmatprep.subr.bf16.mxu0 %v1251
    %2058 = vmatpush2.bf16.msra.mxu0 %v1250
    %2059 = vmatprep.subr.bf16.mxu0 %v1247
    %2060 = vmatpush2.bf16.msra.mxu0 %v1246
    %2061 = vmatprep.subr.bf16.mxu0 %v1243
    %2062 = vmatpush2.bf16.msra.mxu0 %v1242
    %2063 = vmatprep.subr.bf16.mxu0 %v1239
    %2064 = vmatpush2.bf16.msra.mxu0 %v1238
    %2065 = vmatprep.subr.bf16.mxu0 %v1235
    %2066 = vmatpush2.bf16.msra.mxu0 %v1234
    %2067 = vmatprep.subr.bf16.mxu0 %v1231
    %2068 = vmatpush2.bf16.msra.mxu0 %v1230
    %2069 = vmatprep.subr.bf16.mxu0 %v1227
    %2070 = vmatpush2.bf16.msra.mxu0 %v1226
    %2071 = vmatprep.mubr.bf16.mxu0 %v2038
    %2072 = vmatmul.mubr.bf16.gmra.mxu0 %v2037
    %v2073 = vpop.f32.mrf.mxu0
    %v2074 = vadd.f32 0.0, %v2073
    %v2075 = vpop.f32.mrf.mxu0
    %v2076 = vadd.f32 0.0, %v2075
    %v2077 = vpop.f32.mrf.mxu0
    %v2078 = vpop.f32.mrf.mxu0
    %2079 = vdwg.mxu0
    %2080 = vmatprep.subr.bf16.mxu0 %v1225
    %2081 = vmatpush1.bf16.msra.mxu0 %v1224
    %2082 = vmatprep.subr.bf16.mxu0 %v1221
    %2083 = vmatpush1.bf16.msra.mxu0 %v1220
    %2084 = vmatprep.subr.bf16.mxu0 %v1217
    %2085 = vmatpush1.bf16.msra.mxu0 %v1216
    %2086 = vmatprep.subr.bf16.mxu0 %v1213
    %2087 = vmatpush1.bf16.msra.mxu0 %v1212
    %2088 = vmatprep.subr.bf16.mxu0 %v1209
    %2089 = vmatpush1.bf16.msra.mxu0 %v1208
    %2090 = vmatprep.subr.bf16.mxu0 %v1205
    %2091 = vmatpush1.bf16.msra.mxu0 %v1204
    %2092 = vmatprep.subr.bf16.mxu0 %v1201
    %2093 = vmatpush1.bf16.msra.mxu0 %v1200
    %2094 = vmatprep.subr.bf16.mxu0 %v1197
    %2095 = vmatpush1.bf16.msra.mxu0 %v1196
    %2096 = vmatprep.subr.bf16.mxu0 %v1257
    %2097 = vmatpush2.bf16.msra.mxu0 %v1256
    %2098 = vmatprep.subr.bf16.mxu0 %v1253
    %2099 = vmatpush2.bf16.msra.mxu0 %v1252
    %2100 = vmatprep.subr.bf16.mxu0 %v1249
    %2101 = vmatpush2.bf16.msra.mxu0 %v1248
    %2102 = vmatprep.subr.bf16.mxu0 %v1245
    %2103 = vmatpush2.bf16.msra.mxu0 %v1244
    %2104 = vmatprep.subr.bf16.mxu0 %v1241
    %2105 = vmatpush2.bf16.msra.mxu0 %v1240
    %2106 = vmatprep.subr.bf16.mxu0 %v1237
    %2107 = vmatpush2.bf16.msra.mxu0 %v1236
    %2108 = vmatprep.subr.bf16.mxu0 %v1233
    %2109 = vmatpush2.bf16.msra.mxu0 %v1232
    %2110 = vmatprep.subr.bf16.mxu0 %v1229
    %2111 = vmatpush2.bf16.msra.mxu0 %v1228
    %2112 = vmatprep.mubr.bf16.mxu0 %v2038
    %2113 = vmatmul.mubr.bf16.gmra.mxu0 %v2037
    %v2114 = vpop.f32.mrf.mxu0
    %v2115 = vadd.f32 0.0, %v2114
    %v2116 = vpop.f32.mrf.mxu0
    %v2117 = vadd.f32 0.0, %v2116
    %v2118 = vpop.f32.mrf.mxu0
    %v2119 = vpop.f32.mrf.mxu0
    %2120 = vdwg.mxu0
    %2121 = vmatprep.subr.bf16.mxu0 %v1547
    %2122 = vmatpush1.bf16.msra.mxu0 %v1546
    %2123 = vmatprep.subr.bf16.mxu0 %v1545
    %2124 = vmatpush1.bf16.msra.mxu0 %v1544
    %2125 = vmatprep.subr.bf16.mxu0 %v1543
    %2126 = vmatpush1.bf16.msra.mxu0 %v1542
    %2127 = vmatprep.subr.bf16.mxu0 %v1541
    %2128 = vmatpush1.bf16.msra.mxu0 %v1540
    %2129 = vmatprep.subr.bf16.mxu0 %v1539
    %2130 = vmatpush1.bf16.msra.mxu0 %v1538
    %2131 = vmatprep.subr.bf16.mxu0 %v1537
    %2132 = vmatpush1.bf16.msra.mxu0 %v1536
    %2133 = vmatprep.subr.bf16.mxu0 %v1535
    %2134 = vmatpush1.bf16.msra.mxu0 %v1534
    %2135 = vmatprep.subr.bf16.mxu0 %v1533
    %2136 = vmatpush1.bf16.msra.mxu0 %v1532
    %2137 = vmatprep.subr.bf16.mxu0 %v1563
    %2138 = vmatpush2.bf16.msra.mxu0 %v1562
    %2139 = vmatprep.subr.bf16.mxu0 %v1561
    %2140 = vmatpush2.bf16.msra.mxu0 %v1560
    %2141 = vmatprep.subr.bf16.mxu0 %v1559
    %2142 = vmatpush2.bf16.msra.mxu0 %v1558
    %2143 = vmatprep.subr.bf16.mxu0 %v1557
    %2144 = vmatpush2.bf16.msra.mxu0 %v1556
    %2145 = vmatprep.subr.bf16.mxu0 %v1555
    %2146 = vmatpush2.bf16.msra.mxu0 %v1554
    %2147 = vmatprep.subr.bf16.mxu0 %v1553
    %2148 = vmatpush2.bf16.msra.mxu0 %v1552
    %2149 = vmatprep.subr.bf16.mxu0 %v1551
    %2150 = vmatpush2.bf16.msra.mxu0 %v1550
    %2151 = vmatprep.subr.bf16.mxu0 %v1549
    %2152 = vmatpush2.bf16.msra.mxu0 %v1548
    %2153 = vmatprep.mubr.bf16.mxu0 %v2038
    %2154 = vmatmul.mubr.bf16.gmra.mxu0 %v2037
    %v2155 = vpop.f32.mrf.mxu0
    %v2156 = vadd.f32 0.0, %v2155
    %v2157 = vpop.f32.mrf.mxu0
    %v2158 = vadd.f32 0.0, %v2157
    %v2159 = vpop.f32.mrf.mxu0
    %v2160 = vpop.f32.mrf.mxu0
    %2161 = vdwg.mxu0
    %v2162 = vadd.f32 %v2031, %v2074
    %v2163 = vadd.f32 %v2032, %v2076
    %v2164 = vxor.u32 %v2162, 2147483648
    %v2165 = vxor.u32 %v2163, 2147483648
    %v2166 = vmul.f32 %v2164, 1.442695
    %v2167 = vpow.pop %v2166
    %v2168 = vmul.f32 %v2165, 1.442695
    %v2169 = vpow.pop %v2168
    %v2170 = vadd.f32 %v2167, 1.0
    %v2171 = vadd.f32 %v2169, 1.0
    %v2172 = vrcp.pop %v2170
    %v2173 = vmul.f32 1.0, %v2172
    %v2174 = vrcp.pop %v2171
    %v2175 = vmul.f32 1.0, %v2174
    %v2176 = vadd.f32 %v2115, %v913
    %v2177 = vadd.f32 %v2117, %v917
    %v2178 = vmul.f32 %v2173, %v2176
    %v2179 = vmul.f32 %v2175, %v2177
    %v2180 = vadd.f32 %v2033, %v2178
    %v2181 = vadd.f32 %v2034, %v2179
    %v2182 = vtanh.pop %v2180
    %v2183 = vtanh.pop %v2181
    %v2184 = vadd.f32 %v2035, %v2156
    %v2185 = vadd.f32 %v2036, %v2158
    %v2186 = vxor.u32 %v2184, 2147483648
    %v2187 = vxor.u32 %v2185, 2147483648
    %v2188 = vmul.f32 %v2186, 1.442695
    %v2189 = vpow.pop %v2188
    %v2190 = vmul.f32 %v2187, 1.442695
    %v2191 = vpow.pop %v2190
    %v2192 = vadd.f32 %v2189, 1.0
    %v2193 = vadd.f32 %v2191, 1.0
    %v2194 = vrcp.pop %v2192
    %v2195 = vmul.f32 1.0, %v2194
    %v2196 = vrcp.pop %v2193
    %v2197 = vmul.f32 1.0, %v2196
    %v2198 = vsub.f32 1.0, %v2195
    %v2199 = vsub.f32 1.0, %v2197
    %v2200 = vmul.f32 %v2198, %v2182
    %v2201 = vmul.f32 %v2199, %v2183
    %v2202 = vmul.f32 %v2195, %v2029
    %v2203 = vmul.f32 %v2197, %v2030
    %v2204 = vadd.f32 %v2200, %v2202
    %v2205 = vadd.f32 %v2201, %v2203
    %v2206 = vld [vmem:[#allocation2 + $0xc0] sm:$0xff]
    %v2207 = vld [vmem:[#allocation2 + $0xc8] sm:$0xff]
    %v2208 = vld [vmem:[#allocation2 + $0xd0] sm:$0xff]
    %v2209 = vld [vmem:[#allocation2 + $0xd8] sm:$0xff]
    %v2210 = vld [vmem:[#allocation2 + $0xe0] sm:$0xff]
    %v2211 = vld [vmem:[#allocation2 + $0xe8] sm:$0xff]
    %v2212 = vpack.c.bf16 %v2204, %v2204
    %v2213 = vpack.c.bf16 %v2205, %v2205
    %2214 = vmatprep.subr.bf16.mxu0 %v1223
    %2215 = vmatpush1.bf16.msra.mxu0 %v1222
    %2216 = vmatprep.subr.bf16.mxu0 %v1219
    %2217 = vmatpush1.bf16.msra.mxu0 %v1218
    %2218 = vmatprep.subr.bf16.mxu0 %v1215
    %2219 = vmatpush1.bf16.msra.mxu0 %v1214
    %2220 = vmatprep.subr.bf16.mxu0 %v1211
    %2221 = vmatpush1.bf16.msra.mxu0 %v1210
    %2222 = vmatprep.subr.bf16.mxu0 %v1207
    %2223 = vmatpush1.bf16.msra.mxu0 %v1206
    %2224 = vmatprep.subr.bf16.mxu0 %v1203
    %2225 = vmatpush1.bf16.msra.mxu0 %v1202
    %2226 = vmatprep.subr.bf16.mxu0 %v1199
    %2227 = vmatpush1.bf16.msra.mxu0 %v1198
    %2228 = vmatprep.subr.bf16.mxu0 %v1195
    %2229 = vmatpush1.bf16.msra.mxu0 %v1194
    %2230 = vmatprep.subr.bf16.mxu0 %v1255
    %2231 = vmatpush2.bf16.msra.mxu0 %v1254
    %2232 = vmatprep.subr.bf16.mxu0 %v1251
    %2233 = vmatpush2.bf16.msra.mxu0 %v1250
    %2234 = vmatprep.subr.bf16.mxu0 %v1247
    %2235 = vmatpush2.bf16.msra.mxu0 %v1246
    %2236 = vmatprep.subr.bf16.mxu0 %v1243
    %2237 = vmatpush2.bf16.msra.mxu0 %v1242
    %2238 = vmatprep.subr.bf16.mxu0 %v1239
    %2239 = vmatpush2.bf16.msra.mxu0 %v1238
    %2240 = vmatprep.subr.bf16.mxu0 %v1235
    %2241 = vmatpush2.bf16.msra.mxu0 %v1234
    %2242 = vmatprep.subr.bf16.mxu0 %v1231
    %2243 = vmatpush2.bf16.msra.mxu0 %v1230
    %2244 = vmatprep.subr.bf16.mxu0 %v1227
    %2245 = vmatpush2.bf16.msra.mxu0 %v1226
    %2246 = vmatprep.mubr.bf16.mxu0 %v2213
    %2247 = vmatmul.mubr.bf16.gmra.mxu0 %v2212
    %v2248 = vpop.f32.mrf.mxu0
    %v2249 = vadd.f32 0.0, %v2248
    %v2250 = vpop.f32.mrf.mxu0
    %v2251 = vadd.f32 0.0, %v2250
    %v2252 = vpop.f32.mrf.mxu0
    %v2253 = vpop.f32.mrf.mxu0
    %2254 = vdwg.mxu0
    %2255 = vmatprep.subr.bf16.mxu0 %v1225
    %2256 = vmatpush1.bf16.msra.mxu0 %v1224
    %2257 = vmatprep.subr.bf16.mxu0 %v1221
    %2258 = vmatpush1.bf16.msra.mxu0 %v1220
    %2259 = vmatprep.subr.bf16.mxu0 %v1217
    %2260 = vmatpush1.bf16.msra.mxu0 %v1216
    %2261 = vmatprep.subr.bf16.mxu0 %v1213
    %2262 = vmatpush1.bf16.msra.mxu0 %v1212
    %2263 = vmatprep.subr.bf16.mxu0 %v1209
    %2264 = vmatpush1.bf16.msra.mxu0 %v1208
    %2265 = vmatprep.subr.bf16.mxu0 %v1205
    %2266 = vmatpush1.bf16.msra.mxu0 %v1204
    %2267 = vmatprep.subr.bf16.mxu0 %v1201
    %2268 = vmatpush1.bf16.msra.mxu0 %v1200
    %2269 = vmatprep.subr.bf16.mxu0 %v1197
    %2270 = vmatpush1.bf16.msra.mxu0 %v1196
    %2271 = vmatprep.subr.bf16.mxu0 %v1257
    %2272 = vmatpush2.bf16.msra.mxu0 %v1256
    %2273 = vmatprep.subr.bf16.mxu0 %v1253
    %2274 = vmatpush2.bf16.msra.mxu0 %v1252
    %2275 = vmatprep.subr.bf16.mxu0 %v1249
    %2276 = vmatpush2.bf16.msra.mxu0 %v1248
    %2277 = vmatprep.subr.bf16.mxu0 %v1245
    %2278 = vmatpush2.bf16.msra.mxu0 %v1244
    %2279 = vmatprep.subr.bf16.mxu0 %v1241
    %2280 = vmatpush2.bf16.msra.mxu0 %v1240
    %2281 = vmatprep.subr.bf16.mxu0 %v1237
    %2282 = vmatpush2.bf16.msra.mxu0 %v1236
    %2283 = vmatprep.subr.bf16.mxu0 %v1233
    %2284 = vmatpush2.bf16.msra.mxu0 %v1232
    %2285 = vmatprep.subr.bf16.mxu0 %v1229
    %2286 = vmatpush2.bf16.msra.mxu0 %v1228
    %2287 = vmatprep.mubr.bf16.mxu0 %v2213
    %2288 = vmatmul.mubr.bf16.gmra.mxu0 %v2212
    %v2289 = vpop.f32.mrf.mxu0
    %v2290 = vadd.f32 0.0, %v2289
    %v2291 = vpop.f32.mrf.mxu0
    %v2292 = vadd.f32 0.0, %v2291
    %v2293 = vpop.f32.mrf.mxu0
    %v2294 = vpop.f32.mrf.mxu0
    %2295 = vdwg.mxu0
    %2296 = vmatprep.subr.bf16.mxu0 %v1547
    %2297 = vmatpush1.bf16.msra.mxu0 %v1546
    %2298 = vmatprep.subr.bf16.mxu0 %v1545
    %2299 = vmatpush1.bf16.msra.mxu0 %v1544
    %2300 = vmatprep.subr.bf16.mxu0 %v1543
    %2301 = vmatpush1.bf16.msra.mxu0 %v1542
    %2302 = vmatprep.subr.bf16.mxu0 %v1541
    %2303 = vmatpush1.bf16.msra.mxu0 %v1540
    %2304 = vmatprep.subr.bf16.mxu0 %v1539
    %2305 = vmatpush1.bf16.msra.mxu0 %v1538
    %2306 = vmatprep.subr.bf16.mxu0 %v1537
    %2307 = vmatpush1.bf16.msra.mxu0 %v1536
    %2308 = vmatprep.subr.bf16.mxu0 %v1535
    %2309 = vmatpush1.bf16.msra.mxu0 %v1534
    %2310 = vmatprep.subr.bf16.mxu0 %v1533
    %2311 = vmatpush1.bf16.msra.mxu0 %v1532
    %2312 = vmatprep.subr.bf16.mxu0 %v1563
    %2313 = vmatpush2.bf16.msra.mxu0 %v1562
    %2314 = vmatprep.subr.bf16.mxu0 %v1561
    %2315 = vmatpush2.bf16.msra.mxu0 %v1560
    %2316 = vmatprep.subr.bf16.mxu0 %v1559
    %2317 = vmatpush2.bf16.msra.mxu0 %v1558
    %2318 = vmatprep.subr.bf16.mxu0 %v1557
    %2319 = vmatpush2.bf16.msra.mxu0 %v1556
    %2320 = vmatprep.subr.bf16.mxu0 %v1555
    %2321 = vmatpush2.bf16.msra.mxu0 %v1554
    %2322 = vmatprep.subr.bf16.mxu0 %v1553
    %2323 = vmatpush2.bf16.msra.mxu0 %v1552
    %2324 = vmatprep.subr.bf16.mxu0 %v1551
    %2325 = vmatpush2.bf16.msra.mxu0 %v1550
    %2326 = vmatprep.subr.bf16.mxu0 %v1549
    %2327 = vmatpush2.bf16.msra.mxu0 %v1548
    %2328 = vmatprep.mubr.bf16.mxu0 %v2213
    %2329 = vmatmul.mubr.bf16.gmra.mxu0 %v2212
    %v2330 = vpop.f32.mrf.mxu0
    %v2331 = vadd.f32 0.0, %v2330
    %v2332 = vpop.f32.mrf.mxu0
    %v2333 = vadd.f32 0.0, %v2332
    %v2334 = vpop.f32.mrf.mxu0
    %v2335 = vpop.f32.mrf.mxu0
    %2336 = vdwg.mxu0
    %v2337 = vadd.f32 %v2206, %v2249
    %v2338 = vadd.f32 %v2207, %v2251
    %v2339 = vxor.u32 %v2337, 2147483648
    %v2340 = vxor.u32 %v2338, 2147483648
    %v2341 = vmul.f32 %v2339, 1.442695
    %v2342 = vpow.pop %v2341
    %v2343 = vmul.f32 %v2340, 1.442695
    %v2344 = vpow.pop %v2343
    %v2345 = vadd.f32 %v2342, 1.0
    %v2346 = vadd.f32 %v2344, 1.0
    %v2347 = vrcp.pop %v2345
    %v2348 = vmul.f32 1.0, %v2347
    %v2349 = vrcp.pop %v2346
    %v2350 = vmul.f32 1.0, %v2349
    %v2351 = vadd.f32 %v2290, %v913
    %v2352 = vadd.f32 %v2292, %v917
    %v2353 = vmul.f32 %v2348, %v2351
    %v2354 = vmul.f32 %v2350, %v2352
    %v2355 = vadd.f32 %v2208, %v2353
    %v2356 = vadd.f32 %v2209, %v2354
    %v2357 = vtanh.pop %v2355
    %v2358 = vtanh.pop %v2356
    %v2359 = vadd.f32 %v2210, %v2331
    %v2360 = vadd.f32 %v2211, %v2333
    %v2361 = vxor.u32 %v2359, 2147483648
    %v2362 = vxor.u32 %v2360, 2147483648
    %v2363 = vmul.f32 %v2361, 1.442695
    %v2364 = vpow.pop %v2363
    %v2365 = vmul.f32 %v2362, 1.442695
    %v2366 = vpow.pop %v2365
    %v2367 = vadd.f32 %v2364, 1.0
    %v2368 = vadd.f32 %v2366, 1.0
    %v2369 = vrcp.pop %v2367
    %v2370 = vmul.f32 1.0, %v2369
    %v2371 = vrcp.pop %v2368
    %v2372 = vmul.f32 1.0, %v2371
    %v2373 = vsub.f32 1.0, %v2370
    %v2374 = vsub.f32 1.0, %v2372
    %v2375 = vmul.f32 %v2373, %v2357
    %v2376 = vmul.f32 %v2374, %v2358
    %v2377 = vmul.f32 %v2370, %v2204
    %v2378 = vmul.f32 %v2372, %v2205
    %v2379 = vadd.f32 %v2375, %v2377
    %v2380 = vadd.f32 %v2376, %v2378
    %v2381 = vld [vmem:[#allocation2 + $0xf0] sm:$0xff]
    %v2382 = vld [vmem:[#allocation2 + $0xf8] sm:$0xff]
    %v2383 = vld [vmem:[#allocation2 + $0x100] sm:$0xff]
    %v2384 = vld [vmem:[#allocation2 + $0x108] sm:$0xff]
    %v2385 = vld [vmem:[#allocation2 + $0x110] sm:$0xff]
    %v2386 = vld [vmem:[#allocation2 + $0x118] sm:$0xff]
    %v2387 = vpack.c.bf16 %v2379, %v2379
    %v2388 = vpack.c.bf16 %v2380, %v2380
    %2389 = vmatprep.subr.bf16.mxu0 %v1223
    %2390 = vmatpush1.bf16.msra.mxu0 %v1222
    %2391 = vmatprep.subr.bf16.mxu0 %v1219
    %2392 = vmatpush1.bf16.msra.mxu0 %v1218
    %2393 = vmatprep.subr.bf16.mxu0 %v1215
    %2394 = vmatpush1.bf16.msra.mxu0 %v1214
    %2395 = vmatprep.subr.bf16.mxu0 %v1211
    %2396 = vmatpush1.bf16.msra.mxu0 %v1210
    %2397 = vmatprep.subr.bf16.mxu0 %v1207
    %2398 = vmatpush1.bf16.msra.mxu0 %v1206
    %2399 = vmatprep.subr.bf16.mxu0 %v1203
    %2400 = vmatpush1.bf16.msra.mxu0 %v1202
    %2401 = vmatprep.subr.bf16.mxu0 %v1199
    %2402 = vmatpush1.bf16.msra.mxu0 %v1198
    %2403 = vmatprep.subr.bf16.mxu0 %v1195
    %2404 = vmatpush1.bf16.msra.mxu0 %v1194
    %2405 = vmatprep.subr.bf16.mxu0 %v1255
    %2406 = vmatpush2.bf16.msra.mxu0 %v1254
    %2407 = vmatprep.subr.bf16.mxu0 %v1251
    %2408 = vmatpush2.bf16.msra.mxu0 %v1250
    %2409 = vmatprep.subr.bf16.mxu0 %v1247
    %2410 = vmatpush2.bf16.msra.mxu0 %v1246
    %2411 = vmatprep.subr.bf16.mxu0 %v1243
    %2412 = vmatpush2.bf16.msra.mxu0 %v1242
    %2413 = vmatprep.subr.bf16.mxu0 %v1239
    %2414 = vmatpush2.bf16.msra.mxu0 %v1238
    %2415 = vmatprep.subr.bf16.mxu0 %v1235
    %2416 = vmatpush2.bf16.msra.mxu0 %v1234
    %2417 = vmatprep.subr.bf16.mxu0 %v1231
    %2418 = vmatpush2.bf16.msra.mxu0 %v1230
    %2419 = vmatprep.subr.bf16.mxu0 %v1227
    %2420 = vmatpush2.bf16.msra.mxu0 %v1226
    %2421 = vmatprep.mubr.bf16.mxu0 %v2388
    %2422 = vmatmul.mubr.bf16.gmra.mxu0 %v2387
    %v2423 = vpop.f32.mrf.mxu0
    %v2424 = vadd.f32 0.0, %v2423
    %v2425 = vpop.f32.mrf.mxu0
    %v2426 = vadd.f32 0.0, %v2425
    %v2427 = vpop.f32.mrf.mxu0
    %v2428 = vpop.f32.mrf.mxu0
    %2429 = vdwg.mxu0
    %2430 = vmatprep.subr.bf16.mxu0 %v1225
    %2431 = vmatpush1.bf16.msra.mxu0 %v1224
    %2432 = vmatprep.subr.bf16.mxu0 %v1221
    %2433 = vmatpush1.bf16.msra.mxu0 %v1220
    %2434 = vmatprep.subr.bf16.mxu0 %v1217
    %2435 = vmatpush1.bf16.msra.mxu0 %v1216
    %2436 = vmatprep.subr.bf16.mxu0 %v1213
    %2437 = vmatpush1.bf16.msra.mxu0 %v1212
    %2438 = vmatprep.subr.bf16.mxu0 %v1209
    %2439 = vmatpush1.bf16.msra.mxu0 %v1208
    %2440 = vmatprep.subr.bf16.mxu0 %v1205
    %2441 = vmatpush1.bf16.msra.mxu0 %v1204
    %2442 = vmatprep.subr.bf16.mxu0 %v1201
    %2443 = vmatpush1.bf16.msra.mxu0 %v1200
    %2444 = vmatprep.subr.bf16.mxu0 %v1197
    %2445 = vmatpush1.bf16.msra.mxu0 %v1196
    %2446 = vmatprep.subr.bf16.mxu0 %v1257
    %2447 = vmatpush2.bf16.msra.mxu0 %v1256
    %2448 = vmatprep.subr.bf16.mxu0 %v1253
    %2449 = vmatpush2.bf16.msra.mxu0 %v1252
    %2450 = vmatprep.subr.bf16.mxu0 %v1249
    %2451 = vmatpush2.bf16.msra.mxu0 %v1248
    %2452 = vmatprep.subr.bf16.mxu0 %v1245
    %2453 = vmatpush2.bf16.msra.mxu0 %v1244
    %2454 = vmatprep.subr.bf16.mxu0 %v1241
    %2455 = vmatpush2.bf16.msra.mxu0 %v1240
    %2456 = vmatprep.subr.bf16.mxu0 %v1237
    %2457 = vmatpush2.bf16.msra.mxu0 %v1236
    %2458 = vmatprep.subr.bf16.mxu0 %v1233
    %2459 = vmatpush2.bf16.msra.mxu0 %v1232
    %2460 = vmatprep.subr.bf16.mxu0 %v1229
    %2461 = vmatpush2.bf16.msra.mxu0 %v1228
    %2462 = vmatprep.mubr.bf16.mxu0 %v2388
    %2463 = vmatmul.mubr.bf16.gmra.mxu0 %v2387
    %v2464 = vpop.f32.mrf.mxu0
    %v2465 = vadd.f32 0.0, %v2464
    %v2466 = vpop.f32.mrf.mxu0
    %v2467 = vadd.f32 0.0, %v2466
    %v2468 = vpop.f32.mrf.mxu0
    %v2469 = vpop.f32.mrf.mxu0
    %2470 = vdwg.mxu0
    %2471 = vmatprep.subr.bf16.mxu0 %v1547
    %2472 = vmatpush1.bf16.msra.mxu0 %v1546
    %2473 = vmatprep.subr.bf16.mxu0 %v1545
    %2474 = vmatpush1.bf16.msra.mxu0 %v1544
    %2475 = vmatprep.subr.bf16.mxu0 %v1543
    %2476 = vmatpush1.bf16.msra.mxu0 %v1542
    %2477 = vmatprep.subr.bf16.mxu0 %v1541
    %2478 = vmatpush1.bf16.msra.mxu0 %v1540
    %2479 = vmatprep.subr.bf16.mxu0 %v1539
    %2480 = vmatpush1.bf16.msra.mxu0 %v1538
    %2481 = vmatprep.subr.bf16.mxu0 %v1537
    %2482 = vmatpush1.bf16.msra.mxu0 %v1536
    %2483 = vmatprep.subr.bf16.mxu0 %v1535
    %2484 = vmatpush1.bf16.msra.mxu0 %v1534
    %2485 = vmatprep.subr.bf16.mxu0 %v1533
    %2486 = vmatpush1.bf16.msra.mxu0 %v1532
    %2487 = vmatprep.subr.bf16.mxu0 %v1563
    %2488 = vmatpush2.bf16.msra.mxu0 %v1562
    %2489 = vmatprep.subr.bf16.mxu0 %v1561
    %2490 = vmatpush2.bf16.msra.mxu0 %v1560
    %2491 = vmatprep.subr.bf16.mxu0 %v1559
    %2492 = vmatpush2.bf16.msra.mxu0 %v1558
    %2493 = vmatprep.subr.bf16.mxu0 %v1557
    %2494 = vmatpush2.bf16.msra.mxu0 %v1556
    %2495 = vmatprep.subr.bf16.mxu0 %v1555
    %2496 = vmatpush2.bf16.msra.mxu0 %v1554
    %2497 = vmatprep.subr.bf16.mxu0 %v1553
    %2498 = vmatpush2.bf16.msra.mxu0 %v1552
    %2499 = vmatprep.subr.bf16.mxu0 %v1551
    %2500 = vmatpush2.bf16.msra.mxu0 %v1550
    %2501 = vmatprep.subr.bf16.mxu0 %v1549
    %2502 = vmatpush2.bf16.msra.mxu0 %v1548
    %2503 = vmatprep.mubr.bf16.mxu0 %v2388
    %2504 = vmatmul.mubr.bf16.gmra.mxu0 %v2387
    %v2505 = vpop.f32.mrf.mxu0
    %v2506 = vadd.f32 0.0, %v2505
    %v2507 = vpop.f32.mrf.mxu0
    %v2508 = vadd.f32 0.0, %v2507
    %v2509 = vpop.f32.mrf.mxu0
    %v2510 = vpop.f32.mrf.mxu0
    %2511 = vdwg.mxu0
    %v2512 = vadd.f32 %v2381, %v2424
    %v2513 = vadd.f32 %v2382, %v2426
    %v2514 = vxor.u32 %v2512, 2147483648
    %v2515 = vxor.u32 %v2513, 2147483648
    %v2516 = vmul.f32 %v2514, 1.442695
    %v2517 = vpow.pop %v2516
    %v2518 = vmul.f32 %v2515, 1.442695
    %v2519 = vpow.pop %v2518
    %v2520 = vadd.f32 %v2517, 1.0
    %v2521 = vadd.f32 %v2519, 1.0
    %v2522 = vrcp.pop %v2520
    %v2523 = vmul.f32 1.0, %v2522
    %v2524 = vrcp.pop %v2521
    %v2525 = vmul.f32 1.0, %v2524
    %v2526 = vadd.f32 %v2465, %v913
    %v2527 = vadd.f32 %v2467, %v917
    %v2528 = vmul.f32 %v2523, %v2526
    %v2529 = vmul.f32 %v2525, %v2527
    %v2530 = vadd.f32 %v2383, %v2528
    %v2531 = vadd.f32 %v2384, %v2529
    %v2532 = vtanh.pop %v2530
    %v2533 = vtanh.pop %v2531
    %v2534 = vadd.f32 %v2385, %v2506
    %v2535 = vadd.f32 %v2386, %v2508
    %v2536 = vxor.u32 %v2534, 2147483648
    %v2537 = vxor.u32 %v2535, 2147483648
    %v2538 = vmul.f32 %v2536, 1.442695
    %v2539 = vpow.pop %v2538
    %v2540 = vmul.f32 %v2537, 1.442695
    %v2541 = vpow.pop %v2540
    %v2542 = vadd.f32 %v2539, 1.0
    %v2543 = vadd.f32 %v2541, 1.0
    %v2544 = vrcp.pop %v2542
    %v2545 = vmul.f32 1.0, %v2544
    %v2546 = vrcp.pop %v2543
    %v2547 = vmul.f32 1.0, %v2546
    %v2548 = vsub.f32 1.0, %v2545
    %v2549 = vsub.f32 1.0, %v2547
    %v2550 = vmul.f32 %v2548, %v2532
    %v2551 = vmul.f32 %v2549, %v2533
    %v2552 = vmul.f32 %v2545, %v2379
    %v2553 = vmul.f32 %v2547, %v2380
    %v2554 = vadd.f32 %v2550, %v2552
    %v2555 = vadd.f32 %v2551, %v2553
    %v2556 = vld [vmem:[#allocation2 + $0x120] sm:$0xff]
    %v2557 = vld [vmem:[#allocation2 + $0x128] sm:$0xff]
    %v2558 = vld [vmem:[#allocation2 + $0x130] sm:$0xff]
    %v2559 = vld [vmem:[#allocation2 + $0x138] sm:$0xff]
    %v2560 = vld [vmem:[#allocation2 + $0x140] sm:$0xff]
    %v2561 = vld [vmem:[#allocation2 + $0x148] sm:$0xff]
    %v2562 = vpack.c.bf16 %v2554, %v2554
    %v2563 = vpack.c.bf16 %v2555, %v2555
    %2564 = vmatprep.subr.bf16.mxu0 %v1223
    %2565 = vmatpush1.bf16.msra.mxu0 %v1222
    %2566 = vmatprep.subr.bf16.mxu0 %v1219
    %2567 = vmatpush1.bf16.msra.mxu0 %v1218
    %2568 = vmatprep.subr.bf16.mxu0 %v1215
    %2569 = vmatpush1.bf16.msra.mxu0 %v1214
    %2570 = vmatprep.subr.bf16.mxu0 %v1211
    %2571 = vmatpush1.bf16.msra.mxu0 %v1210
    %2572 = vmatprep.subr.bf16.mxu0 %v1207
    %2573 = vmatpush1.bf16.msra.mxu0 %v1206
    %2574 = vmatprep.subr.bf16.mxu0 %v1203
    %2575 = vmatpush1.bf16.msra.mxu0 %v1202
    %2576 = vmatprep.subr.bf16.mxu0 %v1199
    %2577 = vmatpush1.bf16.msra.mxu0 %v1198
    %2578 = vmatprep.subr.bf16.mxu0 %v1195
    %2579 = vmatpush1.bf16.msra.mxu0 %v1194
    %2580 = vmatprep.subr.bf16.mxu0 %v1255
    %2581 = vmatpush2.bf16.msra.mxu0 %v1254
    %2582 = vmatprep.subr.bf16.mxu0 %v1251
    %2583 = vmatpush2.bf16.msra.mxu0 %v1250
    %2584 = vmatprep.subr.bf16.mxu0 %v1247
    %2585 = vmatpush2.bf16.msra.mxu0 %v1246
    %2586 = vmatprep.subr.bf16.mxu0 %v1243
    %2587 = vmatpush2.bf16.msra.mxu0 %v1242
    %2588 = vmatprep.subr.bf16.mxu0 %v1239
    %2589 = vmatpush2.bf16.msra.mxu0 %v1238
    %2590 = vmatprep.subr.bf16.mxu0 %v1235
    %2591 = vmatpush2.bf16.msra.mxu0 %v1234
    %2592 = vmatprep.subr.bf16.mxu0 %v1231
    %2593 = vmatpush2.bf16.msra.mxu0 %v1230
    %2594 = vmatprep.subr.bf16.mxu0 %v1227
    %2595 = vmatpush2.bf16.msra.mxu0 %v1226
    %2596 = vmatprep.mubr.bf16.mxu0 %v2563
    %2597 = vmatmul.mubr.bf16.gmra.mxu0 %v2562
    %v2598 = vpop.f32.mrf.mxu0
    %v2599 = vadd.f32 0.0, %v2598
    %v2600 = vpop.f32.mrf.mxu0
    %v2601 = vadd.f32 0.0, %v2600
    %v2602 = vpop.f32.mrf.mxu0
    %v2603 = vpop.f32.mrf.mxu0
    %2604 = vdwg.mxu0
    %2605 = vmatprep.subr.bf16.mxu0 %v1225
    %2606 = vmatpush1.bf16.msra.mxu0 %v1224
    %2607 = vmatprep.subr.bf16.mxu0 %v1221
    %2608 = vmatpush1.bf16.msra.mxu0 %v1220
    %2609 = vmatprep.subr.bf16.mxu0 %v1217
    %2610 = vmatpush1.bf16.msra.mxu0 %v1216
    %2611 = vmatprep.subr.bf16.mxu0 %v1213
    %2612 = vmatpush1.bf16.msra.mxu0 %v1212
    %2613 = vmatprep.subr.bf16.mxu0 %v1209
    %2614 = vmatpush1.bf16.msra.mxu0 %v1208
    %2615 = vmatprep.subr.bf16.mxu0 %v1205
    %2616 = vmatpush1.bf16.msra.mxu0 %v1204
    %2617 = vmatprep.subr.bf16.mxu0 %v1201
    %2618 = vmatpush1.bf16.msra.mxu0 %v1200
    %2619 = vmatprep.subr.bf16.mxu0 %v1197
    %2620 = vmatpush1.bf16.msra.mxu0 %v1196
    %2621 = vmatprep.subr.bf16.mxu0 %v1257
    %2622 = vmatpush2.bf16.msra.mxu0 %v1256
    %2623 = vmatprep.subr.bf16.mxu0 %v1253
    %2624 = vmatpush2.bf16.msra.mxu0 %v1252
    %2625 = vmatprep.subr.bf16.mxu0 %v1249
    %2626 = vmatpush2.bf16.msra.mxu0 %v1248
    %2627 = vmatprep.subr.bf16.mxu0 %v1245
    %2628 = vmatpush2.bf16.msra.mxu0 %v1244
    %2629 = vmatprep.subr.bf16.mxu0 %v1241
    %2630 = vmatpush2.bf16.msra.mxu0 %v1240
    %2631 = vmatprep.subr.bf16.mxu0 %v1237
    %2632 = vmatpush2.bf16.msra.mxu0 %v1236
    %2633 = vmatprep.subr.bf16.mxu0 %v1233
    %2634 = vmatpush2.bf16.msra.mxu0 %v1232
    %2635 = vmatprep.subr.bf16.mxu0 %v1229
    %2636 = vmatpush2.bf16.msra.mxu0 %v1228
    %2637 = vmatprep.mubr.bf16.mxu0 %v2563
    %2638 = vmatmul.mubr.bf16.gmra.mxu0 %v2562
    %v2639 = vpop.f32.mrf.mxu0
    %v2640 = vadd.f32 0.0, %v2639
    %v2641 = vpop.f32.mrf.mxu0
    %v2642 = vadd.f32 0.0, %v2641
    %v2643 = vpop.f32.mrf.mxu0
    %v2644 = vpop.f32.mrf.mxu0
    %2645 = vdwg.mxu0
    %2646 = vmatprep.subr.bf16.mxu0 %v1547
    %2647 = vmatpush1.bf16.msra.mxu0 %v1546
    %2648 = vmatprep.subr.bf16.mxu0 %v1545
    %2649 = vmatpush1.bf16.msra.mxu0 %v1544
    %2650 = vmatprep.subr.bf16.mxu0 %v1543
    %2651 = vmatpush1.bf16.msra.mxu0 %v1542
    %2652 = vmatprep.subr.bf16.mxu0 %v1541
    %2653 = vmatpush1.bf16.msra.mxu0 %v1540
    %2654 = vmatprep.subr.bf16.mxu0 %v1539
    %2655 = vmatpush1.bf16.msra.mxu0 %v1538
    %2656 = vmatprep.subr.bf16.mxu0 %v1537
    %2657 = vmatpush1.bf16.msra.mxu0 %v1536
    %2658 = vmatprep.subr.bf16.mxu0 %v1535
    %2659 = vmatpush1.bf16.msra.mxu0 %v1534
    %2660 = vmatprep.subr.bf16.mxu0 %v1533
    %2661 = vmatpush1.bf16.msra.mxu0 %v1532
    %2662 = vmatprep.subr.bf16.mxu0 %v1563
    %2663 = vmatpush2.bf16.msra.mxu0 %v1562
    %2664 = vmatprep.subr.bf16.mxu0 %v1561
    %2665 = vmatpush2.bf16.msra.mxu0 %v1560
    %2666 = vmatprep.subr.bf16.mxu0 %v1559
    %2667 = vmatpush2.bf16.msra.mxu0 %v1558
    %2668 = vmatprep.subr.bf16.mxu0 %v1557
    %2669 = vmatpush2.bf16.msra.mxu0 %v1556
    %2670 = vmatprep.subr.bf16.mxu0 %v1555
    %2671 = vmatpush2.bf16.msra.mxu0 %v1554
    %2672 = vmatprep.subr.bf16.mxu0 %v1553
    %2673 = vmatpush2.bf16.msra.mxu0 %v1552
    %2674 = vmatprep.subr.bf16.mxu0 %v1551
    %2675 = vmatpush2.bf16.msra.mxu0 %v1550
    %2676 = vmatprep.subr.bf16.mxu0 %v1549
    %2677 = vmatpush2.bf16.msra.mxu0 %v1548
    %2678 = vmatprep.mubr.bf16.mxu0 %v2563
    %2679 = vmatmul.mubr.bf16.gmra.mxu0 %v2562
    %v2680 = vpop.f32.mrf.mxu0
    %v2681 = vadd.f32 0.0, %v2680
    %v2682 = vpop.f32.mrf.mxu0
    %v2683 = vadd.f32 0.0, %v2682
    %v2684 = vpop.f32.mrf.mxu0
    %v2685 = vpop.f32.mrf.mxu0
    %2686 = vdwg.mxu0
    %v2687 = vadd.f32 %v2556, %v2599
    %v2688 = vadd.f32 %v2557, %v2601
    %v2689 = vxor.u32 %v2687, 2147483648
    %v2690 = vxor.u32 %v2688, 2147483648
    %v2691 = vmul.f32 %v2689, 1.442695
    %v2692 = vpow.pop %v2691
    %v2693 = vmul.f32 %v2690, 1.442695
    %v2694 = vpow.pop %v2693
    %v2695 = vadd.f32 %v2692, 1.0
    %v2696 = vadd.f32 %v2694, 1.0
    %v2697 = vrcp.pop %v2695
    %v2698 = vmul.f32 1.0, %v2697
    %v2699 = vrcp.pop %v2696
    %v2700 = vmul.f32 1.0, %v2699
    %v2701 = vadd.f32 %v2640, %v913
    %v2702 = vadd.f32 %v2642, %v917
    %v2703 = vmul.f32 %v2698, %v2701
    %v2704 = vmul.f32 %v2700, %v2702
    %v2705 = vadd.f32 %v2558, %v2703
    %v2706 = vadd.f32 %v2559, %v2704
    %v2707 = vtanh.pop %v2705
    %v2708 = vtanh.pop %v2706
    %v2709 = vadd.f32 %v2560, %v2681
    %v2710 = vadd.f32 %v2561, %v2683
    %v2711 = vxor.u32 %v2709, 2147483648
    %v2712 = vxor.u32 %v2710, 2147483648
    %v2713 = vmul.f32 %v2711, 1.442695
    %v2714 = vpow.pop %v2713
    %v2715 = vmul.f32 %v2712, 1.442695
    %v2716 = vpow.pop %v2715
    %v2717 = vadd.f32 %v2714, 1.0
    %v2718 = vadd.f32 %v2716, 1.0
    %v2719 = vrcp.pop %v2717
    %v2720 = vmul.f32 1.0, %v2719
    %v2721 = vrcp.pop %v2718
    %v2722 = vmul.f32 1.0, %v2721
    %v2723 = vsub.f32 1.0, %v2720
    %v2724 = vsub.f32 1.0, %v2722
    %v2725 = vmul.f32 %v2723, %v2707
    %v2726 = vmul.f32 %v2724, %v2708
    %v2727 = vmul.f32 %v2720, %v2554
    %v2728 = vmul.f32 %v2722, %v2555
    %v2729 = vadd.f32 %v2725, %v2727
    %v2730 = vadd.f32 %v2726, %v2728
    %v2731 = vld [vmem:[#allocation2 + $0x150] sm:$0xff]
    %v2732 = vld [vmem:[#allocation2 + $0x158] sm:$0xff]
    %v2733 = vld [vmem:[#allocation2 + $0x160] sm:$0xff]
    %v2734 = vld [vmem:[#allocation2 + $0x168] sm:$0xff]
    %v2735 = vld [vmem:[#allocation2 + $0x170] sm:$0xff]
    %v2736 = vld [vmem:[#allocation2 + $0x178] sm:$0xff]
    %v2737 = vpack.c.bf16 %v2729, %v2729
    %v2738 = vpack.c.bf16 %v2730, %v2730
    %2739 = vmatprep.subr.bf16.mxu0 %v1223
    %2740 = vmatpush1.bf16.msra.mxu0 %v1222
    %2741 = vmatprep.subr.bf16.mxu0 %v1219
    %2742 = vmatpush1.bf16.msra.mxu0 %v1218
    %2743 = vmatprep.subr.bf16.mxu0 %v1215
    %2744 = vmatpush1.bf16.msra.mxu0 %v1214
    %2745 = vmatprep.subr.bf16.mxu0 %v1211
    %2746 = vmatpush1.bf16.msra.mxu0 %v1210
    %2747 = vmatprep.subr.bf16.mxu0 %v1207
    %2748 = vmatpush1.bf16.msra.mxu0 %v1206
    %2749 = vmatprep.subr.bf16.mxu0 %v1203
    %2750 = vmatpush1.bf16.msra.mxu0 %v1202
    %2751 = vmatprep.subr.bf16.mxu0 %v1199
    %2752 = vmatpush1.bf16.msra.mxu0 %v1198
    %2753 = vmatprep.subr.bf16.mxu0 %v1195
    %2754 = vmatpush1.bf16.msra.mxu0 %v1194
    %2755 = vmatprep.subr.bf16.mxu0 %v1255
    %2756 = vmatpush2.bf16.msra.mxu0 %v1254
    %2757 = vmatprep.subr.bf16.mxu0 %v1251
    %2758 = vmatpush2.bf16.msra.mxu0 %v1250
    %2759 = vmatprep.subr.bf16.mxu0 %v1247
    %2760 = vmatpush2.bf16.msra.mxu0 %v1246
    %2761 = vmatprep.subr.bf16.mxu0 %v1243
    %2762 = vmatpush2.bf16.msra.mxu0 %v1242
    %2763 = vmatprep.subr.bf16.mxu0 %v1239
    %2764 = vmatpush2.bf16.msra.mxu0 %v1238
    %2765 = vmatprep.subr.bf16.mxu0 %v1235
    %2766 = vmatpush2.bf16.msra.mxu0 %v1234
    %2767 = vmatprep.subr.bf16.mxu0 %v1231
    %2768 = vmatpush2.bf16.msra.mxu0 %v1230
    %2769 = vmatprep.subr.bf16.mxu0 %v1227
    %2770 = vmatpush2.bf16.msra.mxu0 %v1226
    %2771 = vmatprep.mubr.bf16.mxu0 %v2738
    %2772 = vmatmul.mubr.bf16.gmra.mxu0 %v2737
    %v2773 = vpop.f32.mrf.mxu0
    %v2774 = vadd.f32 0.0, %v2773
    %v2775 = vpop.f32.mrf.mxu0
    %v2776 = vadd.f32 0.0, %v2775
    %v2777 = vpop.f32.mrf.mxu0
    %v2778 = vpop.f32.mrf.mxu0
    %2779 = vdwg.mxu0
    %2780 = vmatprep.subr.bf16.mxu0 %v1225
    %2781 = vmatpush1.bf16.msra.mxu0 %v1224
    %2782 = vmatprep.subr.bf16.mxu0 %v1221
    %2783 = vmatpush1.bf16.msra.mxu0 %v1220
    %2784 = vmatprep.subr.bf16.mxu0 %v1217
    %2785 = vmatpush1.bf16.msra.mxu0 %v1216
    %2786 = vmatprep.subr.bf16.mxu0 %v1213
    %2787 = vmatpush1.bf16.msra.mxu0 %v1212
    %2788 = vmatprep.subr.bf16.mxu0 %v1209
    %2789 = vmatpush1.bf16.msra.mxu0 %v1208
    %2790 = vmatprep.subr.bf16.mxu0 %v1205
    %2791 = vmatpush1.bf16.msra.mxu0 %v1204
    %2792 = vmatprep.subr.bf16.mxu0 %v1201
    %2793 = vmatpush1.bf16.msra.mxu0 %v1200
    %2794 = vmatprep.subr.bf16.mxu0 %v1197
    %2795 = vmatpush1.bf16.msra.mxu0 %v1196
    %2796 = vmatprep.subr.bf16.mxu0 %v1257
    %2797 = vmatpush2.bf16.msra.mxu0 %v1256
    %2798 = vmatprep.subr.bf16.mxu0 %v1253
    %2799 = vmatpush2.bf16.msra.mxu0 %v1252
    %2800 = vmatprep.subr.bf16.mxu0 %v1249
    %2801 = vmatpush2.bf16.msra.mxu0 %v1248
    %2802 = vmatprep.subr.bf16.mxu0 %v1245
    %2803 = vmatpush2.bf16.msra.mxu0 %v1244
    %2804 = vmatprep.subr.bf16.mxu0 %v1241
    %2805 = vmatpush2.bf16.msra.mxu0 %v1240
    %2806 = vmatprep.subr.bf16.mxu0 %v1237
    %2807 = vmatpush2.bf16.msra.mxu0 %v1236
    %2808 = vmatprep.subr.bf16.mxu0 %v1233
    %2809 = vmatpush2.bf16.msra.mxu0 %v1232
    %2810 = vmatprep.subr.bf16.mxu0 %v1229
    %2811 = vmatpush2.bf16.msra.mxu0 %v1228
    %2812 = vmatprep.mubr.bf16.mxu0 %v2738
    %2813 = vmatmul.mubr.bf16.gmra.mxu0 %v2737
    %v2814 = vpop.f32.mrf.mxu0
    %v2815 = vadd.f32 0.0, %v2814
    %v2816 = vpop.f32.mrf.mxu0
    %v2817 = vadd.f32 0.0, %v2816
    %v2818 = vpop.f32.mrf.mxu0
    %v2819 = vpop.f32.mrf.mxu0
    %2820 = vdwg.mxu0
    %2821 = vmatprep.subr.bf16.mxu0 %v1547
    %2822 = vmatpush1.bf16.msra.mxu0 %v1546
    %2823 = vmatprep.subr.bf16.mxu0 %v1545
    %2824 = vmatpush1.bf16.msra.mxu0 %v1544
    %2825 = vmatprep.subr.bf16.mxu0 %v1543
    %2826 = vmatpush1.bf16.msra.mxu0 %v1542
    %2827 = vmatprep.subr.bf16.mxu0 %v1541
    %2828 = vmatpush1.bf16.msra.mxu0 %v1540
    %2829 = vmatprep.subr.bf16.mxu0 %v1539
    %2830 = vmatpush1.bf16.msra.mxu0 %v1538
    %2831 = vmatprep.subr.bf16.mxu0 %v1537
    %2832 = vmatpush1.bf16.msra.mxu0 %v1536
    %2833 = vmatprep.subr.bf16.mxu0 %v1535
    %2834 = vmatpush1.bf16.msra.mxu0 %v1534
    %2835 = vmatprep.subr.bf16.mxu0 %v1533
    %2836 = vmatpush1.bf16.msra.mxu0 %v1532
    %2837 = vmatprep.subr.bf16.mxu0 %v1563
    %2838 = vmatpush2.bf16.msra.mxu0 %v1562
    %2839 = vmatprep.subr.bf16.mxu0 %v1561
    %2840 = vmatpush2.bf16.msra.mxu0 %v1560
    %2841 = vmatprep.subr.bf16.mxu0 %v1559
    %2842 = vmatpush2.bf16.msra.mxu0 %v1558
    %2843 = vmatprep.subr.bf16.mxu0 %v1557
    %2844 = vmatpush2.bf16.msra.mxu0 %v1556
    %2845 = vmatprep.subr.bf16.mxu0 %v1555
    %2846 = vmatpush2.bf16.msra.mxu0 %v1554
    %2847 = vmatprep.subr.bf16.mxu0 %v1553
    %2848 = vmatpush2.bf16.msra.mxu0 %v1552
    %2849 = vmatprep.subr.bf16.mxu0 %v1551
    %2850 = vmatpush2.bf16.msra.mxu0 %v1550
    %2851 = vmatprep.subr.bf16.mxu0 %v1549
    %2852 = vmatpush2.bf16.msra.mxu0 %v1548
    %2853 = vmatprep.mubr.bf16.mxu0 %v2738
    %2854 = vmatmul.mubr.bf16.gmra.mxu0 %v2737
    %v2855 = vpop.f32.mrf.mxu0
    %v2856 = vadd.f32 0.0, %v2855
    %v2857 = vpop.f32.mrf.mxu0
    %v2858 = vadd.f32 0.0, %v2857
    %v2859 = vpop.f32.mrf.mxu0
    %v2860 = vpop.f32.mrf.mxu0
    %2861 = vdwg.mxu0
    %v2862 = vadd.f32 %v2731, %v2774
    %v2863 = vadd.f32 %v2732, %v2776
    %v2864 = vxor.u32 %v2862, 2147483648
    %v2865 = vxor.u32 %v2863, 2147483648
    %v2866 = vmul.f32 %v2864, 1.442695
    %v2867 = vpow.pop %v2866
    %v2868 = vmul.f32 %v2865, 1.442695
    %v2869 = vpow.pop %v2868
    %v2870 = vadd.f32 %v2867, 1.0
    %v2871 = vadd.f32 %v2869, 1.0
    %v2872 = vrcp.pop %v2870
    %v2873 = vmul.f32 1.0, %v2872
    %v2874 = vrcp.pop %v2871
    %v2875 = vmul.f32 1.0, %v2874
    %v2876 = vadd.f32 %v2815, %v913
    %v2877 = vadd.f32 %v2817, %v917
    %v2878 = vmul.f32 %v2873, %v2876
    %v2879 = vmul.f32 %v2875, %v2877
    %v2880 = vadd.f32 %v2733, %v2878
    %v2881 = vadd.f32 %v2734, %v2879
    %v2882 = vtanh.pop %v2880
    %v2883 = vtanh.pop %v2881
    %v2884 = vadd.f32 %v2735, %v2856
    %v2885 = vadd.f32 %v2736, %v2858
    %v2886 = vxor.u32 %v2884, 2147483648
    %v2887 = vxor.u32 %v2885, 2147483648
    %v2888 = vmul.f32 %v2886, 1.442695
    %v2889 = vpow.pop %v2888
    %v2890 = vmul.f32 %v2887, 1.442695
    %v2891 = vpow.pop %v2890
    %v2892 = vadd.f32 %v2889, 1.0
    %v2893 = vadd.f32 %v2891, 1.0
    %v2894 = vrcp.pop %v2892
    %v2895 = vmul.f32 1.0, %v2894
    %v2896 = vrcp.pop %v2893
    %v2897 = vmul.f32 1.0, %v2896
    %v2898 = vsub.f32 1.0, %v2895
    %v2899 = vsub.f32 1.0, %v2897
    %v2900 = vmul.f32 %v2898, %v2882
    %v2901 = vmul.f32 %v2899, %v2883
    %v2902 = vmul.f32 %v2895, %v2729
    %v2903 = vmul.f32 %v2897, %v2730
    %v2904 = vadd.f32 %v2900, %v2902
    %v2905 = vadd.f32 %v2901, %v2903
    %s2906 = smul.u32 4, 32
    %s2907 = smul.u32 %s2906, 6
    %s2908 = sshll.u32 %s2907, 4
    %2909 = dma.done [#allocation6], %s2908
    %v2910 = vld [vmem:[#allocation3] sm:$0xff]
    %v2911 = vld [vmem:[#allocation3 + $0x8] sm:$0xff]
    %v2912 = vld [vmem:[#allocation3 + $0x10] sm:$0xff]
    %v2913 = vld [vmem:[#allocation3 + $0x18] sm:$0xff]
    %v2914 = vld [vmem:[#allocation3 + $0x20] sm:$0xff]
    %v2915 = vld [vmem:[#allocation3 + $0x28] sm:$0xff]
    %v2916 = vpack.c.bf16 %v2904, %v2904
    %v2917 = vpack.c.bf16 %v2905, %v2905
    %v2918 = vld [vmem:[#allocation4] sm:$0xff]
    %v2919 = vld [vmem:[#allocation4 + $0x8] sm:$0xff]
    %v2920 = vld [vmem:[#allocation4 + $0x18] sm:$0xff]
    %v2921 = vld [vmem:[#allocation4 + $0x20] sm:$0xff]
    %v2922 = vld [vmem:[#allocation4 + $0x30] sm:$0xff]
    %v2923 = vld [vmem:[#allocation4 + $0x38] sm:$0xff]
    %v2924 = vld [vmem:[#allocation4 + $0x48] sm:$0xff]
    %v2925 = vld [vmem:[#allocation4 + $0x50] sm:$0xff]
    %v2926 = vld [vmem:[#allocation4 + $0x60] sm:$0xff]
    %v2927 = vld [vmem:[#allocation4 + $0x68] sm:$0xff]
    %v2928 = vld [vmem:[#allocation4 + $0x78] sm:$0xff]
    %v2929 = vld [vmem:[#allocation4 + $0x80] sm:$0xff]
    %v2930 = vld [vmem:[#allocation4 + $0x90] sm:$0xff]
    %v2931 = vld [vmem:[#allocation4 + $0x98] sm:$0xff]
    %v2932 = vld [vmem:[#allocation4 + $0xa8] sm:$0xff]
    %v2933 = vld [vmem:[#allocation4 + $0xb0] sm:$0xff]
    %v2934 = vld [vmem:[#allocation4 + $0xc0] sm:$0xff]
    %v2935 = vld [vmem:[#allocation4 + $0xc8] sm:$0xff]
    %v2936 = vld [vmem:[#allocation4 + $0xd8] sm:$0xff]
    %v2937 = vld [vmem:[#allocation4 + $0xe0] sm:$0xff]
    %v2938 = vld [vmem:[#allocation4 + $0xf0] sm:$0xff]
    %v2939 = vld [vmem:[#allocation4 + $0xf8] sm:$0xff]
    %v2940 = vld [vmem:[#allocation4 + $0x108] sm:$0xff]
    %v2941 = vld [vmem:[#allocation4 + $0x110] sm:$0xff]
    %v2942 = vld [vmem:[#allocation4 + $0x120] sm:$0xff]
    %v2943 = vld [vmem:[#allocation4 + $0x128] sm:$0xff]
    %v2944 = vld [vmem:[#allocation4 + $0x138] sm:$0xff]
    %v2945 = vld [vmem:[#allocation4 + $0x140] sm:$0xff]
    %v2946 = vld [vmem:[#allocation4 + $0x150] sm:$0xff]
    %v2947 = vld [vmem:[#allocation4 + $0x158] sm:$0xff]
    %v2948 = vld [vmem:[#allocation4 + $0x168] sm:$0xff]
    %v2949 = vld [vmem:[#allocation4 + $0x170] sm:$0xff]
    %v2950 = vld [vmem:[#allocation4 + $0x180] sm:$0xff]
    %v2951 = vld [vmem:[#allocation4 + $0x188] sm:$0xff]
    %v2952 = vld [vmem:[#allocation4 + $0x198] sm:$0xff]
    %v2953 = vld [vmem:[#allocation4 + $0x1a0] sm:$0xff]
    %v2954 = vld [vmem:[#allocation4 + $0x1b0] sm:$0xff]
    %v2955 = vld [vmem:[#allocation4 + $0x1b8] sm:$0xff]
    %v2956 = vld [vmem:[#allocation4 + $0x1c8] sm:$0xff]
    %v2957 = vld [vmem:[#allocation4 + $0x1d0] sm:$0xff]
    %v2958 = vld [vmem:[#allocation4 + $0x1e0] sm:$0xff]
    %v2959 = vld [vmem:[#allocation4 + $0x1e8] sm:$0xff]
    %v2960 = vld [vmem:[#allocation4 + $0x1f8] sm:$0xff]
    %v2961 = vld [vmem:[#allocation4 + $0x200] sm:$0xff]
    %v2962 = vld [vmem:[#allocation4 + $0x210] sm:$0xff]
    %v2963 = vld [vmem:[#allocation4 + $0x218] sm:$0xff]
    %v2964 = vld [vmem:[#allocation4 + $0x228] sm:$0xff]
    %v2965 = vld [vmem:[#allocation4 + $0x230] sm:$0xff]
    %v2966 = vld [vmem:[#allocation4 + $0x240] sm:$0xff]
    %v2967 = vld [vmem:[#allocation4 + $0x248] sm:$0xff]
    %v2968 = vld [vmem:[#allocation4 + $0x258] sm:$0xff]
    %v2969 = vld [vmem:[#allocation4 + $0x260] sm:$0xff]
    %v2970 = vld [vmem:[#allocation4 + $0x270] sm:$0xff]
    %v2971 = vld [vmem:[#allocation4 + $0x278] sm:$0xff]
    %v2972 = vld [vmem:[#allocation4 + $0x288] sm:$0xff]
    %v2973 = vld [vmem:[#allocation4 + $0x290] sm:$0xff]
    %v2974 = vld [vmem:[#allocation4 + $0x2a0] sm:$0xff]
    %v2975 = vld [vmem:[#allocation4 + $0x2a8] sm:$0xff]
    %v2976 = vld [vmem:[#allocation4 + $0x2b8] sm:$0xff]
    %v2977 = vld [vmem:[#allocation4 + $0x2c0] sm:$0xff]
    %v2978 = vld [vmem:[#allocation4 + $0x2d0] sm:$0xff]
    %v2979 = vld [vmem:[#allocation4 + $0x2d8] sm:$0xff]
    %v2980 = vld [vmem:[#allocation4 + $0x2e8] sm:$0xff]
    %v2981 = vld [vmem:[#allocation4 + $0x2f0] sm:$0xff]
    %v3046 = vunpack.c.l.b16 %v2918
    %v3047 = vunpack.c.h.b16 %v2918
    %v3048 = vunpack.c.l.b16 %v2919
    %v3049 = vunpack.c.h.b16 %v2919
    %v3050 = vunpack.c.l.b16 %v2920
    %v3051 = vunpack.c.h.b16 %v2920
    %v3052 = vunpack.c.l.b16 %v2921
    %v3053 = vunpack.c.h.b16 %v2921
    %v3054 = vunpack.c.l.b16 %v2922
    %v3055 = vunpack.c.h.b16 %v2922
    %v3056 = vunpack.c.l.b16 %v2923
    %v3057 = vunpack.c.h.b16 %v2923
    %v3058 = vunpack.c.l.b16 %v2924
    %v3059 = vunpack.c.h.b16 %v2924
    %v3060 = vunpack.c.l.b16 %v2925
    %v3061 = vunpack.c.h.b16 %v2925
    %v3062 = vunpack.c.l.b16 %v2926
    %v3063 = vunpack.c.h.b16 %v2926
    %v3064 = vunpack.c.l.b16 %v2927
    %v3065 = vunpack.c.h.b16 %v2927
    %v3066 = vunpack.c.l.b16 %v2928
    %v3067 = vunpack.c.h.b16 %v2928
    %v3068 = vunpack.c.l.b16 %v2929
    %v3069 = vunpack.c.h.b16 %v2929
    %v3070 = vunpack.c.l.b16 %v2930
    %v3071 = vunpack.c.h.b16 %v2930
    %v3072 = vunpack.c.l.b16 %v2931
    %v3073 = vunpack.c.h.b16 %v2931
    %v3074 = vunpack.c.l.b16 %v2932
    %v3075 = vunpack.c.h.b16 %v2932
    %v3076 = vunpack.c.l.b16 %v2933
    %v3077 = vunpack.c.h.b16 %v2933
    %v3078 = vunpack.c.l.b16 %v2934
    %v3079 = vunpack.c.h.b16 %v2934
    %v3080 = vunpack.c.l.b16 %v2935
    %v3081 = vunpack.c.h.b16 %v2935
    %v3082 = vunpack.c.l.b16 %v2936
    %v3083 = vunpack.c.h.b16 %v2936
    %v3084 = vunpack.c.l.b16 %v2937
    %v3085 = vunpack.c.h.b16 %v2937
    %v3086 = vunpack.c.l.b16 %v2938
    %v3087 = vunpack.c.h.b16 %v2938
    %v3088 = vunpack.c.l.b16 %v2939
    %v3089 = vunpack.c.h.b16 %v2939
    %v3090 = vunpack.c.l.b16 %v2940
    %v3091 = vunpack.c.h.b16 %v2940
    %v3092 = vunpack.c.l.b16 %v2941
    %v3093 = vunpack.c.h.b16 %v2941
    %v3094 = vunpack.c.l.b16 %v2942
    %v3095 = vunpack.c.h.b16 %v2942
    %v3096 = vunpack.c.l.b16 %v2943
    %v3097 = vunpack.c.h.b16 %v2943
    %v3098 = vunpack.c.l.b16 %v2944
    %v3099 = vunpack.c.h.b16 %v2944
    %v3100 = vunpack.c.l.b16 %v2945
    %v3101 = vunpack.c.h.b16 %v2945
    %v3102 = vunpack.c.l.b16 %v2946
    %v3103 = vunpack.c.h.b16 %v2946
    %v3104 = vunpack.c.l.b16 %v2947
    %v3105 = vunpack.c.h.b16 %v2947
    %v3106 = vunpack.c.l.b16 %v2948
    %v3107 = vunpack.c.h.b16 %v2948
    %v3108 = vunpack.c.l.b16 %v2949
    %v3109 = vunpack.c.h.b16 %v2949
    %v3110 = vunpack.c.l.b16 %v2950
    %v3111 = vunpack.c.h.b16 %v2950
    %v3112 = vunpack.c.l.b16 %v2951
    %v3113 = vunpack.c.h.b16 %v2951
    %v3114 = vunpack.c.l.b16 %v2952
    %v3115 = vunpack.c.h.b16 %v2952
    %v3116 = vunpack.c.l.b16 %v2953
    %v3117 = vunpack.c.h.b16 %v2953
    %v3118 = vunpack.c.l.b16 %v2954
    %v3119 = vunpack.c.h.b16 %v2954
    %v3120 = vunpack.c.l.b16 %v2955
    %v3121 = vunpack.c.h.b16 %v2955
    %v3122 = vunpack.c.l.b16 %v2956
    %v3123 = vunpack.c.h.b16 %v2956
    %v3124 = vunpack.c.l.b16 %v2957
    %v3125 = vunpack.c.h.b16 %v2957
    %v3126 = vunpack.c.l.b16 %v2958
    %v3127 = vunpack.c.h.b16 %v2958
    %v3128 = vunpack.c.l.b16 %v2959
    %v3129 = vunpack.c.h.b16 %v2959
    %v3130 = vunpack.c.l.b16 %v2960
    %v3131 = vunpack.c.h.b16 %v2960
    %v3132 = vunpack.c.l.b16 %v2961
    %v3133 = vunpack.c.h.b16 %v2961
    %v3134 = vunpack.c.l.b16 %v2962
    %v3135 = vunpack.c.h.b16 %v2962
    %v3136 = vunpack.c.l.b16 %v2963
    %v3137 = vunpack.c.h.b16 %v2963
    %v3138 = vunpack.c.l.b16 %v2964
    %v3139 = vunpack.c.h.b16 %v2964
    %v3140 = vunpack.c.l.b16 %v2965
    %v3141 = vunpack.c.h.b16 %v2965
    %v3142 = vunpack.c.l.b16 %v2966
    %v3143 = vunpack.c.h.b16 %v2966
    %v3144 = vunpack.c.l.b16 %v2967
    %v3145 = vunpack.c.h.b16 %v2967
    %v3146 = vunpack.c.l.b16 %v2968
    %v3147 = vunpack.c.h.b16 %v2968
    %v3148 = vunpack.c.l.b16 %v2969
    %v3149 = vunpack.c.h.b16 %v2969
    %v3150 = vunpack.c.l.b16 %v2970
    %v3151 = vunpack.c.h.b16 %v2970
    %v3152 = vunpack.c.l.b16 %v2971
    %v3153 = vunpack.c.h.b16 %v2971
    %v3154 = vunpack.c.l.b16 %v2972
    %v3155 = vunpack.c.h.b16 %v2972
    %v3156 = vunpack.c.l.b16 %v2973
    %v3157 = vunpack.c.h.b16 %v2973
    %v3158 = vunpack.c.l.b16 %v2974
    %v3159 = vunpack.c.h.b16 %v2974
    %v3160 = vunpack.c.l.b16 %v2975
    %v3161 = vunpack.c.h.b16 %v2975
    %v3162 = vunpack.c.l.b16 %v2976
    %v3163 = vunpack.c.h.b16 %v2976
    %v3164 = vunpack.c.l.b16 %v2977
    %v3165 = vunpack.c.h.b16 %v2977
    %v3166 = vunpack.c.l.b16 %v2978
    %v3167 = vunpack.c.h.b16 %v2978
    %v3168 = vunpack.c.l.b16 %v2979
    %v3169 = vunpack.c.h.b16 %v2979
    %v3170 = vunpack.c.l.b16 %v2980
    %v3171 = vunpack.c.h.b16 %v2980
    %v3172 = vunpack.c.l.b16 %v2981
    %v3173 = vunpack.c.h.b16 %v2981
    %v3174 = vpack.c.b16 %v3050, %v3046
    %v3175 = vpack.c.b16 %v3051, %v3047
    %v3176 = vpack.c.b16 %v3052, %v3048
    %v3177 = vpack.c.b16 %v3053, %v3049
    %v3178 = vpack.c.b16 %v3058, %v3054
    %v3179 = vpack.c.b16 %v3059, %v3055
    %v3180 = vpack.c.b16 %v3060, %v3056
    %v3181 = vpack.c.b16 %v3061, %v3057
    %v3182 = vpack.c.b16 %v3066, %v3062
    %v3183 = vpack.c.b16 %v3067, %v3063
    %v3184 = vpack.c.b16 %v3068, %v3064
    %v3185 = vpack.c.b16 %v3069, %v3065
    %v3186 = vpack.c.b16 %v3074, %v3070
    %v3187 = vpack.c.b16 %v3075, %v3071
    %v3188 = vpack.c.b16 %v3076, %v3072
    %v3189 = vpack.c.b16 %v3077, %v3073
    %v3190 = vpack.c.b16 %v3082, %v3078
    %v3191 = vpack.c.b16 %v3083, %v3079
    %v3192 = vpack.c.b16 %v3084, %v3080
    %v3193 = vpack.c.b16 %v3085, %v3081
    %v3194 = vpack.c.b16 %v3090, %v3086
    %v3195 = vpack.c.b16 %v3091, %v3087
    %v3196 = vpack.c.b16 %v3092, %v3088
    %v3197 = vpack.c.b16 %v3093, %v3089
    %v3198 = vpack.c.b16 %v3098, %v3094
    %v3199 = vpack.c.b16 %v3099, %v3095
    %v3200 = vpack.c.b16 %v3100, %v3096
    %v3201 = vpack.c.b16 %v3101, %v3097
    %v3202 = vpack.c.b16 %v3106, %v3102
    %v3203 = vpack.c.b16 %v3107, %v3103
    %v3204 = vpack.c.b16 %v3108, %v3104
    %v3205 = vpack.c.b16 %v3109, %v3105
    %v3206 = vpack.c.b16 %v3114, %v3110
    %v3207 = vpack.c.b16 %v3115, %v3111
    %v3208 = vpack.c.b16 %v3116, %v3112
    %v3209 = vpack.c.b16 %v3117, %v3113
    %v3210 = vpack.c.b16 %v3122, %v3118
    %v3211 = vpack.c.b16 %v3123, %v3119
    %v3212 = vpack.c.b16 %v3124, %v3120
    %v3213 = vpack.c.b16 %v3125, %v3121
    %v3214 = vpack.c.b16 %v3130, %v3126
    %v3215 = vpack.c.b16 %v3131, %v3127
    %v3216 = vpack.c.b16 %v3132, %v3128
    %v3217 = vpack.c.b16 %v3133, %v3129
    %v3218 = vpack.c.b16 %v3138, %v3134
    %v3219 = vpack.c.b16 %v3139, %v3135
    %v3220 = vpack.c.b16 %v3140, %v3136
    %v3221 = vpack.c.b16 %v3141, %v3137
    %v3222 = vpack.c.b16 %v3146, %v3142
    %v3223 = vpack.c.b16 %v3147, %v3143
    %v3224 = vpack.c.b16 %v3148, %v3144
    %v3225 = vpack.c.b16 %v3149, %v3145
    %v3226 = vpack.c.b16 %v3154, %v3150
    %v3227 = vpack.c.b16 %v3155, %v3151
    %v3228 = vpack.c.b16 %v3156, %v3152
    %v3229 = vpack.c.b16 %v3157, %v3153
    %v3230 = vpack.c.b16 %v3162, %v3158
    %v3231 = vpack.c.b16 %v3163, %v3159
    %v3232 = vpack.c.b16 %v3164, %v3160
    %v3233 = vpack.c.b16 %v3165, %v3161
    %v3234 = vpack.c.b16 %v3170, %v3166
    %v3235 = vpack.c.b16 %v3171, %v3167
    %v3236 = vpack.c.b16 %v3172, %v3168
    %v3237 = vpack.c.b16 %v3173, %v3169
    %3302 = vmatprep.subr.bf16.mxu0 %v3203
    %3303 = vmatpush1.bf16.msra.mxu0 %v3202
    %3304 = vmatprep.subr.bf16.mxu0 %v3199
    %3305 = vmatpush1.bf16.msra.mxu0 %v3198
    %3306 = vmatprep.subr.bf16.mxu0 %v3195
    %3307 = vmatpush1.bf16.msra.mxu0 %v3194
    %3308 = vmatprep.subr.bf16.mxu0 %v3191
    %3309 = vmatpush1.bf16.msra.mxu0 %v3190
    %3310 = vmatprep.subr.bf16.mxu0 %v3187
    %3311 = vmatpush1.bf16.msra.mxu0 %v3186
    %3312 = vmatprep.subr.bf16.mxu0 %v3183
    %3313 = vmatpush1.bf16.msra.mxu0 %v3182
    %3314 = vmatprep.subr.bf16.mxu0 %v3179
    %3315 = vmatpush1.bf16.msra.mxu0 %v3178
    %3316 = vmatprep.subr.bf16.mxu0 %v3175
    %3317 = vmatpush1.bf16.msra.mxu0 %v3174
    %3318 = vmatprep.subr.bf16.mxu0 %v3235
    %3319 = vmatpush2.bf16.msra.mxu0 %v3234
    %3320 = vmatprep.subr.bf16.mxu0 %v3231
    %3321 = vmatpush2.bf16.msra.mxu0 %v3230
    %3322 = vmatprep.subr.bf16.mxu0 %v3227
    %3323 = vmatpush2.bf16.msra.mxu0 %v3226
    %3324 = vmatprep.subr.bf16.mxu0 %v3223
    %3325 = vmatpush2.bf16.msra.mxu0 %v3222
    %3326 = vmatprep.subr.bf16.mxu0 %v3219
    %3327 = vmatpush2.bf16.msra.mxu0 %v3218
    %3328 = vmatprep.subr.bf16.mxu0 %v3215
    %3329 = vmatpush2.bf16.msra.mxu0 %v3214
    %3330 = vmatprep.subr.bf16.mxu0 %v3211
    %3331 = vmatpush2.bf16.msra.mxu0 %v3210
    %3332 = vmatprep.subr.bf16.mxu0 %v3207
    %3333 = vmatpush2.bf16.msra.mxu0 %v3206
    %3334 = vmatprep.mubr.bf16.mxu0 %v2917
    %3335 = vmatmul.mubr.bf16.gmra.mxu0 %v2916
    %v3336 = vpop.f32.mrf.mxu0
    %v3337 = vadd.f32 0.0, %v3336
    %v3338 = vpop.f32.mrf.mxu0
    %v3339 = vadd.f32 0.0, %v3338
    %v3340 = vpop.f32.mrf.mxu0
    %v3341 = vpop.f32.mrf.mxu0
    %3342 = vdwg.mxu0
    %3343 = vmatprep.subr.bf16.mxu0 %v3205
    %3344 = vmatpush1.bf16.msra.mxu0 %v3204
    %3345 = vmatprep.subr.bf16.mxu0 %v3201
    %3346 = vmatpush1.bf16.msra.mxu0 %v3200
    %3347 = vmatprep.subr.bf16.mxu0 %v3197
    %3348 = vmatpush1.bf16.msra.mxu0 %v3196
    %3349 = vmatprep.subr.bf16.mxu0 %v3193
    %3350 = vmatpush1.bf16.msra.mxu0 %v3192
    %3351 = vmatprep.subr.bf16.mxu0 %v3189
    %3352 = vmatpush1.bf16.msra.mxu0 %v3188
    %3353 = vmatprep.subr.bf16.mxu0 %v3185
    %3354 = vmatpush1.bf16.msra.mxu0 %v3184
    %3355 = vmatprep.subr.bf16.mxu0 %v3181
    %3356 = vmatpush1.bf16.msra.mxu0 %v3180
    %3357 = vmatprep.subr.bf16.mxu0 %v3177
    %3358 = vmatpush1.bf16.msra.mxu0 %v3176
    %3359 = vmatprep.subr.bf16.mxu0 %v3237
    %3360 = vmatpush2.bf16.msra.mxu0 %v3236
    %3361 = vmatprep.subr.bf16.mxu0 %v3233
    %3362 = vmatpush2.bf16.msra.mxu0 %v3232
    %3363 = vmatprep.subr.bf16.mxu0 %v3229
    %3364 = vmatpush2.bf16.msra.mxu0 %v3228
    %3365 = vmatprep.subr.bf16.mxu0 %v3225
    %3366 = vmatpush2.bf16.msra.mxu0 %v3224
    %3367 = vmatprep.subr.bf16.mxu0 %v3221
    %3368 = vmatpush2.bf16.msra.mxu0 %v3220
    %3369 = vmatprep.subr.bf16.mxu0 %v3217
    %3370 = vmatpush2.bf16.msra.mxu0 %v3216
    %3371 = vmatprep.subr.bf16.mxu0 %v3213
    %3372 = vmatpush2.bf16.msra.mxu0 %v3212
    %3373 = vmatprep.subr.bf16.mxu0 %v3209
    %3374 = vmatpush2.bf16.msra.mxu0 %v3208
    %3375 = vmatprep.mubr.bf16.mxu0 %v2917
    %3376 = vmatmul.mubr.bf16.gmra.mxu0 %v2916
    %v3377 = vpop.f32.mrf.mxu0
    %v3378 = vadd.f32 0.0, %v3377
    %v3379 = vpop.f32.mrf.mxu0
    %v3380 = vadd.f32 0.0, %v3379
    %v3381 = vpop.f32.mrf.mxu0
    %v3382 = vpop.f32.mrf.mxu0
    %3383 = vdwg.mxu0
    %v3384 = vld [vmem:[#allocation4 + $0x10] sm:$0xff]
    %v3385 = vld [vmem:[#allocation4 + $0x28] sm:$0xff]
    %v3386 = vld [vmem:[#allocation4 + $0x40] sm:$0xff]
    %v3387 = vld [vmem:[#allocation4 + $0x58] sm:$0xff]
    %v3388 = vld [vmem:[#allocation4 + $0x70] sm:$0xff]
    %v3389 = vld [vmem:[#allocation4 + $0x88] sm:$0xff]
    %v3390 = vld [vmem:[#allocation4 + $0xa0] sm:$0xff]
    %v3391 = vld [vmem:[#allocation4 + $0xb8] sm:$0xff]
    %v3392 = vld [vmem:[#allocation4 + $0xd0] sm:$0xff]
    %v3393 = vld [vmem:[#allocation4 + $0xe8] sm:$0xff]
    %v3394 = vld [vmem:[#allocation4 + $0x100] sm:$0xff]
    %v3395 = vld [vmem:[#allocation4 + $0x118] sm:$0xff]
    %v3396 = vld [vmem:[#allocation4 + $0x130] sm:$0xff]
    %v3397 = vld [vmem:[#allocation4 + $0x148] sm:$0xff]
    %v3398 = vld [vmem:[#allocation4 + $0x160] sm:$0xff]
    %v3399 = vld [vmem:[#allocation4 + $0x178] sm:$0xff]
    %v3400 = vld [vmem:[#allocation4 + $0x190] sm:$0xff]
    %v3401 = vld [vmem:[#allocation4 + $0x1a8] sm:$0xff]
    %v3402 = vld [vmem:[#allocation4 + $0x1c0] sm:$0xff]
    %v3403 = vld [vmem:[#allocation4 + $0x1d8] sm:$0xff]
    %v3404 = vld [vmem:[#allocation4 + $0x1f0] sm:$0xff]
    %v3405 = vld [vmem:[#allocation4 + $0x208] sm:$0xff]
    %v3406 = vld [vmem:[#allocation4 + $0x220] sm:$0xff]
    %v3407 = vld [vmem:[#allocation4 + $0x238] sm:$0xff]
    %v3408 = vld [vmem:[#allocation4 + $0x250] sm:$0xff]
    %v3409 = vld [vmem:[#allocation4 + $0x268] sm:$0xff]
    %v3410 = vld [vmem:[#allocation4 + $0x280] sm:$0xff]
    %v3411 = vld [vmem:[#allocation4 + $0x298] sm:$0xff]
    %v3412 = vld [vmem:[#allocation4 + $0x2b0] sm:$0xff]
    %v3413 = vld [vmem:[#allocation4 + $0x2c8] sm:$0xff]
    %v3414 = vld [vmem:[#allocation4 + $0x2e0] sm:$0xff]
    %v3415 = vld [vmem:[#allocation4 + $0x2f8] sm:$0xff]
    %v3448 = vunpack.c.l.b16 %v3384
    %v3449 = vunpack.c.h.b16 %v3384
    %v3450 = vunpack.c.l.b16 %v3385
    %v3451 = vunpack.c.h.b16 %v3385
    %v3452 = vunpack.c.l.b16 %v3386
    %v3453 = vunpack.c.h.b16 %v3386
    %v3454 = vunpack.c.l.b16 %v3387
    %v3455 = vunpack.c.h.b16 %v3387
    %v3456 = vunpack.c.l.b16 %v3388
    %v3457 = vunpack.c.h.b16 %v3388
    %v3458 = vunpack.c.l.b16 %v3389
    %v3459 = vunpack.c.h.b16 %v3389
    %v3460 = vunpack.c.l.b16 %v3390
    %v3461 = vunpack.c.h.b16 %v3390
    %v3462 = vunpack.c.l.b16 %v3391
    %v3463 = vunpack.c.h.b16 %v3391
    %v3464 = vunpack.c.l.b16 %v3392
    %v3465 = vunpack.c.h.b16 %v3392
    %v3466 = vunpack.c.l.b16 %v3393
    %v3467 = vunpack.c.h.b16 %v3393
    %v3468 = vunpack.c.l.b16 %v3394
    %v3469 = vunpack.c.h.b16 %v3394
    %v3470 = vunpack.c.l.b16 %v3395
    %v3471 = vunpack.c.h.b16 %v3395
    %v3472 = vunpack.c.l.b16 %v3396
    %v3473 = vunpack.c.h.b16 %v3396
    %v3474 = vunpack.c.l.b16 %v3397
    %v3475 = vunpack.c.h.b16 %v3397
    %v3476 = vunpack.c.l.b16 %v3398
    %v3477 = vunpack.c.h.b16 %v3398
    %v3478 = vunpack.c.l.b16 %v3399
    %v3479 = vunpack.c.h.b16 %v3399
    %v3480 = vunpack.c.l.b16 %v3400
    %v3481 = vunpack.c.h.b16 %v3400
    %v3482 = vunpack.c.l.b16 %v3401
    %v3483 = vunpack.c.h.b16 %v3401
    %v3484 = vunpack.c.l.b16 %v3402
    %v3485 = vunpack.c.h.b16 %v3402
    %v3486 = vunpack.c.l.b16 %v3403
    %v3487 = vunpack.c.h.b16 %v3403
    %v3488 = vunpack.c.l.b16 %v3404
    %v3489 = vunpack.c.h.b16 %v3404
    %v3490 = vunpack.c.l.b16 %v3405
    %v3491 = vunpack.c.h.b16 %v3405
    %v3492 = vunpack.c.l.b16 %v3406
    %v3493 = vunpack.c.h.b16 %v3406
    %v3494 = vunpack.c.l.b16 %v3407
    %v3495 = vunpack.c.h.b16 %v3407
    %v3496 = vunpack.c.l.b16 %v3408
    %v3497 = vunpack.c.h.b16 %v3408
    %v3498 = vunpack.c.l.b16 %v3409
    %v3499 = vunpack.c.h.b16 %v3409
    %v3500 = vunpack.c.l.b16 %v3410
    %v3501 = vunpack.c.h.b16 %v3410
    %v3502 = vunpack.c.l.b16 %v3411
    %v3503 = vunpack.c.h.b16 %v3411
    %v3504 = vunpack.c.l.b16 %v3412
    %v3505 = vunpack.c.h.b16 %v3412
    %v3506 = vunpack.c.l.b16 %v3413
    %v3507 = vunpack.c.h.b16 %v3413
    %v3508 = vunpack.c.l.b16 %v3414
    %v3509 = vunpack.c.h.b16 %v3414
    %v3510 = vunpack.c.l.b16 %v3415
    %v3511 = vunpack.c.h.b16 %v3415
    %v3512 = vpack.c.b16 %v3450, %v3448
    %v3513 = vpack.c.b16 %v3451, %v3449
    %v3514 = vpack.c.b16 %v3454, %v3452
    %v3515 = vpack.c.b16 %v3455, %v3453
    %v3516 = vpack.c.b16 %v3458, %v3456
    %v3517 = vpack.c.b16 %v3459, %v3457
    %v3518 = vpack.c.b16 %v3462, %v3460
    %v3519 = vpack.c.b16 %v3463, %v3461
    %v3520 = vpack.c.b16 %v3466, %v3464
    %v3521 = vpack.c.b16 %v3467, %v3465
    %v3522 = vpack.c.b16 %v3470, %v3468
    %v3523 = vpack.c.b16 %v3471, %v3469
    %v3524 = vpack.c.b16 %v3474, %v3472
    %v3525 = vpack.c.b16 %v3475, %v3473
    %v3526 = vpack.c.b16 %v3478, %v3476
    %v3527 = vpack.c.b16 %v3479, %v3477
    %v3528 = vpack.c.b16 %v3482, %v3480
    %v3529 = vpack.c.b16 %v3483, %v3481
    %v3530 = vpack.c.b16 %v3486, %v3484
    %v3531 = vpack.c.b16 %v3487, %v3485
    %v3532 = vpack.c.b16 %v3490, %v3488
    %v3533 = vpack.c.b16 %v3491, %v3489
    %v3534 = vpack.c.b16 %v3494, %v3492
    %v3535 = vpack.c.b16 %v3495, %v3493
    %v3536 = vpack.c.b16 %v3498, %v3496
    %v3537 = vpack.c.b16 %v3499, %v3497
    %v3538 = vpack.c.b16 %v3502, %v3500
    %v3539 = vpack.c.b16 %v3503, %v3501
    %v3540 = vpack.c.b16 %v3506, %v3504
    %v3541 = vpack.c.b16 %v3507, %v3505
    %v3542 = vpack.c.b16 %v3510, %v3508
    %v3543 = vpack.c.b16 %v3511, %v3509
    %3576 = vmatprep.subr.bf16.mxu0 %v3527
    %3577 = vmatpush1.bf16.msra.mxu0 %v3526
    %3578 = vmatprep.subr.bf16.mxu0 %v3525
    %3579 = vmatpush1.bf16.msra.mxu0 %v3524
    %3580 = vmatprep.subr.bf16.mxu0 %v3523
    %3581 = vmatpush1.bf16.msra.mxu0 %v3522
    %3582 = vmatprep.subr.bf16.mxu0 %v3521
    %3583 = vmatpush1.bf16.msra.mxu0 %v3520
    %3584 = vmatprep.subr.bf16.mxu0 %v3519
    %3585 = vmatpush1.bf16.msra.mxu0 %v3518
    %3586 = vmatprep.subr.bf16.mxu0 %v3517
    %3587 = vmatpush1.bf16.msra.mxu0 %v3516
    %3588 = vmatprep.subr.bf16.mxu0 %v3515
    %3589 = vmatpush1.bf16.msra.mxu0 %v3514
    %3590 = vmatprep.subr.bf16.mxu0 %v3513
    %3591 = vmatpush1.bf16.msra.mxu0 %v3512
    %3592 = vmatprep.subr.bf16.mxu0 %v3543
    %3593 = vmatpush2.bf16.msra.mxu0 %v3542
    %3594 = vmatprep.subr.bf16.mxu0 %v3541
    %3595 = vmatpush2.bf16.msra.mxu0 %v3540
    %3596 = vmatprep.subr.bf16.mxu0 %v3539
    %3597 = vmatpush2.bf16.msra.mxu0 %v3538
    %3598 = vmatprep.subr.bf16.mxu0 %v3537
    %3599 = vmatpush2.bf16.msra.mxu0 %v3536
    %3600 = vmatprep.subr.bf16.mxu0 %v3535
    %3601 = vmatpush2.bf16.msra.mxu0 %v3534
    %3602 = vmatprep.subr.bf16.mxu0 %v3533
    %3603 = vmatpush2.bf16.msra.mxu0 %v3532
    %3604 = vmatprep.subr.bf16.mxu0 %v3531
    %3605 = vmatpush2.bf16.msra.mxu0 %v3530
    %3606 = vmatprep.subr.bf16.mxu0 %v3529
    %3607 = vmatpush2.bf16.msra.mxu0 %v3528
    %3608 = vmatprep.mubr.bf16.mxu0 %v2917
    %3609 = vmatmul.mubr.bf16.gmra.mxu0 %v2916
    %v3610 = vpop.f32.mrf.mxu0
    %v3611 = vadd.f32 0.0, %v3610
    %v3612 = vpop.f32.mrf.mxu0
    %v3613 = vadd.f32 0.0, %v3612
    %v3614 = vpop.f32.mrf.mxu0
    %v3615 = vpop.f32.mrf.mxu0
    %3616 = vdwg.mxu0
    %v3617 = vadd.f32 %v2910, %v3337
    %v3618 = vadd.f32 %v2911, %v3339
    %v3619 = vxor.u32 %v3617, 2147483648
    %v3620 = vxor.u32 %v3618, 2147483648
    %v3621 = vmul.f32 %v3619, 1.442695
    %v3622 = vpow.pop %v3621
    %v3623 = vmul.f32 %v3620, 1.442695
    %v3624 = vpow.pop %v3623
    %v3625 = vadd.f32 %v3622, 1.0
    %v3626 = vadd.f32 %v3624, 1.0
    %v3627 = vrcp.pop %v3625
    %v3628 = vmul.f32 1.0, %v3627
    %v3629 = vrcp.pop %v3626
    %v3630 = vmul.f32 1.0, %v3629
    %v3631 = vadd.f32 %v3378, %v925
    %v3632 = vadd.f32 %v3380, %v929
    %v3633 = vmul.f32 %v3628, %v3631
    %v3634 = vmul.f32 %v3630, %v3632
    %v3635 = vadd.f32 %v2912, %v3633
    %v3636 = vadd.f32 %v2913, %v3634
    %v3637 = vtanh.pop %v3635
    %v3638 = vtanh.pop %v3636
    %v3639 = vadd.f32 %v2914, %v3611
    %v3640 = vadd.f32 %v2915, %v3613
    %v3641 = vxor.u32 %v3639, 2147483648
    %v3642 = vxor.u32 %v3640, 2147483648
    %v3643 = vmul.f32 %v3641, 1.442695
    %v3644 = vpow.pop %v3643
    %v3645 = vmul.f32 %v3642, 1.442695
    %v3646 = vpow.pop %v3645
    %v3647 = vadd.f32 %v3644, 1.0
    %v3648 = vadd.f32 %v3646, 1.0
    %v3649 = vrcp.pop %v3647
    %v3650 = vmul.f32 1.0, %v3649
    %v3651 = vrcp.pop %v3648
    %v3652 = vmul.f32 1.0, %v3651
    %v3653 = vsub.f32 1.0, %v3650
    %v3654 = vsub.f32 1.0, %v3652
    %v3655 = vmul.f32 %v3653, %v3637
    %v3656 = vmul.f32 %v3654, %v3638
    %v3657 = vmul.f32 %v3650, %v2904
    %v3658 = vmul.f32 %v3652, %v2905
    %v3659 = vadd.f32 %v3655, %v3657
    %v3660 = vadd.f32 %v3656, %v3658
    %v3661 = vld [vmem:[#allocation3 + $0x30] sm:$0xff]
    %v3662 = vld [vmem:[#allocation3 + $0x38] sm:$0xff]
    %v3663 = vld [vmem:[#allocation3 + $0x40] sm:$0xff]
    %v3664 = vld [vmem:[#allocation3 + $0x48] sm:$0xff]
    %v3665 = vld [vmem:[#allocation3 + $0x50] sm:$0xff]
    %v3666 = vld [vmem:[#allocation3 + $0x58] sm:$0xff]
    %v3667 = vpack.c.bf16 %v3659, %v3659
    %v3668 = vpack.c.bf16 %v3660, %v3660
    %3669 = vmatprep.subr.bf16.mxu0 %v3203
    %3670 = vmatpush1.bf16.msra.mxu0 %v3202
    %3671 = vmatprep.subr.bf16.mxu0 %v3199
    %3672 = vmatpush1.bf16.msra.mxu0 %v3198
    %3673 = vmatprep.subr.bf16.mxu0 %v3195
    %3674 = vmatpush1.bf16.msra.mxu0 %v3194
    %3675 = vmatprep.subr.bf16.mxu0 %v3191
    %3676 = vmatpush1.bf16.msra.mxu0 %v3190
    %3677 = vmatprep.subr.bf16.mxu0 %v3187
    %3678 = vmatpush1.bf16.msra.mxu0 %v3186
    %3679 = vmatprep.subr.bf16.mxu0 %v3183
    %3680 = vmatpush1.bf16.msra.mxu0 %v3182
    %3681 = vmatprep.subr.bf16.mxu0 %v3179
    %3682 = vmatpush1.bf16.msra.mxu0 %v3178
    %3683 = vmatprep.subr.bf16.mxu0 %v3175
    %3684 = vmatpush1.bf16.msra.mxu0 %v3174
    %3685 = vmatprep.subr.bf16.mxu0 %v3235
    %3686 = vmatpush2.bf16.msra.mxu0 %v3234
    %3687 = vmatprep.subr.bf16.mxu0 %v3231
    %3688 = vmatpush2.bf16.msra.mxu0 %v3230
    %3689 = vmatprep.subr.bf16.mxu0 %v3227
    %3690 = vmatpush2.bf16.msra.mxu0 %v3226
    %3691 = vmatprep.subr.bf16.mxu0 %v3223
    %3692 = vmatpush2.bf16.msra.mxu0 %v3222
    %3693 = vmatprep.subr.bf16.mxu0 %v3219
    %3694 = vmatpush2.bf16.msra.mxu0 %v3218
    %3695 = vmatprep.subr.bf16.mxu0 %v3215
    %3696 = vmatpush2.bf16.msra.mxu0 %v3214
    %3697 = vmatprep.subr.bf16.mxu0 %v3211
    %3698 = vmatpush2.bf16.msra.mxu0 %v3210
    %3699 = vmatprep.subr.bf16.mxu0 %v3207
    %3700 = vmatpush2.bf16.msra.mxu0 %v3206
    %3701 = vmatprep.mubr.bf16.mxu0 %v3668
    %3702 = vmatmul.mubr.bf16.gmra.mxu0 %v3667
    %v3703 = vpop.f32.mrf.mxu0
    %v3704 = vadd.f32 0.0, %v3703
    %v3705 = vpop.f32.mrf.mxu0
    %v3706 = vadd.f32 0.0, %v3705
    %v3707 = vpop.f32.mrf.mxu0
    %v3708 = vpop.f32.mrf.mxu0
    %3709 = vdwg.mxu0
    %3710 = vmatprep.subr.bf16.mxu0 %v3205
    %3711 = vmatpush1.bf16.msra.mxu0 %v3204
    %3712 = vmatprep.subr.bf16.mxu0 %v3201
    %3713 = vmatpush1.bf16.msra.mxu0 %v3200
    %3714 = vmatprep.subr.bf16.mxu0 %v3197
    %3715 = vmatpush1.bf16.msra.mxu0 %v3196
    %3716 = vmatprep.subr.bf16.mxu0 %v3193
    %3717 = vmatpush1.bf16.msra.mxu0 %v3192
    %3718 = vmatprep.subr.bf16.mxu0 %v3189
    %3719 = vmatpush1.bf16.msra.mxu0 %v3188
    %3720 = vmatprep.subr.bf16.mxu0 %v3185
    %3721 = vmatpush1.bf16.msra.mxu0 %v3184
    %3722 = vmatprep.subr.bf16.mxu0 %v3181
    %3723 = vmatpush1.bf16.msra.mxu0 %v3180
    %3724 = vmatprep.subr.bf16.mxu0 %v3177
    %3725 = vmatpush1.bf16.msra.mxu0 %v3176
    %3726 = vmatprep.subr.bf16.mxu0 %v3237
    %3727 = vmatpush2.bf16.msra.mxu0 %v3236
    %3728 = vmatprep.subr.bf16.mxu0 %v3233
    %3729 = vmatpush2.bf16.msra.mxu0 %v3232
    %3730 = vmatprep.subr.bf16.mxu0 %v3229
    %3731 = vmatpush2.bf16.msra.mxu0 %v3228
    %3732 = vmatprep.subr.bf16.mxu0 %v3225
    %3733 = vmatpush2.bf16.msra.mxu0 %v3224
    %3734 = vmatprep.subr.bf16.mxu0 %v3221
    %3735 = vmatpush2.bf16.msra.mxu0 %v3220
    %3736 = vmatprep.subr.bf16.mxu0 %v3217
    %3737 = vmatpush2.bf16.msra.mxu0 %v3216
    %3738 = vmatprep.subr.bf16.mxu0 %v3213
    %3739 = vmatpush2.bf16.msra.mxu0 %v3212
    %3740 = vmatprep.subr.bf16.mxu0 %v3209
    %3741 = vmatpush2.bf16.msra.mxu0 %v3208
    %3742 = vmatprep.mubr.bf16.mxu0 %v3668
    %3743 = vmatmul.mubr.bf16.gmra.mxu0 %v3667
    %v3744 = vpop.f32.mrf.mxu0
    %v3745 = vadd.f32 0.0, %v3744
    %v3746 = vpop.f32.mrf.mxu0
    %v3747 = vadd.f32 0.0, %v3746
    %v3748 = vpop.f32.mrf.mxu0
    %v3749 = vpop.f32.mrf.mxu0
    %3750 = vdwg.mxu0
    %3751 = vmatprep.subr.bf16.mxu0 %v3527
    %3752 = vmatpush1.bf16.msra.mxu0 %v3526
    %3753 = vmatprep.subr.bf16.mxu0 %v3525
    %3754 = vmatpush1.bf16.msra.mxu0 %v3524
    %3755 = vmatprep.subr.bf16.mxu0 %v3523
    %3756 = vmatpush1.bf16.msra.mxu0 %v3522
    %3757 = vmatprep.subr.bf16.mxu0 %v3521
    %3758 = vmatpush1.bf16.msra.mxu0 %v3520
    %3759 = vmatprep.subr.bf16.mxu0 %v3519
    %3760 = vmatpush1.bf16.msra.mxu0 %v3518
    %3761 = vmatprep.subr.bf16.mxu0 %v3517
    %3762 = vmatpush1.bf16.msra.mxu0 %v3516
    %3763 = vmatprep.subr.bf16.mxu0 %v3515
    %3764 = vmatpush1.bf16.msra.mxu0 %v3514
    %3765 = vmatprep.subr.bf16.mxu0 %v3513
    %3766 = vmatpush1.bf16.msra.mxu0 %v3512
    %3767 = vmatprep.subr.bf16.mxu0 %v3543
    %3768 = vmatpush2.bf16.msra.mxu0 %v3542
    %3769 = vmatprep.subr.bf16.mxu0 %v3541
    %3770 = vmatpush2.bf16.msra.mxu0 %v3540
    %3771 = vmatprep.subr.bf16.mxu0 %v3539
    %3772 = vmatpush2.bf16.msra.mxu0 %v3538
    %3773 = vmatprep.subr.bf16.mxu0 %v3537
    %3774 = vmatpush2.bf16.msra.mxu0 %v3536
    %3775 = vmatprep.subr.bf16.mxu0 %v3535
    %3776 = vmatpush2.bf16.msra.mxu0 %v3534
    %3777 = vmatprep.subr.bf16.mxu0 %v3533
    %3778 = vmatpush2.bf16.msra.mxu0 %v3532
    %3779 = vmatprep.subr.bf16.mxu0 %v3531
    %3780 = vmatpush2.bf16.msra.mxu0 %v3530
    %3781 = vmatprep.subr.bf16.mxu0 %v3529
    %3782 = vmatpush2.bf16.msra.mxu0 %v3528
    %3783 = vmatprep.mubr.bf16.mxu0 %v3668
    %3784 = vmatmul.mubr.bf16.gmra.mxu0 %v3667
    %v3785 = vpop.f32.mrf.mxu0
    %v3786 = vadd.f32 0.0, %v3785
    %v3787 = vpop.f32.mrf.mxu0
    %v3788 = vadd.f32 0.0, %v3787
    %v3789 = vpop.f32.mrf.mxu0
    %v3790 = vpop.f32.mrf.mxu0
    %3791 = vdwg.mxu0
    %v3792 = vadd.f32 %v3661, %v3704
    %v3793 = vadd.f32 %v3662, %v3706
    %v3794 = vxor.u32 %v3792, 2147483648
    %v3795 = vxor.u32 %v3793, 2147483648
    %v3796 = vmul.f32 %v3794, 1.442695
    %v3797 = vpow.pop %v3796
    %v3798 = vmul.f32 %v3795, 1.442695
    %v3799 = vpow.pop %v3798
    %v3800 = vadd.f32 %v3797, 1.0
    %v3801 = vadd.f32 %v3799, 1.0
    %v3802 = vrcp.pop %v3800
    %v3803 = vmul.f32 1.0, %v3802
    %v3804 = vrcp.pop %v3801
    %v3805 = vmul.f32 1.0, %v3804
    %v3806 = vadd.f32 %v3745, %v925
    %v3807 = vadd.f32 %v3747, %v929
    %v3808 = vmul.f32 %v3803, %v3806
    %v3809 = vmul.f32 %v3805, %v3807
    %v3810 = vadd.f32 %v3663, %v3808
    %v3811 = vadd.f32 %v3664, %v3809
    %v3812 = vtanh.pop %v3810
    %v3813 = vtanh.pop %v3811
    %v3814 = vadd.f32 %v3665, %v3786
    %v3815 = vadd.f32 %v3666, %v3788
    %v3816 = vxor.u32 %v3814, 2147483648
    %v3817 = vxor.u32 %v3815, 2147483648
    %v3818 = vmul.f32 %v3816, 1.442695
    %v3819 = vpow.pop %v3818
    %v3820 = vmul.f32 %v3817, 1.442695
    %v3821 = vpow.pop %v3820
    %v3822 = vadd.f32 %v3819, 1.0
    %v3823 = vadd.f32 %v3821, 1.0
    %v3824 = vrcp.pop %v3822
    %v3825 = vmul.f32 1.0, %v3824
    %v3826 = vrcp.pop %v3823
    %v3827 = vmul.f32 1.0, %v3826
    %v3828 = vsub.f32 1.0, %v3825
    %v3829 = vsub.f32 1.0, %v3827
    %v3830 = vmul.f32 %v3828, %v3812
    %v3831 = vmul.f32 %v3829, %v3813
    %v3832 = vmul.f32 %v3825, %v3659
    %v3833 = vmul.f32 %v3827, %v3660
    %v3834 = vadd.f32 %v3830, %v3832
    %v3835 = vadd.f32 %v3831, %v3833
    %v3836 = vld [vmem:[#allocation3 + $0x60] sm:$0xff]
    %v3837 = vld [vmem:[#allocation3 + $0x68] sm:$0xff]
    %v3838 = vld [vmem:[#allocation3 + $0x70] sm:$0xff]
    %v3839 = vld [vmem:[#allocation3 + $0x78] sm:$0xff]
    %v3840 = vld [vmem:[#allocation3 + $0x80] sm:$0xff]
    %v3841 = vld [vmem:[#allocation3 + $0x88] sm:$0xff]
    %v3842 = vpack.c.bf16 %v3834, %v3834
    %v3843 = vpack.c.bf16 %v3835, %v3835
    %3844 = vmatprep.subr.bf16.mxu0 %v3203
    %3845 = vmatpush1.bf16.msra.mxu0 %v3202
    %3846 = vmatprep.subr.bf16.mxu0 %v3199
    %3847 = vmatpush1.bf16.msra.mxu0 %v3198
    %3848 = vmatprep.subr.bf16.mxu0 %v3195
    %3849 = vmatpush1.bf16.msra.mxu0 %v3194
    %3850 = vmatprep.subr.bf16.mxu0 %v3191
    %3851 = vmatpush1.bf16.msra.mxu0 %v3190
    %3852 = vmatprep.subr.bf16.mxu0 %v3187
    %3853 = vmatpush1.bf16.msra.mxu0 %v3186
    %3854 = vmatprep.subr.bf16.mxu0 %v3183
    %3855 = vmatpush1.bf16.msra.mxu0 %v3182
    %3856 = vmatprep.subr.bf16.mxu0 %v3179
    %3857 = vmatpush1.bf16.msra.mxu0 %v3178
    %3858 = vmatprep.subr.bf16.mxu0 %v3175
    %3859 = vmatpush1.bf16.msra.mxu0 %v3174
    %3860 = vmatprep.subr.bf16.mxu0 %v3235
    %3861 = vmatpush2.bf16.msra.mxu0 %v3234
    %3862 = vmatprep.subr.bf16.mxu0 %v3231
    %3863 = vmatpush2.bf16.msra.mxu0 %v3230
    %3864 = vmatprep.subr.bf16.mxu0 %v3227
    %3865 = vmatpush2.bf16.msra.mxu0 %v3226
    %3866 = vmatprep.subr.bf16.mxu0 %v3223
    %3867 = vmatpush2.bf16.msra.mxu0 %v3222
    %3868 = vmatprep.subr.bf16.mxu0 %v3219
    %3869 = vmatpush2.bf16.msra.mxu0 %v3218
    %3870 = vmatprep.subr.bf16.mxu0 %v3215
    %3871 = vmatpush2.bf16.msra.mxu0 %v3214
    %3872 = vmatprep.subr.bf16.mxu0 %v3211
    %3873 = vmatpush2.bf16.msra.mxu0 %v3210
    %3874 = vmatprep.subr.bf16.mxu0 %v3207
    %3875 = vmatpush2.bf16.msra.mxu0 %v3206
    %3876 = vmatprep.mubr.bf16.mxu0 %v3843
    %3877 = vmatmul.mubr.bf16.gmra.mxu0 %v3842
    %v3878 = vpop.f32.mrf.mxu0
    %v3879 = vadd.f32 0.0, %v3878
    %v3880 = vpop.f32.mrf.mxu0
    %v3881 = vadd.f32 0.0, %v3880
    %v3882 = vpop.f32.mrf.mxu0
    %v3883 = vpop.f32.mrf.mxu0
    %3884 = vdwg.mxu0
    %3885 = vmatprep.subr.bf16.mxu0 %v3205
    %3886 = vmatpush1.bf16.msra.mxu0 %v3204
    %3887 = vmatprep.subr.bf16.mxu0 %v3201
    %3888 = vmatpush1.bf16.msra.mxu0 %v3200
    %3889 = vmatprep.subr.bf16.mxu0 %v3197
    %3890 = vmatpush1.bf16.msra.mxu0 %v3196
    %3891 = vmatprep.subr.bf16.mxu0 %v3193
    %3892 = vmatpush1.bf16.msra.mxu0 %v3192
    %3893 = vmatprep.subr.bf16.mxu0 %v3189
    %3894 = vmatpush1.bf16.msra.mxu0 %v3188
    %3895 = vmatprep.subr.bf16.mxu0 %v3185
    %3896 = vmatpush1.bf16.msra.mxu0 %v3184
    %3897 = vmatprep.subr.bf16.mxu0 %v3181
    %3898 = vmatpush1.bf16.msra.mxu0 %v3180
    %3899 = vmatprep.subr.bf16.mxu0 %v3177
    %3900 = vmatpush1.bf16.msra.mxu0 %v3176
    %3901 = vmatprep.subr.bf16.mxu0 %v3237
    %3902 = vmatpush2.bf16.msra.mxu0 %v3236
    %3903 = vmatprep.subr.bf16.mxu0 %v3233
    %3904 = vmatpush2.bf16.msra.mxu0 %v3232
    %3905 = vmatprep.subr.bf16.mxu0 %v3229
    %3906 = vmatpush2.bf16.msra.mxu0 %v3228
    %3907 = vmatprep.subr.bf16.mxu0 %v3225
    %3908 = vmatpush2.bf16.msra.mxu0 %v3224
    %3909 = vmatprep.subr.bf16.mxu0 %v3221
    %3910 = vmatpush2.bf16.msra.mxu0 %v3220
    %3911 = vmatprep.subr.bf16.mxu0 %v3217
    %3912 = vmatpush2.bf16.msra.mxu0 %v3216
    %3913 = vmatprep.subr.bf16.mxu0 %v3213
    %3914 = vmatpush2.bf16.msra.mxu0 %v3212
    %3915 = vmatprep.subr.bf16.mxu0 %v3209
    %3916 = vmatpush2.bf16.msra.mxu0 %v3208
    %3917 = vmatprep.mubr.bf16.mxu0 %v3843
    %3918 = vmatmul.mubr.bf16.gmra.mxu0 %v3842
    %v3919 = vpop.f32.mrf.mxu0
    %v3920 = vadd.f32 0.0, %v3919
    %v3921 = vpop.f32.mrf.mxu0
    %v3922 = vadd.f32 0.0, %v3921
    %v3923 = vpop.f32.mrf.mxu0
    %v3924 = vpop.f32.mrf.mxu0
    %3925 = vdwg.mxu0
    %3926 = vmatprep.subr.bf16.mxu0 %v3527
    %3927 = vmatpush1.bf16.msra.mxu0 %v3526
    %3928 = vmatprep.subr.bf16.mxu0 %v3525
    %3929 = vmatpush1.bf16.msra.mxu0 %v3524
    %3930 = vmatprep.subr.bf16.mxu0 %v3523
    %3931 = vmatpush1.bf16.msra.mxu0 %v3522
    %3932 = vmatprep.subr.bf16.mxu0 %v3521
    %3933 = vmatpush1.bf16.msra.mxu0 %v3520
    %3934 = vmatprep.subr.bf16.mxu0 %v3519
    %3935 = vmatpush1.bf16.msra.mxu0 %v3518
    %3936 = vmatprep.subr.bf16.mxu0 %v3517
    %3937 = vmatpush1.bf16.msra.mxu0 %v3516
    %3938 = vmatprep.subr.bf16.mxu0 %v3515
    %3939 = vmatpush1.bf16.msra.mxu0 %v3514
    %3940 = vmatprep.subr.bf16.mxu0 %v3513
    %3941 = vmatpush1.bf16.msra.mxu0 %v3512
    %3942 = vmatprep.subr.bf16.mxu0 %v3543
    %3943 = vmatpush2.bf16.msra.mxu0 %v3542
    %3944 = vmatprep.subr.bf16.mxu0 %v3541
    %3945 = vmatpush2.bf16.msra.mxu0 %v3540
    %3946 = vmatprep.subr.bf16.mxu0 %v3539
    %3947 = vmatpush2.bf16.msra.mxu0 %v3538
    %3948 = vmatprep.subr.bf16.mxu0 %v3537
    %3949 = vmatpush2.bf16.msra.mxu0 %v3536
    %3950 = vmatprep.subr.bf16.mxu0 %v3535
    %3951 = vmatpush2.bf16.msra.mxu0 %v3534
    %3952 = vmatprep.subr.bf16.mxu0 %v3533
    %3953 = vmatpush2.bf16.msra.mxu0 %v3532
    %3954 = vmatprep.subr.bf16.mxu0 %v3531
    %3955 = vmatpush2.bf16.msra.mxu0 %v3530
    %3956 = vmatprep.subr.bf16.mxu0 %v3529
    %3957 = vmatpush2.bf16.msra.mxu0 %v3528
    %3958 = vmatprep.mubr.bf16.mxu0 %v3843
    %3959 = vmatmul.mubr.bf16.gmra.mxu0 %v3842
    %v3960 = vpop.f32.mrf.mxu0
    %v3961 = vadd.f32 0.0, %v3960
    %v3962 = vpop.f32.mrf.mxu0
    %v3963 = vadd.f32 0.0, %v3962
    %v3964 = vpop.f32.mrf.mxu0
    %v3965 = vpop.f32.mrf.mxu0
    %3966 = vdwg.mxu0
    %v3967 = vadd.f32 %v3836, %v3879
    %v3968 = vadd.f32 %v3837, %v3881
    %v3969 = vxor.u32 %v3967, 2147483648
    %v3970 = vxor.u32 %v3968, 2147483648
    %v3971 = vmul.f32 %v3969, 1.442695
    %v3972 = vpow.pop %v3971
    %v3973 = vmul.f32 %v3970, 1.442695
    %v3974 = vpow.pop %v3973
    %v3975 = vadd.f32 %v3972, 1.0
    %v3976 = vadd.f32 %v3974, 1.0
    %v3977 = vrcp.pop %v3975
    %v3978 = vmul.f32 1.0, %v3977
    %v3979 = vrcp.pop %v3976
    %v3980 = vmul.f32 1.0, %v3979
    %v3981 = vadd.f32 %v3920, %v925
    %v3982 = vadd.f32 %v3922, %v929
    %v3983 = vmul.f32 %v3978, %v3981
    %v3984 = vmul.f32 %v3980, %v3982
    %v3985 = vadd.f32 %v3838, %v3983
    %v3986 = vadd.f32 %v3839, %v3984
    %v3987 = vtanh.pop %v3985
    %v3988 = vtanh.pop %v3986
    %v3989 = vadd.f32 %v3840, %v3961
    %v3990 = vadd.f32 %v3841, %v3963
    %v3991 = vxor.u32 %v3989, 2147483648
    %v3992 = vxor.u32 %v3990, 2147483648
    %v3993 = vmul.f32 %v3991, 1.442695
    %v3994 = vpow.pop %v3993
    %v3995 = vmul.f32 %v3992, 1.442695
    %v3996 = vpow.pop %v3995
    %v3997 = vadd.f32 %v3994, 1.0
    %v3998 = vadd.f32 %v3996, 1.0
    %v3999 = vrcp.pop %v3997
    %v4000 = vmul.f32 1.0, %v3999
    %v4001 = vrcp.pop %v3998
    %v4002 = vmul.f32 1.0, %v4001
    %v4003 = vsub.f32 1.0, %v4000
    %v4004 = vsub.f32 1.0, %v4002
    %v4005 = vmul.f32 %v4003, %v3987
    %v4006 = vmul.f32 %v4004, %v3988
    %v4007 = vmul.f32 %v4000, %v3834
    %v4008 = vmul.f32 %v4002, %v3835
    %v4009 = vadd.f32 %v4005, %v4007
    %v4010 = vadd.f32 %v4006, %v4008
    %v4011 = vld [vmem:[#allocation3 + $0x90] sm:$0xff]
    %v4012 = vld [vmem:[#allocation3 + $0x98] sm:$0xff]
    %v4013 = vld [vmem:[#allocation3 + $0xa0] sm:$0xff]
    %v4014 = vld [vmem:[#allocation3 + $0xa8] sm:$0xff]
    %v4015 = vld [vmem:[#allocation3 + $0xb0] sm:$0xff]
    %v4016 = vld [vmem:[#allocation3 + $0xb8] sm:$0xff]
    %v4017 = vpack.c.bf16 %v4009, %v4009
    %v4018 = vpack.c.bf16 %v4010, %v4010
    %4019 = vmatprep.subr.bf16.mxu0 %v3203
    %4020 = vmatpush1.bf16.msra.mxu0 %v3202
    %4021 = vmatprep.subr.bf16.mxu0 %v3199
    %4022 = vmatpush1.bf16.msra.mxu0 %v3198
    %4023 = vmatprep.subr.bf16.mxu0 %v3195
    %4024 = vmatpush1.bf16.msra.mxu0 %v3194
    %4025 = vmatprep.subr.bf16.mxu0 %v3191
    %4026 = vmatpush1.bf16.msra.mxu0 %v3190
    %4027 = vmatprep.subr.bf16.mxu0 %v3187
    %4028 = vmatpush1.bf16.msra.mxu0 %v3186
    %4029 = vmatprep.subr.bf16.mxu0 %v3183
    %4030 = vmatpush1.bf16.msra.mxu0 %v3182
    %4031 = vmatprep.subr.bf16.mxu0 %v3179
    %4032 = vmatpush1.bf16.msra.mxu0 %v3178
    %4033 = vmatprep.subr.bf16.mxu0 %v3175
    %4034 = vmatpush1.bf16.msra.mxu0 %v3174
    %4035 = vmatprep.subr.bf16.mxu0 %v3235
    %4036 = vmatpush2.bf16.msra.mxu0 %v3234
    %4037 = vmatprep.subr.bf16.mxu0 %v3231
    %4038 = vmatpush2.bf16.msra.mxu0 %v3230
    %4039 = vmatprep.subr.bf16.mxu0 %v3227
    %4040 = vmatpush2.bf16.msra.mxu0 %v3226
    %4041 = vmatprep.subr.bf16.mxu0 %v3223
    %4042 = vmatpush2.bf16.msra.mxu0 %v3222
    %4043 = vmatprep.subr.bf16.mxu0 %v3219
    %4044 = vmatpush2.bf16.msra.mxu0 %v3218
    %4045 = vmatprep.subr.bf16.mxu0 %v3215
    %4046 = vmatpush2.bf16.msra.mxu0 %v3214
    %4047 = vmatprep.subr.bf16.mxu0 %v3211
    %4048 = vmatpush2.bf16.msra.mxu0 %v3210
    %4049 = vmatprep.subr.bf16.mxu0 %v3207
    %4050 = vmatpush2.bf16.msra.mxu0 %v3206
    %4051 = vmatprep.mubr.bf16.mxu0 %v4018
    %4052 = vmatmul.mubr.bf16.gmra.mxu0 %v4017
    %v4053 = vpop.f32.mrf.mxu0
    %v4054 = vadd.f32 0.0, %v4053
    %v4055 = vpop.f32.mrf.mxu0
    %v4056 = vadd.f32 0.0, %v4055
    %v4057 = vpop.f32.mrf.mxu0
    %v4058 = vpop.f32.mrf.mxu0
    %4059 = vdwg.mxu0
    %4060 = vmatprep.subr.bf16.mxu0 %v3205
    %4061 = vmatpush1.bf16.msra.mxu0 %v3204
    %4062 = vmatprep.subr.bf16.mxu0 %v3201
    %4063 = vmatpush1.bf16.msra.mxu0 %v3200
    %4064 = vmatprep.subr.bf16.mxu0 %v3197
    %4065 = vmatpush1.bf16.msra.mxu0 %v3196
    %4066 = vmatprep.subr.bf16.mxu0 %v3193
    %4067 = vmatpush1.bf16.msra.mxu0 %v3192
    %4068 = vmatprep.subr.bf16.mxu0 %v3189
    %4069 = vmatpush1.bf16.msra.mxu0 %v3188
    %4070 = vmatprep.subr.bf16.mxu0 %v3185
    %4071 = vmatpush1.bf16.msra.mxu0 %v3184
    %4072 = vmatprep.subr.bf16.mxu0 %v3181
    %4073 = vmatpush1.bf16.msra.mxu0 %v3180
    %4074 = vmatprep.subr.bf16.mxu0 %v3177
    %4075 = vmatpush1.bf16.msra.mxu0 %v3176
    %4076 = vmatprep.subr.bf16.mxu0 %v3237
    %4077 = vmatpush2.bf16.msra.mxu0 %v3236
    %4078 = vmatprep.subr.bf16.mxu0 %v3233
    %4079 = vmatpush2.bf16.msra.mxu0 %v3232
    %4080 = vmatprep.subr.bf16.mxu0 %v3229
    %4081 = vmatpush2.bf16.msra.mxu0 %v3228
    %4082 = vmatprep.subr.bf16.mxu0 %v3225
    %4083 = vmatpush2.bf16.msra.mxu0 %v3224
    %4084 = vmatprep.subr.bf16.mxu0 %v3221
    %4085 = vmatpush2.bf16.msra.mxu0 %v3220
    %4086 = vmatprep.subr.bf16.mxu0 %v3217
    %4087 = vmatpush2.bf16.msra.mxu0 %v3216
    %4088 = vmatprep.subr.bf16.mxu0 %v3213
    %4089 = vmatpush2.bf16.msra.mxu0 %v3212
    %4090 = vmatprep.subr.bf16.mxu0 %v3209
    %4091 = vmatpush2.bf16.msra.mxu0 %v3208
    %4092 = vmatprep.mubr.bf16.mxu0 %v4018
    %4093 = vmatmul.mubr.bf16.gmra.mxu0 %v4017
    %v4094 = vpop.f32.mrf.mxu0
    %v4095 = vadd.f32 0.0, %v4094
    %v4096 = vpop.f32.mrf.mxu0
    %v4097 = vadd.f32 0.0, %v4096
    %v4098 = vpop.f32.mrf.mxu0
    %v4099 = vpop.f32.mrf.mxu0
    %4100 = vdwg.mxu0
    %4101 = vmatprep.subr.bf16.mxu0 %v3527
    %4102 = vmatpush1.bf16.msra.mxu0 %v3526
    %4103 = vmatprep.subr.bf16.mxu0 %v3525
    %4104 = vmatpush1.bf16.msra.mxu0 %v3524
    %4105 = vmatprep.subr.bf16.mxu0 %v3523
    %4106 = vmatpush1.bf16.msra.mxu0 %v3522
    %4107 = vmatprep.subr.bf16.mxu0 %v3521
    %4108 = vmatpush1.bf16.msra.mxu0 %v3520
    %4109 = vmatprep.subr.bf16.mxu0 %v3519
    %4110 = vmatpush1.bf16.msra.mxu0 %v3518
    %4111 = vmatprep.subr.bf16.mxu0 %v3517
    %4112 = vmatpush1.bf16.msra.mxu0 %v3516
    %4113 = vmatprep.subr.bf16.mxu0 %v3515
    %4114 = vmatpush1.bf16.msra.mxu0 %v3514
    %4115 = vmatprep.subr.bf16.mxu0 %v3513
    %4116 = vmatpush1.bf16.msra.mxu0 %v3512
    %4117 = vmatprep.subr.bf16.mxu0 %v3543
    %4118 = vmatpush2.bf16.msra.mxu0 %v3542
    %4119 = vmatprep.subr.bf16.mxu0 %v3541
    %4120 = vmatpush2.bf16.msra.mxu0 %v3540
    %4121 = vmatprep.subr.bf16.mxu0 %v3539
    %4122 = vmatpush2.bf16.msra.mxu0 %v3538
    %4123 = vmatprep.subr.bf16.mxu0 %v3537
    %4124 = vmatpush2.bf16.msra.mxu0 %v3536
    %4125 = vmatprep.subr.bf16.mxu0 %v3535
    %4126 = vmatpush2.bf16.msra.mxu0 %v3534
    %4127 = vmatprep.subr.bf16.mxu0 %v3533
    %4128 = vmatpush2.bf16.msra.mxu0 %v3532
    %4129 = vmatprep.subr.bf16.mxu0 %v3531
    %4130 = vmatpush2.bf16.msra.mxu0 %v3530
    %4131 = vmatprep.subr.bf16.mxu0 %v3529
    %4132 = vmatpush2.bf16.msra.mxu0 %v3528
    %4133 = vmatprep.mubr.bf16.mxu0 %v4018
    %4134 = vmatmul.mubr.bf16.gmra.mxu0 %v4017
    %v4135 = vpop.f32.mrf.mxu0
    %v4136 = vadd.f32 0.0, %v4135
    %v4137 = vpop.f32.mrf.mxu0
    %v4138 = vadd.f32 0.0, %v4137
    %v4139 = vpop.f32.mrf.mxu0
    %v4140 = vpop.f32.mrf.mxu0
    %4141 = vdwg.mxu0
    %v4142 = vadd.f32 %v4011, %v4054
    %v4143 = vadd.f32 %v4012, %v4056
    %v4144 = vxor.u32 %v4142, 2147483648
    %v4145 = vxor.u32 %v4143, 2147483648
    %v4146 = vmul.f32 %v4144, 1.442695
    %v4147 = vpow.pop %v4146
    %v4148 = vmul.f32 %v4145, 1.442695
    %v4149 = vpow.pop %v4148
    %v4150 = vadd.f32 %v4147, 1.0
    %v4151 = vadd.f32 %v4149, 1.0
    %v4152 = vrcp.pop %v4150
    %v4153 = vmul.f32 1.0, %v4152
    %v4154 = vrcp.pop %v4151
    %v4155 = vmul.f32 1.0, %v4154
    %v4156 = vadd.f32 %v4095, %v925
    %v4157 = vadd.f32 %v4097, %v929
    %v4158 = vmul.f32 %v4153, %v4156
    %v4159 = vmul.f32 %v4155, %v4157
    %v4160 = vadd.f32 %v4013, %v4158
    %v4161 = vadd.f32 %v4014, %v4159
    %v4162 = vtanh.pop %v4160
    %v4163 = vtanh.pop %v4161
    %v4164 = vadd.f32 %v4015, %v4136
    %v4165 = vadd.f32 %v4016, %v4138
    %v4166 = vxor.u32 %v4164, 2147483648
    %v4167 = vxor.u32 %v4165, 2147483648
    %v4168 = vmul.f32 %v4166, 1.442695
    %v4169 = vpow.pop %v4168
    %v4170 = vmul.f32 %v4167, 1.442695
    %v4171 = vpow.pop %v4170
    %v4172 = vadd.f32 %v4169, 1.0
    %v4173 = vadd.f32 %v4171, 1.0
    %v4174 = vrcp.pop %v4172
    %v4175 = vmul.f32 1.0, %v4174
    %v4176 = vrcp.pop %v4173
    %v4177 = vmul.f32 1.0, %v4176
    %v4178 = vsub.f32 1.0, %v4175
    %v4179 = vsub.f32 1.0, %v4177
    %v4180 = vmul.f32 %v4178, %v4162
    %v4181 = vmul.f32 %v4179, %v4163
    %v4182 = vmul.f32 %v4175, %v4009
    %v4183 = vmul.f32 %v4177, %v4010
    %v4184 = vadd.f32 %v4180, %v4182
    %v4185 = vadd.f32 %v4181, %v4183
    %v4186 = vld [vmem:[#allocation3 + $0xc0] sm:$0xff]
    %v4187 = vld [vmem:[#allocation3 + $0xc8] sm:$0xff]
    %v4188 = vld [vmem:[#allocation3 + $0xd0] sm:$0xff]
    %v4189 = vld [vmem:[#allocation3 + $0xd8] sm:$0xff]
    %v4190 = vld [vmem:[#allocation3 + $0xe0] sm:$0xff]
    %v4191 = vld [vmem:[#allocation3 + $0xe8] sm:$0xff]
    %v4192 = vpack.c.bf16 %v4184, %v4184
    %v4193 = vpack.c.bf16 %v4185, %v4185
    %4194 = vmatprep.subr.bf16.mxu0 %v3203
    %4195 = vmatpush1.bf16.msra.mxu0 %v3202
    %4196 = vmatprep.subr.bf16.mxu0 %v3199
    %4197 = vmatpush1.bf16.msra.mxu0 %v3198
    %4198 = vmatprep.subr.bf16.mxu0 %v3195
    %4199 = vmatpush1.bf16.msra.mxu0 %v3194
    %4200 = vmatprep.subr.bf16.mxu0 %v3191
    %4201 = vmatpush1.bf16.msra.mxu0 %v3190
    %4202 = vmatprep.subr.bf16.mxu0 %v3187
    %4203 = vmatpush1.bf16.msra.mxu0 %v3186
    %4204 = vmatprep.subr.bf16.mxu0 %v3183
    %4205 = vmatpush1.bf16.msra.mxu0 %v3182
    %4206 = vmatprep.subr.bf16.mxu0 %v3179
    %4207 = vmatpush1.bf16.msra.mxu0 %v3178
    %4208 = vmatprep.subr.bf16.mxu0 %v3175
    %4209 = vmatpush1.bf16.msra.mxu0 %v3174
    %4210 = vmatprep.subr.bf16.mxu0 %v3235
    %4211 = vmatpush2.bf16.msra.mxu0 %v3234
    %4212 = vmatprep.subr.bf16.mxu0 %v3231
    %4213 = vmatpush2.bf16.msra.mxu0 %v3230
    %4214 = vmatprep.subr.bf16.mxu0 %v3227
    %4215 = vmatpush2.bf16.msra.mxu0 %v3226
    %4216 = vmatprep.subr.bf16.mxu0 %v3223
    %4217 = vmatpush2.bf16.msra.mxu0 %v3222
    %4218 = vmatprep.subr.bf16.mxu0 %v3219
    %4219 = vmatpush2.bf16.msra.mxu0 %v3218
    %4220 = vmatprep.subr.bf16.mxu0 %v3215
    %4221 = vmatpush2.bf16.msra.mxu0 %v3214
    %4222 = vmatprep.subr.bf16.mxu0 %v3211
    %4223 = vmatpush2.bf16.msra.mxu0 %v3210
    %4224 = vmatprep.subr.bf16.mxu0 %v3207
    %4225 = vmatpush2.bf16.msra.mxu0 %v3206
    %4226 = vmatprep.mubr.bf16.mxu0 %v4193
    %4227 = vmatmul.mubr.bf16.gmra.mxu0 %v4192
    %v4228 = vpop.f32.mrf.mxu0
    %v4229 = vadd.f32 0.0, %v4228
    %v4230 = vpop.f32.mrf.mxu0
    %v4231 = vadd.f32 0.0, %v4230
    %v4232 = vpop.f32.mrf.mxu0
    %v4233 = vpop.f32.mrf.mxu0
    %4234 = vdwg.mxu0
    %4235 = vmatprep.subr.bf16.mxu0 %v3205
    %4236 = vmatpush1.bf16.msra.mxu0 %v3204
    %4237 = vmatprep.subr.bf16.mxu0 %v3201
    %4238 = vmatpush1.bf16.msra.mxu0 %v3200
    %4239 = vmatprep.subr.bf16.mxu0 %v3197
    %4240 = vmatpush1.bf16.msra.mxu0 %v3196
    %4241 = vmatprep.subr.bf16.mxu0 %v3193
    %4242 = vmatpush1.bf16.msra.mxu0 %v3192
    %4243 = vmatprep.subr.bf16.mxu0 %v3189
    %4244 = vmatpush1.bf16.msra.mxu0 %v3188
    %4245 = vmatprep.subr.bf16.mxu0 %v3185
    %4246 = vmatpush1.bf16.msra.mxu0 %v3184
    %4247 = vmatprep.subr.bf16.mxu0 %v3181
    %4248 = vmatpush1.bf16.msra.mxu0 %v3180
    %4249 = vmatprep.subr.bf16.mxu0 %v3177
    %4250 = vmatpush1.bf16.msra.mxu0 %v3176
    %4251 = vmatprep.subr.bf16.mxu0 %v3237
    %4252 = vmatpush2.bf16.msra.mxu0 %v3236
    %4253 = vmatprep.subr.bf16.mxu0 %v3233
    %4254 = vmatpush2.bf16.msra.mxu0 %v3232
    %4255 = vmatprep.subr.bf16.mxu0 %v3229
    %4256 = vmatpush2.bf16.msra.mxu0 %v3228
    %4257 = vmatprep.subr.bf16.mxu0 %v3225
    %4258 = vmatpush2.bf16.msra.mxu0 %v3224
    %4259 = vmatprep.subr.bf16.mxu0 %v3221
    %4260 = vmatpush2.bf16.msra.mxu0 %v3220
    %4261 = vmatprep.subr.bf16.mxu0 %v3217
    %4262 = vmatpush2.bf16.msra.mxu0 %v3216
    %4263 = vmatprep.subr.bf16.mxu0 %v3213
    %4264 = vmatpush2.bf16.msra.mxu0 %v3212
    %4265 = vmatprep.subr.bf16.mxu0 %v3209
    %4266 = vmatpush2.bf16.msra.mxu0 %v3208
    %4267 = vmatprep.mubr.bf16.mxu0 %v4193
    %4268 = vmatmul.mubr.bf16.gmra.mxu0 %v4192
    %v4269 = vpop.f32.mrf.mxu0
    %v4270 = vadd.f32 0.0, %v4269
    %v4271 = vpop.f32.mrf.mxu0
    %v4272 = vadd.f32 0.0, %v4271
    %v4273 = vpop.f32.mrf.mxu0
    %v4274 = vpop.f32.mrf.mxu0
    %4275 = vdwg.mxu0
    %4276 = vmatprep.subr.bf16.mxu0 %v3527
    %4277 = vmatpush1.bf16.msra.mxu0 %v3526
    %4278 = vmatprep.subr.bf16.mxu0 %v3525
    %4279 = vmatpush1.bf16.msra.mxu0 %v3524
    %4280 = vmatprep.subr.bf16.mxu0 %v3523
    %4281 = vmatpush1.bf16.msra.mxu0 %v3522
    %4282 = vmatprep.subr.bf16.mxu0 %v3521
    %4283 = vmatpush1.bf16.msra.mxu0 %v3520
    %4284 = vmatprep.subr.bf16.mxu0 %v3519
    %4285 = vmatpush1.bf16.msra.mxu0 %v3518
    %4286 = vmatprep.subr.bf16.mxu0 %v3517
    %4287 = vmatpush1.bf16.msra.mxu0 %v3516
    %4288 = vmatprep.subr.bf16.mxu0 %v3515
    %4289 = vmatpush1.bf16.msra.mxu0 %v3514
    %4290 = vmatprep.subr.bf16.mxu0 %v3513
    %4291 = vmatpush1.bf16.msra.mxu0 %v3512
    %4292 = vmatprep.subr.bf16.mxu0 %v3543
    %4293 = vmatpush2.bf16.msra.mxu0 %v3542
    %4294 = vmatprep.subr.bf16.mxu0 %v3541
    %4295 = vmatpush2.bf16.msra.mxu0 %v3540
    %4296 = vmatprep.subr.bf16.mxu0 %v3539
    %4297 = vmatpush2.bf16.msra.mxu0 %v3538
    %4298 = vmatprep.subr.bf16.mxu0 %v3537
    %4299 = vmatpush2.bf16.msra.mxu0 %v3536
    %4300 = vmatprep.subr.bf16.mxu0 %v3535
    %4301 = vmatpush2.bf16.msra.mxu0 %v3534
    %4302 = vmatprep.subr.bf16.mxu0 %v3533
    %4303 = vmatpush2.bf16.msra.mxu0 %v3532
    %4304 = vmatprep.subr.bf16.mxu0 %v3531
    %4305 = vmatpush2.bf16.msra.mxu0 %v3530
    %4306 = vmatprep.subr.bf16.mxu0 %v3529
    %4307 = vmatpush2.bf16.msra.mxu0 %v3528
    %4308 = vmatprep.mubr.bf16.mxu0 %v4193
    %4309 = vmatmul.mubr.bf16.gmra.mxu0 %v4192
    %v4310 = vpop.f32.mrf.mxu0
    %v4311 = vadd.f32 0.0, %v4310
    %v4312 = vpop.f32.mrf.mxu0
    %v4313 = vadd.f32 0.0, %v4312
    %v4314 = vpop.f32.mrf.mxu0
    %v4315 = vpop.f32.mrf.mxu0
    %4316 = vdwg.mxu0
    %v4317 = vadd.f32 %v4186, %v4229
    %v4318 = vadd.f32 %v4187, %v4231
    %v4319 = vxor.u32 %v4317, 2147483648
    %v4320 = vxor.u32 %v4318, 2147483648
    %v4321 = vmul.f32 %v4319, 1.442695
    %v4322 = vpow.pop %v4321
    %v4323 = vmul.f32 %v4320, 1.442695
    %v4324 = vpow.pop %v4323
    %v4325 = vadd.f32 %v4322, 1.0
    %v4326 = vadd.f32 %v4324, 1.0
    %v4327 = vrcp.pop %v4325
    %v4328 = vmul.f32 1.0, %v4327
    %v4329 = vrcp.pop %v4326
    %v4330 = vmul.f32 1.0, %v4329
    %v4331 = vadd.f32 %v4270, %v925
    %v4332 = vadd.f32 %v4272, %v929
    %v4333 = vmul.f32 %v4328, %v4331
    %v4334 = vmul.f32 %v4330, %v4332
    %v4335 = vadd.f32 %v4188, %v4333
    %v4336 = vadd.f32 %v4189, %v4334
    %v4337 = vtanh.pop %v4335
    %v4338 = vtanh.pop %v4336
    %v4339 = vadd.f32 %v4190, %v4311
    %v4340 = vadd.f32 %v4191, %v4313
    %v4341 = vxor.u32 %v4339, 2147483648
    %v4342 = vxor.u32 %v4340, 2147483648
    %v4343 = vmul.f32 %v4341, 1.442695
    %v4344 = vpow.pop %v4343
    %v4345 = vmul.f32 %v4342, 1.442695
    %v4346 = vpow.pop %v4345
    %v4347 = vadd.f32 %v4344, 1.0
    %v4348 = vadd.f32 %v4346, 1.0
    %v4349 = vrcp.pop %v4347
    %v4350 = vmul.f32 1.0, %v4349
    %v4351 = vrcp.pop %v4348
    %v4352 = vmul.f32 1.0, %v4351
    %v4353 = vsub.f32 1.0, %v4350
    %v4354 = vsub.f32 1.0, %v4352
    %v4355 = vmul.f32 %v4353, %v4337
    %v4356 = vmul.f32 %v4354, %v4338
    %v4357 = vmul.f32 %v4350, %v4184
    %v4358 = vmul.f32 %v4352, %v4185
    %v4359 = vadd.f32 %v4355, %v4357
    %v4360 = vadd.f32 %v4356, %v4358
    %v4361 = vld [vmem:[#allocation3 + $0xf0] sm:$0xff]
    %v4362 = vld [vmem:[#allocation3 + $0xf8] sm:$0xff]
    %v4363 = vld [vmem:[#allocation3 + $0x100] sm:$0xff]
    %v4364 = vld [vmem:[#allocation3 + $0x108] sm:$0xff]
    %v4365 = vld [vmem:[#allocation3 + $0x110] sm:$0xff]
    %v4366 = vld [vmem:[#allocation3 + $0x118] sm:$0xff]
    %v4367 = vpack.c.bf16 %v4359, %v4359
    %v4368 = vpack.c.bf16 %v4360, %v4360
    %4369 = vmatprep.subr.bf16.mxu0 %v3203
    %4370 = vmatpush1.bf16.msra.mxu0 %v3202
    %4371 = vmatprep.subr.bf16.mxu0 %v3199
    %4372 = vmatpush1.bf16.msra.mxu0 %v3198
    %4373 = vmatprep.subr.bf16.mxu0 %v3195
    %4374 = vmatpush1.bf16.msra.mxu0 %v3194
    %4375 = vmatprep.subr.bf16.mxu0 %v3191
    %4376 = vmatpush1.bf16.msra.mxu0 %v3190
    %4377 = vmatprep.subr.bf16.mxu0 %v3187
    %4378 = vmatpush1.bf16.msra.mxu0 %v3186
    %4379 = vmatprep.subr.bf16.mxu0 %v3183
    %4380 = vmatpush1.bf16.msra.mxu0 %v3182
    %4381 = vmatprep.subr.bf16.mxu0 %v3179
    %4382 = vmatpush1.bf16.msra.mxu0 %v3178
    %4383 = vmatprep.subr.bf16.mxu0 %v3175
    %4384 = vmatpush1.bf16.msra.mxu0 %v3174
    %4385 = vmatprep.subr.bf16.mxu0 %v3235
    %4386 = vmatpush2.bf16.msra.mxu0 %v3234
    %4387 = vmatprep.subr.bf16.mxu0 %v3231
    %4388 = vmatpush2.bf16.msra.mxu0 %v3230
    %4389 = vmatprep.subr.bf16.mxu0 %v3227
    %4390 = vmatpush2.bf16.msra.mxu0 %v3226
    %4391 = vmatprep.subr.bf16.mxu0 %v3223
    %4392 = vmatpush2.bf16.msra.mxu0 %v3222
    %4393 = vmatprep.subr.bf16.mxu0 %v3219
    %4394 = vmatpush2.bf16.msra.mxu0 %v3218
    %4395 = vmatprep.subr.bf16.mxu0 %v3215
    %4396 = vmatpush2.bf16.msra.mxu0 %v3214
    %4397 = vmatprep.subr.bf16.mxu0 %v3211
    %4398 = vmatpush2.bf16.msra.mxu0 %v3210
    %4399 = vmatprep.subr.bf16.mxu0 %v3207
    %4400 = vmatpush2.bf16.msra.mxu0 %v3206
    %4401 = vmatprep.mubr.bf16.mxu0 %v4368
    %4402 = vmatmul.mubr.bf16.gmra.mxu0 %v4367
    %v4403 = vpop.f32.mrf.mxu0
    %v4404 = vadd.f32 0.0, %v4403
    %v4405 = vpop.f32.mrf.mxu0
    %v4406 = vadd.f32 0.0, %v4405
    %v4407 = vpop.f32.mrf.mxu0
    %v4408 = vpop.f32.mrf.mxu0
    %4409 = vdwg.mxu0
    %4410 = vmatprep.subr.bf16.mxu0 %v3205
    %4411 = vmatpush1.bf16.msra.mxu0 %v3204
    %4412 = vmatprep.subr.bf16.mxu0 %v3201
    %4413 = vmatpush1.bf16.msra.mxu0 %v3200
    %4414 = vmatprep.subr.bf16.mxu0 %v3197
    %4415 = vmatpush1.bf16.msra.mxu0 %v3196
    %4416 = vmatprep.subr.bf16.mxu0 %v3193
    %4417 = vmatpush1.bf16.msra.mxu0 %v3192
    %4418 = vmatprep.subr.bf16.mxu0 %v3189
    %4419 = vmatpush1.bf16.msra.mxu0 %v3188
    %4420 = vmatprep.subr.bf16.mxu0 %v3185
    %4421 = vmatpush1.bf16.msra.mxu0 %v3184
    %4422 = vmatprep.subr.bf16.mxu0 %v3181
    %4423 = vmatpush1.bf16.msra.mxu0 %v3180
    %4424 = vmatprep.subr.bf16.mxu0 %v3177
    %4425 = vmatpush1.bf16.msra.mxu0 %v3176
    %4426 = vmatprep.subr.bf16.mxu0 %v3237
    %4427 = vmatpush2.bf16.msra.mxu0 %v3236
    %4428 = vmatprep.subr.bf16.mxu0 %v3233
    %4429 = vmatpush2.bf16.msra.mxu0 %v3232
    %4430 = vmatprep.subr.bf16.mxu0 %v3229
    %4431 = vmatpush2.bf16.msra.mxu0 %v3228
    %4432 = vmatprep.subr.bf16.mxu0 %v3225
    %4433 = vmatpush2.bf16.msra.mxu0 %v3224
    %4434 = vmatprep.subr.bf16.mxu0 %v3221
    %4435 = vmatpush2.bf16.msra.mxu0 %v3220
    %4436 = vmatprep.subr.bf16.mxu0 %v3217
    %4437 = vmatpush2.bf16.msra.mxu0 %v3216
    %4438 = vmatprep.subr.bf16.mxu0 %v3213
    %4439 = vmatpush2.bf16.msra.mxu0 %v3212
    %4440 = vmatprep.subr.bf16.mxu0 %v3209
    %4441 = vmatpush2.bf16.msra.mxu0 %v3208
    %4442 = vmatprep.mubr.bf16.mxu0 %v4368
    %4443 = vmatmul.mubr.bf16.gmra.mxu0 %v4367
    %v4444 = vpop.f32.mrf.mxu0
    %v4445 = vadd.f32 0.0, %v4444
    %v4446 = vpop.f32.mrf.mxu0
    %v4447 = vadd.f32 0.0, %v4446
    %v4448 = vpop.f32.mrf.mxu0
    %v4449 = vpop.f32.mrf.mxu0
    %4450 = vdwg.mxu0
    %4451 = vmatprep.subr.bf16.mxu0 %v3527
    %4452 = vmatpush1.bf16.msra.mxu0 %v3526
    %4453 = vmatprep.subr.bf16.mxu0 %v3525
    %4454 = vmatpush1.bf16.msra.mxu0 %v3524
    %4455 = vmatprep.subr.bf16.mxu0 %v3523
    %4456 = vmatpush1.bf16.msra.mxu0 %v3522
    %4457 = vmatprep.subr.bf16.mxu0 %v3521
    %4458 = vmatpush1.bf16.msra.mxu0 %v3520
    %4459 = vmatprep.subr.bf16.mxu0 %v3519
    %4460 = vmatpush1.bf16.msra.mxu0 %v3518
    %4461 = vmatprep.subr.bf16.mxu0 %v3517
    %4462 = vmatpush1.bf16.msra.mxu0 %v3516
    %4463 = vmatprep.subr.bf16.mxu0 %v3515
    %4464 = vmatpush1.bf16.msra.mxu0 %v3514
    %4465 = vmatprep.subr.bf16.mxu0 %v3513
    %4466 = vmatpush1.bf16.msra.mxu0 %v3512
    %4467 = vmatprep.subr.bf16.mxu0 %v3543
    %4468 = vmatpush2.bf16.msra.mxu0 %v3542
    %4469 = vmatprep.subr.bf16.mxu0 %v3541
    %4470 = vmatpush2.bf16.msra.mxu0 %v3540
    %4471 = vmatprep.subr.bf16.mxu0 %v3539
    %4472 = vmatpush2.bf16.msra.mxu0 %v3538
    %4473 = vmatprep.subr.bf16.mxu0 %v3537
    %4474 = vmatpush2.bf16.msra.mxu0 %v3536
    %4475 = vmatprep.subr.bf16.mxu0 %v3535
    %4476 = vmatpush2.bf16.msra.mxu0 %v3534
    %4477 = vmatprep.subr.bf16.mxu0 %v3533
    %4478 = vmatpush2.bf16.msra.mxu0 %v3532
    %4479 = vmatprep.subr.bf16.mxu0 %v3531
    %4480 = vmatpush2.bf16.msra.mxu0 %v3530
    %4481 = vmatprep.subr.bf16.mxu0 %v3529
    %4482 = vmatpush2.bf16.msra.mxu0 %v3528
    %4483 = vmatprep.mubr.bf16.mxu0 %v4368
    %4484 = vmatmul.mubr.bf16.gmra.mxu0 %v4367
    %v4485 = vpop.f32.mrf.mxu0
    %v4486 = vadd.f32 0.0, %v4485
    %v4487 = vpop.f32.mrf.mxu0
    %v4488 = vadd.f32 0.0, %v4487
    %v4489 = vpop.f32.mrf.mxu0
    %v4490 = vpop.f32.mrf.mxu0
    %4491 = vdwg.mxu0
    %v4492 = vadd.f32 %v4361, %v4404
    %v4493 = vadd.f32 %v4362, %v4406
    %v4494 = vxor.u32 %v4492, 2147483648
    %v4495 = vxor.u32 %v4493, 2147483648
    %v4496 = vmul.f32 %v4494, 1.442695
    %v4497 = vpow.pop %v4496
    %v4498 = vmul.f32 %v4495, 1.442695
    %v4499 = vpow.pop %v4498
    %v4500 = vadd.f32 %v4497, 1.0
    %v4501 = vadd.f32 %v4499, 1.0
    %v4502 = vrcp.pop %v4500
    %v4503 = vmul.f32 1.0, %v4502
    %v4504 = vrcp.pop %v4501
    %v4505 = vmul.f32 1.0, %v4504
    %v4506 = vadd.f32 %v4445, %v925
    %v4507 = vadd.f32 %v4447, %v929
    %v4508 = vmul.f32 %v4503, %v4506
    %v4509 = vmul.f32 %v4505, %v4507
    %v4510 = vadd.f32 %v4363, %v4508
    %v4511 = vadd.f32 %v4364, %v4509
    %v4512 = vtanh.pop %v4510
    %v4513 = vtanh.pop %v4511
    %v4514 = vadd.f32 %v4365, %v4486
    %v4515 = vadd.f32 %v4366, %v4488
    %v4516 = vxor.u32 %v4514, 2147483648
    %v4517 = vxor.u32 %v4515, 2147483648
    %v4518 = vmul.f32 %v4516, 1.442695
    %v4519 = vpow.pop %v4518
    %v4520 = vmul.f32 %v4517, 1.442695
    %v4521 = vpow.pop %v4520
    %v4522 = vadd.f32 %v4519, 1.0
    %v4523 = vadd.f32 %v4521, 1.0
    %v4524 = vrcp.pop %v4522
    %v4525 = vmul.f32 1.0, %v4524
    %v4526 = vrcp.pop %v4523
    %v4527 = vmul.f32 1.0, %v4526
    %v4528 = vsub.f32 1.0, %v4525
    %v4529 = vsub.f32 1.0, %v4527
    %v4530 = vmul.f32 %v4528, %v4512
    %v4531 = vmul.f32 %v4529, %v4513
    %v4532 = vmul.f32 %v4525, %v4359
    %v4533 = vmul.f32 %v4527, %v4360
    %v4534 = vadd.f32 %v4530, %v4532
    %v4535 = vadd.f32 %v4531, %v4533
    %s4536 = smul.u32 %s2906, 1
    %s4537 = sshll.u32 %s4536, 4
    %4538 = dma.done %s63, %s4537
    %v4539 = vpack.c.bf16 %v3834, %v3659
    %v4540 = vpack.c.bf16 %v3835, %v3660
    %v4541 = vpack.c.bf16 %v4184, %v4009
    %v4542 = vpack.c.bf16 %v4185, %v4010
    %v4543 = vpack.c.bf16 %v4534, %v4359
    %v4544 = vpack.c.bf16 %v4535, %v4360
    %v4545 = vld [vmem:[#allocation5] sm:$0xf]
    %v4546 = vld [vmem:[#allocation5 + $0x4] sm:$0xf]
    %v4547 = vld [vmem:[#allocation5 + $0x8] sm:$0xf]
    %v4548 = vld [vmem:[#allocation5 + $0xc] sm:$0xf]
    %v4549 = vld [vmem:[#allocation5 + $0x10] sm:$0xf]
    %v4550 = vld [vmem:[#allocation5 + $0x14] sm:$0xf]
    %v4551 = vld [vmem:[#allocation5 + $0x18] sm:$0xf]
    %v4552 = vld [vmem:[#allocation5 + $0x1c] sm:$0xf]
    %v4553 = vld [vmem:[#allocation5 + $0x20] sm:$0xf]
    %v4554 = vld [vmem:[#allocation5 + $0x24] sm:$0xf]
    %v4555 = vld [vmem:[#allocation5 + $0x28] sm:$0xf]
    %v4556 = vld [vmem:[#allocation5 + $0x2c] sm:$0xf]
    %v4557 = vld [vmem:[#allocation5 + $0x30] sm:$0xf]
    %v4558 = vld [vmem:[#allocation5 + $0x34] sm:$0xf]
    %v4559 = vld [vmem:[#allocation5 + $0x38] sm:$0xf]
    %v4560 = vld [vmem:[#allocation5 + $0x3c] sm:$0xf]
    %v4561 = vld [vmem:[#allocation5 + $0x40] sm:$0xf]
    %v4562 = vld [vmem:[#allocation5 + $0x44] sm:$0xf]
    %v4563 = vld [vmem:[#allocation5 + $0x48] sm:$0xf]
    %v4564 = vld [vmem:[#allocation5 + $0x4c] sm:$0xf]
    %v4565 = vld [vmem:[#allocation5 + $0x50] sm:$0xf]
    %v4566 = vld [vmem:[#allocation5 + $0x54] sm:$0xf]
    %v4567 = vld [vmem:[#allocation5 + $0x58] sm:$0xf]
    %v4568 = vld [vmem:[#allocation5 + $0x5c] sm:$0xf]
    %v4569 = vld [vmem:[#allocation5 + $0x60] sm:$0xf]
    %v4570 = vld [vmem:[#allocation5 + $0x64] sm:$0xf]
    %v4571 = vld [vmem:[#allocation5 + $0x68] sm:$0xf]
    %v4572 = vld [vmem:[#allocation5 + $0x6c] sm:$0xf]
    %v4573 = vld [vmem:[#allocation5 + $0x70] sm:$0xf]
    %v4574 = vld [vmem:[#allocation5 + $0x74] sm:$0xf]
    %v4575 = vld [vmem:[#allocation5 + $0x78] sm:$0xf]
    %v4576 = vld [vmem:[#allocation5 + $0x7c] sm:$0xf]
    %v4577 = vld [vmem:[%s9] sm:$0x1]
    %v4579 = vlaneseq
    %v4580 = vshrl.u32 %v4579, 7
    %v4581 = vsub.s32 0, %v4580
    %v4582 = vrot.slane %v4577, %v4581
    %v4616 = vunpack.c.l.b16 %v4545
    %v4617 = vunpack.c.l.b16 %v4546
    %v4618 = vunpack.c.l.b16 %v4547
    %v4619 = vunpack.c.l.b16 %v4548
    %v4620 = vunpack.c.l.b16 %v4549
    %v4621 = vunpack.c.l.b16 %v4550
    %v4622 = vunpack.c.l.b16 %v4551
    %v4623 = vunpack.c.l.b16 %v4552
    %v4624 = vunpack.c.l.b16 %v4553
    %v4625 = vunpack.c.l.b16 %v4554
    %v4626 = vunpack.c.l.b16 %v4555
    %v4627 = vunpack.c.l.b16 %v4556
    %v4628 = vunpack.c.l.b16 %v4557
    %v4629 = vunpack.c.l.b16 %v4558
    %v4630 = vunpack.c.l.b16 %v4559
    %v4631 = vunpack.c.l.b16 %v4560
    %v4632 = vunpack.c.l.b16 %v4561
    %v4633 = vunpack.c.l.b16 %v4562
    %v4634 = vunpack.c.l.b16 %v4563
    %v4635 = vunpack.c.l.b16 %v4564
    %v4636 = vunpack.c.l.b16 %v4565
    %v4637 = vunpack.c.l.b16 %v4566
    %v4638 = vunpack.c.l.b16 %v4567
    %v4639 = vunpack.c.l.b16 %v4568
    %v4640 = vunpack.c.l.b16 %v4569
    %v4641 = vunpack.c.l.b16 %v4570
    %v4642 = vunpack.c.l.b16 %v4571
    %v4643 = vunpack.c.l.b16 %v4572
    %v4644 = vunpack.c.l.b16 %v4573
    %v4645 = vunpack.c.l.b16 %v4574
    %v4646 = vunpack.c.l.b16 %v4575
    %v4647 = vunpack.c.l.b16 %v4576
    %v4648 = vpack.c.b16 %v4617, %v4616
    %v4649 = vpack.c.b16 %v4619, %v4618
    %v4650 = vpack.c.b16 %v4621, %v4620
    %v4651 = vpack.c.b16 %v4623, %v4622
    %v4652 = vpack.c.b16 %v4625, %v4624
    %v4653 = vpack.c.b16 %v4627, %v4626
    %v4654 = vpack.c.b16 %v4629, %v4628
    %v4655 = vpack.c.b16 %v4631, %v4630
    %v4656 = vpack.c.b16 %v4633, %v4632
    %v4657 = vpack.c.b16 %v4635, %v4634
    %v4658 = vpack.c.b16 %v4637, %v4636
    %v4659 = vpack.c.b16 %v4639, %v4638
    %v4660 = vpack.c.b16 %v4641, %v4640
    %v4661 = vpack.c.b16 %v4643, %v4642
    %v4662 = vpack.c.b16 %v4645, %v4644
    %v4663 = vpack.c.b16 %v4647, %v4646
    %4680 = vmatprep.subr.bf16.mxu0 0
    %4681 = vmatpush1.bf16.msra.mxu0 %v4655
    %4682 = vmatprep.subr.bf16.mxu0 0
    %4683 = vmatpush1.bf16.msra.mxu0 %v4654
    %4684 = vmatprep.subr.bf16.mxu0 0
    %4685 = vmatpush1.bf16.msra.mxu0 %v4653
    %4686 = vmatprep.subr.bf16.mxu0 0
    %4687 = vmatpush1.bf16.msra.mxu0 %v4652
    %4688 = vmatprep.subr.bf16.mxu0 0
    %4689 = vmatpush1.bf16.msra.mxu0 %v4651
    %4690 = vmatprep.subr.bf16.mxu0 0
    %4691 = vmatpush1.bf16.msra.mxu0 %v4650
    %4692 = vmatprep.subr.bf16.mxu0 0
    %4693 = vmatpush1.bf16.msra.mxu0 %v4649
    %4694 = vmatprep.subr.bf16.mxu0 0
    %4695 = vmatpush1.bf16.msra.mxu0 %v4648
    %4696 = vmatprep.subr.bf16.mxu0 0
    %4697 = vmatpush2.bf16.msra.mxu0 %v4663
    %4698 = vmatprep.subr.bf16.mxu0 0
    %4699 = vmatpush2.bf16.msra.mxu0 %v4662
    %4700 = vmatprep.subr.bf16.mxu0 0
    %4701 = vmatpush2.bf16.msra.mxu0 %v4661
    %4702 = vmatprep.subr.bf16.mxu0 0
    %4703 = vmatpush2.bf16.msra.mxu0 %v4660
    %4704 = vmatprep.subr.bf16.mxu0 0
    %4705 = vmatpush2.bf16.msra.mxu0 %v4659
    %4706 = vmatprep.subr.bf16.mxu0 0
    %4707 = vmatpush2.bf16.msra.mxu0 %v4658
    %4708 = vmatprep.subr.bf16.mxu0 0
    %4709 = vmatpush2.bf16.msra.mxu0 %v4657
    %4710 = vmatprep.subr.bf16.mxu0 0
    %4711 = vmatpush2.bf16.msra.mxu0 %v4656
    %4712 = vmatprep.mubr.bf16.mxu0 %v4540
    %4713 = vmatmul.mubr.bf16.gmra.mxu0 %v4539
    %v4714 = vpop.f32.mrf.mxu0
    %v4715 = vadd.f32 %v4582, %v4714
    %v4716 = vpop.f32.mrf.mxu0
    %v4717 = vpop.f32.mrf.mxu0
    %v4718 = vadd.f32 %v4582, %v4717
    %v4719 = vpop.f32.mrf.mxu0
    %4720 = vmatprep.mubr.bf16.mxu0 %v4542
    %4721 = vmatmul.mubr.bf16.gmra.mxu0 %v4541
    %v4722 = vpop.f32.mrf.mxu0
    %v4723 = vadd.f32 %v4582, %v4722
    %v4724 = vpop.f32.mrf.mxu0
    %v4725 = vpop.f32.mrf.mxu0
    %v4726 = vadd.f32 %v4582, %v4725
    %v4727 = vpop.f32.mrf.mxu0
    %4728 = vmatprep.mubr.bf16.mxu0 %v4544
    %4729 = vmatmul.mubr.bf16.gmra.mxu0 %v4543
    %v4730 = vpop.f32.mrf.mxu0
    %v4731 = vadd.f32 %v4582, %v4730
    %v4732 = vpop.f32.mrf.mxu0
    %v4733 = vpop.f32.mrf.mxu0
    %v4734 = vadd.f32 %v4582, %v4733
    %v4735 = vpop.f32.mrf.mxu0
    %4736 = vdwg.mxu0
    %4737 = vst [vmem:[%s12] sm:$0xff] %v4715
    %4738 = vst [vmem:[%s12 + $0x8] sm:$0xff] %v4718
    %4739 = vst [vmem:[%s12 + $0x10] sm:$0xff] %v4723
    %4740 = vst [vmem:[%s12 + $0x18] sm:$0xff] %v4726
    %4741 = vst [vmem:[%s12 + $0x20] sm:$0xff] %v4731
    %4742 = vst [vmem:[%s12 + $0x28] sm:$0xff] %v4734
    // Predicated region
    $region84: #{s2s_forward.1} parent=1 // pred_check
      _
    $region85: #{s2s_forward.1} parent=1 // pred_check_branch
      %4744 = sbr.rel (0) target = $region87
    $region86: #{s2s_forward.1} parent=1 // pred_region
      _
    $region87: #{s2s_forward.1} parent=1 // pred_fallthru
      _
    // Predicated region
    $region88: #{s2s_forward.1} parent=1 // pred_check
      _
    $region89: #{s2s_forward.1} parent=1 // pred_check_branch
      %4746 = sbr.rel (0) target = $region91
    $region90: #{s2s_forward.1} parent=1 // pred_region
      _
    $region91: #{s2s_forward.1} parent=1 // pred_fallthru
      _
    %4747 = vsyncpa [#allocation8], 1
  %4748 = vsyncmov [#allocation6]
  %s4749 = vpop.sfrf %4748
  %p4750 = scmp.eq.s32.totalorder %s4749, 0
  %p4751 = pneg %p4750
  %4753 = shalt.err (%p4751)
  %s4754 = scalar_lea.sflag [#allocation6], 1
  %4755 = vsyncmov %s4754
  %s4756 = vpop.sfrf %4755
  %p4757 = scmp.eq.s32.totalorder %s4756, 0
  %p4758 = pneg %p4757
  %4760 = shalt.err (%p4758)

</llo_original>
